<compile_context>
chip_gen: v7x
topology: tpu7x:2x2x1
jax: 0.10.0
libtpu: 0.0.40
codegen_flags: <defaults>
</compile_context>

<pallas_src>
import functools

import jax
import jax.numpy as jnp
from jax.experimental import pallas as pl
from jax.experimental.pallas import tpu as pltpu

LANE = 128      # lane (last-dim) granularity
_VMEM = pl.BlockSpec(memory_space=pltpu.MemorySpace.VMEM)


def _round_up(n, m):
    return ((n + m - 1) // m) * m


def _pad2d(x, rows, cols, dtype):
    out = jnp.zeros((rows, cols), dtype)
    return out.at[: x.shape[0], : x.shape[1]].set(x.astype(dtype))


# ------------------------------ fused kernel --------------------------------

def _make_layer_dst_kernel(num_edge_types, fuse_head, neg_slope=0.01):
    """Kernel computing, for one (layer, dst node type):

         acc = sum_e (A_e @ X_src_e) @ W_l_e      # aggr='add' message + lin_l
             + X_dst @ W_r_sum + b_sum            # merged lin_r / bias terms
         h   = leaky_relu(acc)                    # dropout(training=False) == id
         out = h @ head_w + head_b                # only if fuse_head (last layer)

    Ref order: [A_0, Xs_0, Wl_0, ..., A_{k-1}, Xs_{k-1}, Wl_{k-1},
                X_dst, Wr_sum, b_sum, (head_w, head_b)], out_ref
    """

    def kernel(*refs):
        out_ref = refs[-1]
        i = 0
        acc = None
        for _ in range(num_edge_types):
            a_ref, xs_ref, wl_ref = refs[i], refs[i + 1], refs[i + 2]
            i += 3
            # dense 'add' neighbor aggregation, then lin_l (bias merged later)
            agg = jnp.dot(a_ref[...], xs_ref[...],
                          preferred_element_type=jnp.float32)
            msg = jnp.dot(agg.astype(jnp.bfloat16), wl_ref[...],
                          preferred_element_type=jnp.float32)
            acc = msg if acc is None else acc + msg
        xd_ref, wr_ref, b_ref = refs[i], refs[i + 1], refs[i + 2]
        i += 3
        acc = acc + jnp.dot(xd_ref[...], wr_ref[...],
                            preferred_element_type=jnp.float32)
        acc = acc + b_ref[...]
        # TODO(synk): training-mode dropout (pltpu.prng_random_bits mask) not implemented.
        h = jnp.where(acc >= 0.0, acc, jnp.float32(neg_slope) * acc)
        if fuse_head:
            hw_ref, hb_ref = refs[i], refs[i + 1]
            h = jnp.dot(h.astype(jnp.bfloat16), hw_ref[...],
                        preferred_element_type=jnp.float32) + hb_ref[...]
        out_ref[...] = h.astype(out_ref.dtype)

    return kernel


def _fused_layer_dst(edge_inputs, x_dst, wr_sum, b_sum, head=None,
                     out_dtype=jnp.bfloat16):
    """edge_inputs: list of (A_pad bf16, X_src_pad bf16, W_l_pad bf16)."""
    operands = []
    for a, xs, wl in edge_inputs:
        operands += [a, xs, wl]
    operands += [x_dst, wr_sum, b_sum]
    if head is not None:
        operands += list(head)
        out_cols = head[0].shape[1]
    else:
        out_cols = wr_sum.shape[1]
    kernel = _make_layer_dst_kernel(len(edge_inputs), head is not None)
    return pl.pallas_call(
        kernel,
        out_shape=jax.ShapeDtypeStruct((x_dst.shape[0], out_cols), out_dtype),
        in_specs=[_VMEM] * len(operands),
        out_specs=_VMEM,
    )(*operands)


# ------------------------------ model wrapper --------------------------------

def hetero_gnn_forward(x_dict, adj_dict, conv_params, lin_w, lin_b, *,
                       target='ticker'):
    """x_dict: {node_type: [N, F] f32}; adj_dict: {edge_type: [N_dst, N_src] f32};
    conv_params: list (per layer) of {edge_type: (W_l, b_l, W_r)} (f32);
    lin_w: [hidden, out]; lin_b: [1, out].  Returns [N_target, out] f32."""
    num_layers = len(conv_params)
    out_channels = lin_w.shape[1]
    n_target = x_dict[target].shape[0]

    # Lane-dense padded sizes (node counts to 128 so adjacency lanes are full).
    n_pad = {nt: _round_up(x.shape[0], LANE) for nt, x in x_dict.items()}
    hidden = next(iter(conv_params[0].values()))[0].shape[1]
    h_pad = _round_up(hidden, LANE)
    oc_pad = _round_up(out_channels, LANE)

    # Pad + cast node features and adjacencies to bf16 matmul operands
    # (edge multiplicities are small integers: exact in bf16).
    feats = {nt: _pad2d(x, n_pad[nt], _round_up(x.shape[1], LANE), jnp.bfloat16)
             for nt, x in x_dict.items()}
    adjs = {et: _pad2d(a, n_pad[et[2]], n_pad[et[0]], jnp.bfloat16)
            for et, a in adj_dict.items()}
    head_w = _pad2d(lin_w, h_pad, oc_pad, jnp.bfloat16)
    head_b = _pad2d(lin_b, 1, oc_pad, jnp.float32)

    by_dst = {}
    for et in adj_dict:
        by_dst.setdefault(et[2], []).append(et)

    for li, layer in enumerate(conv_params):
        is_last = li == num_layers - 1
        new_feats = {}
        for dst, ets in by_dst.items():
            if is_last and dst != target:
                continue  # unused by the head; reference model computes & discards
            edge_inputs = []
            wr_sum = None
            b_sum = None
            for et in ets:
                w_l, b_l, w_r = layer[et]
                f_src_pad = feats[et[0]].shape[1]
                edge_inputs.append(
                    (adjs[et], feats[et[0]],
                     _pad2d(w_l, f_src_pad, h_pad, jnp.bfloat16)))
                wr_sum = w_r if wr_sum is None else wr_sum + w_r   # f32 sum
                b_sum = b_l if b_sum is None else b_sum + b_l
            f_dst_pad = feats[dst].shape[1]
            wr_sum_p = _pad2d(wr_sum, f_dst_pad, h_pad, jnp.bfloat16)
            b_sum_p = _pad2d(b_sum, 1, h_pad, jnp.float32)
            head = (head_w, head_b) if (is_last and dst == target) else None
            new_feats[dst] = _fused_layer_dst(
                edge_inputs, feats[dst], wr_sum_p, b_sum_p, head=head,
                out_dtype=jnp.float32 if head is not None else jnp.bfloat16)
        feats = new_feats

    return feats[target][:n_target, :out_channels]


# ------------------------------ params / data --------------------------------

def init_params(key, metadata, feat_dims, hidden, out_channels, num_layers):
    node_types, edge_types = metadata
    conv_params = []
    in_dims = dict(feat_dims)
    for _ in range(num_layers):
        layer = {}
        for et in edge_types:
            src, _, dst = et
            key, k1, k2, k3 = jax.random.split(key, 4)
            f_src, f_dst = in_dims[src], in_dims[dst]
            w_l = jax.random.normal(k1, (f_src, hidden), jnp.float32) / jnp.sqrt(f_src)
            b_l = jax.random.normal(k2, (1, hidden), jnp.float32) * 0.01
            w_r = jax.random.normal(k3, (f_dst, hidden), jnp.float32) / jnp.sqrt(f_dst)
            layer[et] = (w_l, b_l, w_r)
        conv_params.append(layer)
        in_dims = {nt: hidden for nt in node_types}
    key, k1, k2 = jax.random.split(key, 3)
    lin_w = jax.random.normal(k1, (hidden, out_channels), jnp.float32) / jnp.sqrt(hidden)
    lin_b = jax.random.normal(k2, (1, out_channels), jnp.float32) * 0.01
    return conv_params, lin_w, lin_b


def dense_adjacency(edge_index, n_src, n_dst):
    # edge_index: [2, E] (src row, dst row), PyG convention. A[dst, src] += 1.
    src, dst = edge_index[0], edge_index[1]
    a = jnp.zeros((n_dst, n_src), jnp.float32)
    return a.at[dst, src].add(1.0)


# ---------------------------------- Main -------------------------------------

if __name__ == "__main__":
    key = jax.random.PRNGKey(0)

    node_types = ['ticker', 'company']
    edge_types = [
        ('company', 'issues', 'ticker'),
        ('ticker', 'belongs_to', 'company'),
        ('ticker', 'correlates', 'ticker'),
    ]
    metadata = (node_types, edge_types)

    num_nodes = {'ticker': 16, 'company': 12}
    feat_dims = {'ticker': 8, 'company': 6}
    hidden_channels = 32
    out_channels = 1
    num_layers = 2
    num_edges = 40

    key, kt, kc = jax.random.split(key, 3)
    x_dict = {
        'ticker': jax.random.normal(kt, (num_nodes['ticker'], feat_dims['ticker']),
                                    jnp.float32),
        'company': jax.random.normal(kc, (num_nodes['company'], feat_dims['company']),
                                     jnp.float32),
    }

    adj_dict = {}
    for et in edge_types:
        src_t, _, dst_t = et
        key, k1, k2 = jax.random.split(key, 3)
        e_src = jax.random.randint(k1, (num_edges,), 0, num_nodes[src_t])
        e_dst = jax.random.randint(k2, (num_edges,), 0, num_nodes[dst_t])
        edge_index = jnp.stack([e_src, e_dst], axis=0)
        adj_dict[et] = dense_adjacency(edge_index, num_nodes[src_t], num_nodes[dst_t])

    key, pkey = jax.random.split(key)
    conv_params, lin_w, lin_b = init_params(
        pkey, metadata, feat_dims, hidden_channels, out_channels, num_layers)

    forward = jax.jit(functools.partial(hetero_gnn_forward, target='ticker'))
    out = forward(x_dict, adj_dict, conv_params, lin_w, lin_b)
    out = jax.block_until_ready(out)

    assert out.shape == (num_nodes['ticker'], out_channels)
    assert bool(jnp.all(jnp.isfinite(out)))
    print("KERNEL_OK")
</pallas_src>

<mosaic_0001>
module attributes {stable_mosaic.version = 11 : i64} {
  func.func @kernel(%arg0: memref<128x128xbf16, #tpu.memory_space<vmem>>, %arg1: memref<128x128xbf16, #tpu.memory_space<vmem>>, %arg2: memref<128x128xbf16, #tpu.memory_space<vmem>>, %arg3: memref<128x128xbf16, #tpu.memory_space<vmem>>, %arg4: memref<128x128xbf16, #tpu.memory_space<vmem>>, %arg5: memref<128x128xbf16, #tpu.memory_space<vmem>>, %arg6: memref<128x128xbf16, #tpu.memory_space<vmem>>, %arg7: memref<128x128xbf16, #tpu.memory_space<vmem>>, %arg8: memref<1x128xf32, #tpu.memory_space<vmem>>, %arg9: memref<128x128xbf16, #tpu.memory_space<vmem>>) attributes {dimension_semantics = [], scalar_prefetch = 0 : i64, scratch_operands = 0 : i64, tpu.core_type = #tpu.core_type<tc>} {
    %c0 = arith.constant 0 : index
    %c0_0 = arith.constant 0 : index
    %0 = vector.load %arg0[%c0, %c0_0] : memref<128x128xbf16, #tpu.memory_space<vmem>>, vector<128x128xbf16>
    %c0_1 = arith.constant 0 : index
    %c0_2 = arith.constant 0 : index
    %1 = vector.load %arg1[%c0_1, %c0_2] : memref<128x128xbf16, #tpu.memory_space<vmem>>, vector<128x128xbf16>
    %cst = arith.constant dense<0.000000e+00> : vector<128x128xf32>
    %2 = tpu.matmul %0, %1, %cst {dimension_numbers = #tpu.dot_dimension_numbers<[1], [0], [0], [1], [0, 0, 1, 1], [], []>} : vector<128x128xbf16>, vector<128x128xbf16>, vector<128x128xf32> -> vector<128x128xf32>
    %3 = arith.truncf %2 : vector<128x128xf32> to vector<128x128xbf16>
    %c0_3 = arith.constant 0 : index
    %c0_4 = arith.constant 0 : index
    %4 = vector.load %arg2[%c0_3, %c0_4] : memref<128x128xbf16, #tpu.memory_space<vmem>>, vector<128x128xbf16>
    %cst_5 = arith.constant dense<0.000000e+00> : vector<128x128xf32>
    %5 = tpu.matmul %3, %4, %cst_5 {dimension_numbers = #tpu.dot_dimension_numbers<[1], [0], [0], [1], [0, 0, 1, 1], [], []>} : vector<128x128xbf16>, vector<128x128xbf16>, vector<128x128xf32> -> vector<128x128xf32>
    %c0_6 = arith.constant 0 : index
    %c0_7 = arith.constant 0 : index
    %6 = vector.load %arg3[%c0_6, %c0_7] : memref<128x128xbf16, #tpu.memory_space<vmem>>, vector<128x128xbf16>
    %c0_8 = arith.constant 0 : index
    %c0_9 = arith.constant 0 : index
    %7 = vector.load %arg4[%c0_8, %c0_9] : memref<128x128xbf16, #tpu.memory_space<vmem>>, vector<128x128xbf16>
    %cst_10 = arith.constant dense<0.000000e+00> : vector<128x128xf32>
    %8 = tpu.matmul %6, %7, %cst_10 {dimension_numbers = #tpu.dot_dimension_numbers<[1], [0], [0], [1], [0, 0, 1, 1], [], []>} : vector<128x128xbf16>, vector<128x128xbf16>, vector<128x128xf32> -> vector<128x128xf32>
    %9 = arith.truncf %8 : vector<128x128xf32> to vector<128x128xbf16>
    %c0_11 = arith.constant 0 : index
    %c0_12 = arith.constant 0 : index
    %10 = vector.load %arg5[%c0_11, %c0_12] : memref<128x128xbf16, #tpu.memory_space<vmem>>, vector<128x128xbf16>
    %cst_13 = arith.constant dense<0.000000e+00> : vector<128x128xf32>
    %11 = tpu.matmul %9, %10, %cst_13 {dimension_numbers = #tpu.dot_dimension_numbers<[1], [0], [0], [1], [0, 0, 1, 1], [], []>} : vector<128x128xbf16>, vector<128x128xbf16>, vector<128x128xf32> -> vector<128x128xf32>
    %12 = arith.addf %5, %11 : vector<128x128xf32>
    %c0_14 = arith.constant 0 : index
    %c0_15 = arith.constant 0 : index
    %13 = vector.load %arg6[%c0_14, %c0_15] : memref<128x128xbf16, #tpu.memory_space<vmem>>, vector<128x128xbf16>
    %c0_16 = arith.constant 0 : index
    %c0_17 = arith.constant 0 : index
    %14 = vector.load %arg7[%c0_16, %c0_17] : memref<128x128xbf16, #tpu.memory_space<vmem>>, vector<128x128xbf16>
    %cst_18 = arith.constant dense<0.000000e+00> : vector<128x128xf32>
    %15 = tpu.matmul %13, %14, %cst_18 {dimension_numbers = #tpu.dot_dimension_numbers<[1], [0], [0], [1], [0, 0, 1, 1], [], []>} : vector<128x128xbf16>, vector<128x128xbf16>, vector<128x128xf32> -> vector<128x128xf32>
    %16 = arith.addf %12, %15 : vector<128x128xf32>
    %c0_19 = arith.constant 0 : index
    %c0_20 = arith.constant 0 : index
    %17 = vector.load %arg8[%c0_19, %c0_20] : memref<1x128xf32, #tpu.memory_space<vmem>>, vector<1x128xf32>
    %18 = vector.broadcast %17 : vector<1x128xf32> to vector<128x128xf32>
    %19 = arith.addf %16, %18 : vector<128x128xf32>
    %cst_21 = arith.constant 0.000000e+00 : f32
    %20 = vector.broadcast %cst_21 : f32 to vector<128x128xf32>
    %21 = arith.cmpf oge, %19, %20 : vector<128x128xf32>
    %cst_22 = arith.constant 0.00999999977 : f32
    %22 = vector.broadcast %cst_22 : f32 to vector<128x128xf32>
    %23 = arith.mulf %22, %19 : vector<128x128xf32>
    %24 = arith.select %21, %19, %23 : vector<128x128xi1>, vector<128x128xf32>
    %25 = arith.truncf %24 : vector<128x128xf32> to vector<128x128xbf16>
    %c0_23 = arith.constant 0 : index
    %c0_24 = arith.constant 0 : index
    %26 = vector.load %arg9[%c0_23, %c0_24] : memref<128x128xbf16, #tpu.memory_space<vmem>>, vector<128x128xbf16>
    tpu.vector_store %arg9[%c0_23, %c0_24], %25 {strides = array<i32>} : memref<128x128xbf16, #tpu.memory_space<vmem>>, vector<128x128xbf16>,
    return
  }
}

module attributes {stable_mosaic.version = 11 : i64} {
  func.func @kernel(%arg0: memref<128x128xbf16, #tpu.memory_space<vmem>>, %arg1: memref<128x128xbf16, #tpu.memory_space<vmem>>, %arg2: memref<128x128xbf16, #tpu.memory_space<vmem>>, %arg3: memref<128x128xbf16, #tpu.memory_space<vmem>>, %arg4: memref<128x128xbf16, #tpu.memory_space<vmem>>, %arg5: memref<1x128xf32, #tpu.memory_space<vmem>>, %arg6: memref<128x128xbf16, #tpu.memory_space<vmem>>) attributes {dimension_semantics = [], scalar_prefetch = 0 : i64, scratch_operands = 0 : i64, tpu.core_type = #tpu.core_type<tc>} {
    %c0 = arith.constant 0 : index
    %c0_0 = arith.constant 0 : index
    %0 = vector.load %arg0[%c0, %c0_0] : memref<128x128xbf16, #tpu.memory_space<vmem>>, vector<128x128xbf16>
    %c0_1 = arith.constant 0 : index
    %c0_2 = arith.constant 0 : index
    %1 = vector.load %arg1[%c0_1, %c0_2] : memref<128x128xbf16, #tpu.memory_space<vmem>>, vector<128x128xbf16>
    %cst = arith.constant dense<0.000000e+00> : vector<128x128xf32>
    %2 = tpu.matmul %0, %1, %cst {dimension_numbers = #tpu.dot_dimension_numbers<[1], [0], [0], [1], [0, 0, 1, 1], [], []>} : vector<128x128xbf16>, vector<128x128xbf16>, vector<128x128xf32> -> vector<128x128xf32>
    %3 = arith.truncf %2 : vector<128x128xf32> to vector<128x128xbf16>
    %c0_3 = arith.constant 0 : index
    %c0_4 = arith.constant 0 : index
    %4 = vector.load %arg2[%c0_3, %c0_4] : memref<128x128xbf16, #tpu.memory_space<vmem>>, vector<128x128xbf16>
    %cst_5 = arith.constant dense<0.000000e+00> : vector<128x128xf32>
    %5 = tpu.matmul %3, %4, %cst_5 {dimension_numbers = #tpu.dot_dimension_numbers<[1], [0], [0], [1], [0, 0, 1, 1], [], []>} : vector<128x128xbf16>, vector<128x128xbf16>, vector<128x128xf32> -> vector<128x128xf32>
    %c0_6 = arith.constant 0 : index
    %c0_7 = arith.constant 0 : index
    %6 = vector.load %arg3[%c0_6, %c0_7] : memref<128x128xbf16, #tpu.memory_space<vmem>>, vector<128x128xbf16>
    %c0_8 = arith.constant 0 : index
    %c0_9 = arith.constant 0 : index
    %7 = vector.load %arg4[%c0_8, %c0_9] : memref<128x128xbf16, #tpu.memory_space<vmem>>, vector<128x128xbf16>
    %cst_10 = arith.constant dense<0.000000e+00> : vector<128x128xf32>
    %8 = tpu.matmul %6, %7, %cst_10 {dimension_numbers = #tpu.dot_dimension_numbers<[1], [0], [0], [1], [0, 0, 1, 1], [], []>} : vector<128x128xbf16>, vector<128x128xbf16>, vector<128x128xf32> -> vector<128x128xf32>
    %9 = arith.addf %5, %8 : vector<128x128xf32>
    %c0_11 = arith.constant 0 : index
    %c0_12 = arith.constant 0 : index
    %10 = vector.load %arg5[%c0_11, %c0_12] : memref<1x128xf32, #tpu.memory_space<vmem>>, vector<1x128xf32>
    %11 = vector.broadcast %10 : vector<1x128xf32> to vector<128x128xf32>
    %12 = arith.addf %9, %11 : vector<128x128xf32>
    %cst_13 = arith.constant 0.000000e+00 : f32
    %13 = vector.broadcast %cst_13 : f32 to vector<128x128xf32>
    %14 = arith.cmpf oge, %12, %13 : vector<128x128xf32>
    %cst_14 = arith.constant 0.00999999977 : f32
    %15 = vector.broadcast %cst_14 : f32 to vector<128x128xf32>
    %16 = arith.mulf %15, %12 : vector<128x128xf32>
    %17 = arith.select %14, %12, %16 : vector<128x128xi1>, vector<128x128xf32>
    %18 = arith.truncf %17 : vector<128x128xf32> to vector<128x128xbf16>
    %c0_15 = arith.constant 0 : index
    %c0_16 = arith.constant 0 : index
    %19 = vector.load %arg6[%c0_15, %c0_16] : memref<128x128xbf16, #tpu.memory_space<vmem>>, vector<128x128xbf16>
    tpu.vector_store %arg6[%c0_15, %c0_16], %18 {strides = array<i32>} : memref<128x128xbf16, #tpu.memory_space<vmem>>, vector<128x128xbf16>,
    return
  }
}

module attributes {stable_mosaic.version = 11 : i64} {
  func.func @kernel(%arg0: memref<128x128xbf16, #tpu.memory_space<vmem>>, %arg1: memref<128x128xbf16, #tpu.memory_space<vmem>>, %arg2: memref<128x128xbf16, #tpu.memory_space<vmem>>, %arg3: memref<128x128xbf16, #tpu.memory_space<vmem>>, %arg4: memref<128x128xbf16, #tpu.memory_space<vmem>>, %arg5: memref<128x128xbf16, #tpu.memory_space<vmem>>, %arg6: memref<128x128xbf16, #tpu.memory_space<vmem>>, %arg7: memref<128x128xbf16, #tpu.memory_space<vmem>>, %arg8: memref<1x128xf32, #tpu.memory_space<vmem>>, %arg9: memref<128x128xbf16, #tpu.memory_space<vmem>>, %arg10: memref<1x128xf32, #tpu.memory_space<vmem>>, %arg11: memref<128x128xf32, #tpu.memory_space<vmem>>) attributes {dimension_semantics = [], scalar_prefetch = 0 : i64, scratch_operands = 0 : i64, tpu.core_type = #tpu.core_type<tc>} {
    %c0 = arith.constant 0 : index
    %c0_0 = arith.constant 0 : index
    %0 = vector.load %arg0[%c0, %c0_0] : memref<128x128xbf16, #tpu.memory_space<vmem>>, vector<128x128xbf16>
    %c0_1 = arith.constant 0 : index
    %c0_2 = arith.constant 0 : index
    %1 = vector.load %arg1[%c0_1, %c0_2] : memref<128x128xbf16, #tpu.memory_space<vmem>>, vector<128x128xbf16>
    %cst = arith.constant dense<0.000000e+00> : vector<128x128xf32>
    %2 = tpu.matmul %0, %1, %cst {dimension_numbers = #tpu.dot_dimension_numbers<[1], [0], [0], [1], [0, 0, 1, 1], [], []>} : vector<128x128xbf16>, vector<128x128xbf16>, vector<128x128xf32> -> vector<128x128xf32>
    %3 = arith.truncf %2 : vector<128x128xf32> to vector<128x128xbf16>
    %c0_3 = arith.constant 0 : index
    %c0_4 = arith.constant 0 : index
    %4 = vector.load %arg2[%c0_3, %c0_4] : memref<128x128xbf16, #tpu.memory_space<vmem>>, vector<128x128xbf16>
    %cst_5 = arith.constant dense<0.000000e+00> : vector<128x128xf32>
    %5 = tpu.matmul %3, %4, %cst_5 {dimension_numbers = #tpu.dot_dimension_numbers<[1], [0], [0], [1], [0, 0, 1, 1], [], []>} : vector<128x128xbf16>, vector<128x128xbf16>, vector<128x128xf32> -> vector<128x128xf32>
    %c0_6 = arith.constant 0 : index
    %c0_7 = arith.constant 0 : index
    %6 = vector.load %arg3[%c0_6, %c0_7] : memref<128x128xbf16, #tpu.memory_space<vmem>>, vector<128x128xbf16>
    %c0_8 = arith.constant 0 : index
    %c0_9 = arith.constant 0 : index
    %7 = vector.load %arg4[%c0_8, %c0_9] : memref<128x128xbf16, #tpu.memory_space<vmem>>, vector<128x128xbf16>
    %cst_10 = arith.constant dense<0.000000e+00> : vector<128x128xf32>
    %8 = tpu.matmul %6, %7, %cst_10 {dimension_numbers = #tpu.dot_dimension_numbers<[1], [0], [0], [1], [0, 0, 1, 1], [], []>} : vector<128x128xbf16>, vector<128x128xbf16>, vector<128x128xf32> -> vector<128x128xf32>
    %9 = arith.truncf %8 : vector<128x128xf32> to vector<128x128xbf16>
    %c0_11 = arith.constant 0 : index
    %c0_12 = arith.constant 0 : index
    %10 = vector.load %arg5[%c0_11, %c0_12] : memref<128x128xbf16, #tpu.memory_space<vmem>>, vector<128x128xbf16>
    %cst_13 = arith.constant dense<0.000000e+00> : vector<128x128xf32>
    %11 = tpu.matmul %9, %10, %cst_13 {dimension_numbers = #tpu.dot_dimension_numbers<[1], [0], [0], [1], [0, 0, 1, 1], [], []>} : vector<128x128xbf16>, vector<128x128xbf16>, vector<128x128xf32> -> vector<128x128xf32>
    %12 = arith.addf %5, %11 : vector<128x128xf32>
    %c0_14 = arith.constant 0 : index
    %c0_15 = arith.constant 0 : index
    %13 = vector.load %arg6[%c0_14, %c0_15] : memref<128x128xbf16, #tpu.memory_space<vmem>>, vector<128x128xbf16>
    %c0_16 = arith.constant 0 : index
    %c0_17 = arith.constant 0 : index
    %14 = vector.load %arg7[%c0_16, %c0_17] : memref<128x128xbf16, #tpu.memory_space<vmem>>, vector<128x128xbf16>
    %cst_18 = arith.constant dense<0.000000e+00> : vector<128x128xf32>
    %15 = tpu.matmul %13, %14, %cst_18 {dimension_numbers = #tpu.dot_dimension_numbers<[1], [0], [0], [1], [0, 0, 1, 1], [], []>} : vector<128x128xbf16>, vector<128x128xbf16>, vector<128x128xf32> -> vector<128x128xf32>
    %16 = arith.addf %12, %15 : vector<128x128xf32>
    %c0_19 = arith.constant 0 : index
    %c0_20 = arith.constant 0 : index
    %17 = vector.load %arg8[%c0_19, %c0_20] : memref<1x128xf32, #tpu.memory_space<vmem>>, vector<1x128xf32>
    %18 = vector.broadcast %17 : vector<1x128xf32> to vector<128x128xf32>
    %19 = arith.addf %16, %18 : vector<128x128xf32>
    %cst_21 = arith.constant 0.000000e+00 : f32
    %20 = vector.broadcast %cst_21 : f32 to vector<128x128xf32>
    %21 = arith.cmpf oge, %19, %20 : vector<128x128xf32>
    %cst_22 = arith.constant 0.00999999977 : f32
    %22 = vector.broadcast %cst_22 : f32 to vector<128x128xf32>
    %23 = arith.mulf %22, %19 : vector<128x128xf32>
    %24 = arith.select %21, %19, %23 : vector<128x128xi1>, vector<128x128xf32>
    %25 = arith.truncf %24 : vector<128x128xf32> to vector<128x128xbf16>
    %c0_23 = arith.constant 0 : index
    %c0_24 = arith.constant 0 : index
    %26 = vector.load %arg9[%c0_23, %c0_24] : memref<128x128xbf16, #tpu.memory_space<vmem>>, vector<128x128xbf16>
    %cst_25 = arith.constant dense<0.000000e+00> : vector<128x128xf32>
    %27 = tpu.matmul %25, %26, %cst_25 {dimension_numbers = #tpu.dot_dimension_numbers<[1], [0], [0], [1], [0, 0, 1, 1], [], []>} : vector<128x128xbf16>, vector<128x128xbf16>, vector<128x128xf32> -> vector<128x128xf32>
    %c0_26 = arith.constant 0 : index
    %c0_27 = arith.constant 0 : index
    %28 = vector.load %arg10[%c0_26, %c0_27] : memref<1x128xf32, #tpu.memory_space<vmem>>, vector<1x128xf32>
    %29 = vector.broadcast %28 : vector<1x128xf32> to vector<128x128xf32>
    %30 = arith.addf %27, %29 : vector<128x128xf32>
    %c0_28 = arith.constant 0 : index
    %c0_29 = arith.constant 0 : index
    %31 = vector.load %arg11[%c0_28, %c0_29] : memref<128x128xf32, #tpu.memory_space<vmem>>, vector<128x128xf32>
    tpu.vector_store %arg11[%c0_28, %c0_29], %30 {strides = array<i32>} : memref<128x128xf32, #tpu.memory_space<vmem>>, vector<128x128xf32>,
    return
  }
}

</mosaic_0001>

<llo_original>
// kernel: hetero_gnn_forward.4
$region0: #{hetero_gnn_forward.4}
  #allocation0 [shape = 'u32[]', space=smem, size = 0x4, offset = 0x4, fixed_abs, tag = 'smem constant byte address 0x4 - core index']
  #allocation1 [shape = 'u32[144,128]{1,0:T(1,128)}', space=vmem, size = 0x12000, scoped, tag = 'internal scratch']
  %s0 = inlined_call_operand.vmem [shape: bf16[128,128], index: 0, kind: input, shape index: {}]
  %s1 = inlined_call_operand.vmem [shape: bf16[128,128], index: 1, kind: input, shape index: {}]
  %s2 = inlined_call_operand.vmem [shape: bf16[128,128], index: 2, kind: input, shape index: {}]
  %s3 = inlined_call_operand.vmem [shape: bf16[128,128], index: 3, kind: input, shape index: {}]
  %s4 = inlined_call_operand.vmem [shape: bf16[128,128], index: 4, kind: input, shape index: {}]
  %s5 = inlined_call_operand.vmem [shape: f32[1,128], index: 5, kind: input, shape index: {}]
  %s6 = inlined_call_operand.vmem [shape: bf16[128,128], index: 6, kind: output, shape index: {}]
  %s7 = sld [smem:[#allocation0]]
  $region34: #{hetero_gnn_forward.4} parent=0
    _
  %s9 = ssub.s32 1, %s7
  %s10 = scalar_select 0, %s9, %s7
  // Predicated region
  $region2: #{hetero_gnn_forward.4} parent=0 // pred_check
    _
  $region3: #{hetero_gnn_forward.4} parent=0 // pred_check_branch
    %12 = sbr.rel (0) target = $region5
  $region4: #{hetero_gnn_forward.4} parent=0 // pred_region
    _
  $region5: #{hetero_gnn_forward.4} parent=0 // pred_fallthru
    _
  // Predicated region
  $region6: #{hetero_gnn_forward.4} parent=0 // pred_check
    _
  $region7: #{hetero_gnn_forward.4} parent=0 // pred_check_branch
    %14 = sbr.rel (0) target = $region9
  $region8: #{hetero_gnn_forward.4} parent=0 // pred_region
    _
  $region9: #{hetero_gnn_forward.4} parent=0 // pred_fallthru
    _
  // Predicated region
  $region10: #{hetero_gnn_forward.4} parent=0 // pred_check
    _
  $region11: #{hetero_gnn_forward.4} parent=0 // pred_check_branch
    %16 = sbr.rel (0) target = $region13
  $region12: #{hetero_gnn_forward.4} parent=0 // pred_region
    _
  $region13: #{hetero_gnn_forward.4} parent=0 // pred_fallthru
    _
  // Predicated region
  $region14: #{hetero_gnn_forward.4} parent=0 // pred_check
    _
  $region15: #{hetero_gnn_forward.4} parent=0 // pred_check_branch
    %18 = sbr.rel (0) target = $region17
  $region16: #{hetero_gnn_forward.4} parent=0 // pred_region
    _
  $region17: #{hetero_gnn_forward.4} parent=0 // pred_fallthru
    _
  // Predicated region
  $region18: #{hetero_gnn_forward.4} parent=0 // pred_check
    _
  $region19: #{hetero_gnn_forward.4} parent=0 // pred_check_branch
    %20 = sbr.rel (0) target = $region21
  $region20: #{hetero_gnn_forward.4} parent=0 // pred_region
    _
  $region21: #{hetero_gnn_forward.4} parent=0 // pred_fallthru
    _
  // Predicated region
  $region22: #{hetero_gnn_forward.4} parent=0 // pred_check
    _
  $region23: #{hetero_gnn_forward.4} parent=0 // pred_check_branch
    %22 = sbr.rel (0) target = $region25
  $region24: #{hetero_gnn_forward.4} parent=0 // pred_region
    _
  $region25: #{hetero_gnn_forward.4} parent=0 // pred_fallthru
    _
  %v24 = vld [vmem:[%s0] sm:$0xf]
  %v25 = vld [vmem:[%s0 + $0x4] sm:$0xf]
  %v26 = vld [vmem:[%s0 + $0x8] sm:$0xf]
  %v27 = vld [vmem:[%s0 + $0xc] sm:$0xf]
  %v28 = vld [vmem:[%s0 + $0x10] sm:$0xf]
  %v29 = vld [vmem:[%s0 + $0x14] sm:$0xf]
  %v30 = vld [vmem:[%s0 + $0x18] sm:$0xf]
  %v31 = vld [vmem:[%s0 + $0x1c] sm:$0xf]
  %v32 = vld [vmem:[%s0 + $0x20] sm:$0xf]
  %v33 = vld [vmem:[%s0 + $0x24] sm:$0xf]
  %v34 = vld [vmem:[%s0 + $0x28] sm:$0xf]
  %v35 = vld [vmem:[%s0 + $0x2c] sm:$0xf]
  %v36 = vld [vmem:[%s0 + $0x30] sm:$0xf]
  %v37 = vld [vmem:[%s0 + $0x34] sm:$0xf]
  %v38 = vld [vmem:[%s0 + $0x38] sm:$0xf]
  %v39 = vld [vmem:[%s0 + $0x3c] sm:$0xf]
  %v40 = vld [vmem:[%s1] sm:$0xf]
  %v41 = vld [vmem:[%s1 + $0x4] sm:$0xf]
  %v42 = vld [vmem:[%s1 + $0x8] sm:$0xf]
  %v43 = vld [vmem:[%s1 + $0xc] sm:$0xf]
  %v44 = vld [vmem:[%s1 + $0x10] sm:$0xf]
  %v45 = vld [vmem:[%s1 + $0x14] sm:$0xf]
  %v46 = vld [vmem:[%s1 + $0x18] sm:$0xf]
  %v47 = vld [vmem:[%s1 + $0x1c] sm:$0xf]
  %v48 = vld [vmem:[%s1 + $0x20] sm:$0xf]
  %v49 = vld [vmem:[%s1 + $0x24] sm:$0xf]
  %v50 = vld [vmem:[%s1 + $0x28] sm:$0xf]
  %v51 = vld [vmem:[%s1 + $0x2c] sm:$0xf]
  %v52 = vld [vmem:[%s1 + $0x30] sm:$0xf]
  %v53 = vld [vmem:[%s1 + $0x34] sm:$0xf]
  %v54 = vld [vmem:[%s1 + $0x38] sm:$0xf]
  %v55 = vld [vmem:[%s1 + $0x3c] sm:$0xf]
  %v72 = vunpack.c.l.b16 %v24
  %v73 = vunpack.c.l.b16 %v25
  %v74 = vunpack.c.l.b16 %v26
  %v75 = vunpack.c.l.b16 %v27
  %v76 = vunpack.c.l.b16 %v28
  %v77 = vunpack.c.l.b16 %v29
  %v78 = vunpack.c.l.b16 %v30
  %v79 = vunpack.c.l.b16 %v31
  %v80 = vunpack.c.l.b16 %v32
  %v81 = vunpack.c.l.b16 %v33
  %v82 = vunpack.c.l.b16 %v34
  %v83 = vunpack.c.l.b16 %v35
  %v84 = vunpack.c.l.b16 %v36
  %v85 = vunpack.c.l.b16 %v37
  %v86 = vunpack.c.l.b16 %v38
  %v87 = vunpack.c.l.b16 %v39
  %v88 = vpack.c.b16 %v73, %v72
  %v89 = vpack.c.b16 %v75, %v74
  %v90 = vpack.c.b16 %v77, %v76
  %v91 = vpack.c.b16 %v79, %v78
  %v92 = vpack.c.b16 %v81, %v80
  %v93 = vpack.c.b16 %v83, %v82
  %v94 = vpack.c.b16 %v85, %v84
  %v95 = vpack.c.b16 %v87, %v86
  %v120 = vunpack.c.l.b16 %v40
  %v121 = vunpack.c.l.b16 %v41
  %v122 = vunpack.c.l.b16 %v42
  %v123 = vunpack.c.l.b16 %v43
  %v124 = vunpack.c.l.b16 %v44
  %v125 = vunpack.c.l.b16 %v45
  %v126 = vunpack.c.l.b16 %v46
  %v127 = vunpack.c.l.b16 %v47
  %v128 = vunpack.c.l.b16 %v48
  %v129 = vunpack.c.l.b16 %v49
  %v130 = vunpack.c.l.b16 %v50
  %v131 = vunpack.c.l.b16 %v51
  %v132 = vunpack.c.l.b16 %v52
  %v133 = vunpack.c.l.b16 %v53
  %v134 = vunpack.c.l.b16 %v54
  %v135 = vunpack.c.l.b16 %v55
  %v136 = vpack.c.b16 %v121, %v120
  %v137 = vpack.c.b16 %v123, %v122
  %v138 = vpack.c.b16 %v125, %v124
  %v139 = vpack.c.b16 %v127, %v126
  %v140 = vpack.c.b16 %v129, %v128
  %v141 = vpack.c.b16 %v131, %v130
  %v142 = vpack.c.b16 %v133, %v132
  %v143 = vpack.c.b16 %v135, %v134
  %152 = vmatprep.subr.bf16.mxu0 0
  %153 = vmatpush1.bf16.msra.mxu0 %v136
  %154 = vmatprep.subr.bf16.mxu0 0
  %155 = vmatpush1.bf16.msra.mxu0 %v137
  %156 = vmatprep.subr.bf16.mxu0 0
  %157 = vmatpush1.bf16.msra.mxu0 %v138
  %158 = vmatprep.subr.bf16.mxu0 0
  %159 = vmatpush1.bf16.msra.mxu0 %v139
  %160 = vmatprep.subr.bf16.mxu0 0
  %161 = vmatpush1.bf16.msra.mxu0 %v140
  %162 = vmatprep.subr.bf16.mxu0 0
  %163 = vmatpush1.bf16.msra.mxu0 %v141
  %164 = vmatprep.subr.bf16.mxu0 0
  %165 = vmatpush1.bf16.msra.mxu0 %v142
  %166 = vmatprep.subr.bf16.mxu0 0
  %167 = vmatpush1.bf16.msra.mxu0 %v143
  %168 = vmatprep.subr.bf16.mxu0 0
  %169 = vmatpush1.bf16.msra.mxu0 0
  %170 = vmatprep.subr.bf16.mxu0 0
  %171 = vmatpush1.bf16.msra.mxu0 0
  %172 = vmatprep.subr.bf16.mxu0 0
  %173 = vmatpush1.bf16.msra.mxu0 0
  %174 = vmatprep.subr.bf16.mxu0 0
  %175 = vmatpush1.bf16.msra.mxu0 0
  %176 = vmatprep.subr.bf16.mxu0 0
  %177 = vmatpush1.bf16.msra.mxu0 0
  %178 = vmatprep.subr.bf16.mxu0 0
  %179 = vmatpush1.bf16.msra.mxu0 0
  %180 = vmatprep.subr.bf16.mxu0 0
  %181 = vmatpush1.bf16.msra.mxu0 0
  %182 = vmatprep.subr.bf16.mxu0 0
  %183 = vmatpush1.bf16.msra.mxu0 0
  %184 = vmatprep.mubr.bf16.mxu0 0
  %185 = vmatmul.mubr.bf16.gmra.mrb[0].mxu0 %v88
  %v186 = vpop.f32.mrb[0].mxu0
  %v187 = vadd.f32 0.0, %v186
  %v188 = vpop.f32.mrb[0].mxu0
  %v189 = vpop.f32.mrb[0].mxu0
  %v190 = vadd.f32 0.0, %v189
  %v191 = vpop.f32.mrb[0].mxu0
  %192 = vmatprep.mubr.bf16.mxu0 0
  %193 = vmatmul.mubr.bf16.gmra.mrb[0].mxu0 %v89
  %v194 = vpop.f32.mrb[0].mxu0
  %v195 = vadd.f32 0.0, %v194
  %v196 = vpop.f32.mrb[0].mxu0
  %v197 = vpop.f32.mrb[0].mxu0
  %v198 = vadd.f32 0.0, %v197
  %v199 = vpop.f32.mrb[0].mxu0
  %200 = vmatprep.mubr.bf16.mxu0 0
  %201 = vmatmul.mubr.bf16.gmra.mrb[0].mxu0 %v90
  %v202 = vpop.f32.mrb[0].mxu0
  %v203 = vadd.f32 0.0, %v202
  %v204 = vpop.f32.mrb[0].mxu0
  %v205 = vpop.f32.mrb[0].mxu0
  %v206 = vadd.f32 0.0, %v205
  %v207 = vpop.f32.mrb[0].mxu0
  %208 = vmatprep.mubr.bf16.mxu0 0
  %209 = vmatmul.mubr.bf16.gmra.mrb[0].mxu0 %v91
  %v210 = vpop.f32.mrb[0].mxu0
  %v211 = vadd.f32 0.0, %v210
  %v212 = vpop.f32.mrb[0].mxu0
  %v213 = vpop.f32.mrb[0].mxu0
  %v214 = vadd.f32 0.0, %v213
  %v215 = vpop.f32.mrb[0].mxu0
  %216 = vmatprep.mubr.bf16.mxu0 0
  %217 = vmatmul.mubr.bf16.gmra.mrb[0].mxu0 %v92
  %v218 = vpop.f32.mrb[0].mxu0
  %v219 = vadd.f32 0.0, %v218
  %v220 = vpop.f32.mrb[0].mxu0
  %v221 = vpop.f32.mrb[0].mxu0
  %v222 = vadd.f32 0.0, %v221
  %v223 = vpop.f32.mrb[0].mxu0
  %224 = vmatprep.mubr.bf16.mxu0 0
  %225 = vmatmul.mubr.bf16.gmra.mrb[0].mxu0 %v93
  %v226 = vpop.f32.mrb[0].mxu0
  %v227 = vadd.f32 0.0, %v226
  %v228 = vpop.f32.mrb[0].mxu0
  %v229 = vpop.f32.mrb[0].mxu0
  %v230 = vadd.f32 0.0, %v229
  %v231 = vpop.f32.mrb[0].mxu0
  %232 = vmatprep.mubr.bf16.mxu0 0
  %233 = vmatmul.mubr.bf16.gmra.mrb[0].mxu0 %v94
  %v234 = vpop.f32.mrb[0].mxu0
  %v235 = vadd.f32 0.0, %v234
  %v236 = vpop.f32.mrb[0].mxu0
  %v237 = vpop.f32.mrb[0].mxu0
  %v238 = vadd.f32 0.0, %v237
  %v239 = vpop.f32.mrb[0].mxu0
  %240 = vmatprep.mubr.bf16.mxu0 0
  %241 = vmatmul.mubr.bf16.gmra.mrb[0].mxu0 %v95
  %v242 = vpop.f32.mrb[0].mxu0
  %v243 = vadd.f32 0.0, %v242
  %v244 = vpop.f32.mrb[0].mxu0
  %v245 = vpop.f32.mrb[0].mxu0
  %v246 = vadd.f32 0.0, %v245
  %v247 = vpop.f32.mrb[0].mxu0
  %248 = vdwg.mxu0
  %v249 = vpack.c.bf16 %v190, %v187
  %v250 = vpack.c.bf16 %v198, %v195
  %v251 = vpack.c.bf16 %v206, %v203
  %v252 = vpack.c.bf16 %v214, %v211
  %v253 = vpack.c.bf16 %v222, %v219
  %v254 = vpack.c.bf16 %v230, %v227
  %v255 = vpack.c.bf16 %v238, %v235
  %v256 = vpack.c.bf16 %v246, %v243
  %v257 = vld [vmem:[%s2] sm:$0xf]
  %v258 = vld [vmem:[%s2 + $0x4] sm:$0xf]
  %v259 = vld [vmem:[%s2 + $0x8] sm:$0xf]
  %v260 = vld [vmem:[%s2 + $0xc] sm:$0xf]
  %v261 = vld [vmem:[%s2 + $0x10] sm:$0xf]
  %v262 = vld [vmem:[%s2 + $0x14] sm:$0xf]
  %v263 = vld [vmem:[%s2 + $0x18] sm:$0xf]
  %v264 = vld [vmem:[%s2 + $0x1c] sm:$0xf]
  %v265 = vld [vmem:[%s2 + $0x20] sm:$0xf]
  %v266 = vld [vmem:[%s2 + $0x24] sm:$0xf]
  %v267 = vld [vmem:[%s2 + $0x28] sm:$0xf]
  %v268 = vld [vmem:[%s2 + $0x2c] sm:$0xf]
  %v269 = vld [vmem:[%s2 + $0x30] sm:$0xf]
  %v270 = vld [vmem:[%s2 + $0x34] sm:$0xf]
  %v271 = vld [vmem:[%s2 + $0x38] sm:$0xf]
  %v272 = vld [vmem:[%s2 + $0x3c] sm:$0xf]
  %v273 = vld [vmem:[%s3] sm:$0xf]
  %v274 = vld [vmem:[%s3 + $0x4] sm:$0xf]
  %v275 = vld [vmem:[%s3 + $0x8] sm:$0xf]
  %v276 = vld [vmem:[%s3 + $0xc] sm:$0xf]
  %v277 = vld [vmem:[%s3 + $0x10] sm:$0xf]
  %v278 = vld [vmem:[%s3 + $0x14] sm:$0xf]
  %v279 = vld [vmem:[%s3 + $0x18] sm:$0xf]
  %v280 = vld [vmem:[%s3 + $0x1c] sm:$0xf]
  %v281 = vld [vmem:[%s3 + $0x20] sm:$0xf]
  %v282 = vld [vmem:[%s3 + $0x24] sm:$0xf]
  %v283 = vld [vmem:[%s3 + $0x28] sm:$0xf]
  %v284 = vld [vmem:[%s3 + $0x2c] sm:$0xf]
  %v285 = vld [vmem:[%s3 + $0x30] sm:$0xf]
  %v286 = vld [vmem:[%s3 + $0x34] sm:$0xf]
  %v287 = vld [vmem:[%s3 + $0x38] sm:$0xf]
  %v288 = vld [vmem:[%s3 + $0x3c] sm:$0xf]
  %v289 = vld [vmem:[%s4] sm:$0xf]
  %v290 = vld [vmem:[%s4 + $0x4] sm:$0xf]
  %v291 = vld [vmem:[%s4 + $0x8] sm:$0xf]
  %v292 = vld [vmem:[%s4 + $0xc] sm:$0xf]
  %v293 = vld [vmem:[%s4 + $0x10] sm:$0xf]
  %v294 = vld [vmem:[%s4 + $0x14] sm:$0xf]
  %v295 = vld [vmem:[%s4 + $0x18] sm:$0xf]
  %v296 = vld [vmem:[%s4 + $0x1c] sm:$0xf]
  %v297 = vld [vmem:[%s4 + $0x20] sm:$0xf]
  %v298 = vld [vmem:[%s4 + $0x24] sm:$0xf]
  %v299 = vld [vmem:[%s4 + $0x28] sm:$0xf]
  %v300 = vld [vmem:[%s4 + $0x2c] sm:$0xf]
  %v301 = vld [vmem:[%s4 + $0x30] sm:$0xf]
  %v302 = vld [vmem:[%s4 + $0x34] sm:$0xf]
  %v303 = vld [vmem:[%s4 + $0x38] sm:$0xf]
  %v304 = vld [vmem:[%s4 + $0x3c] sm:$0xf]
  %v321 = vunpack.c.l.b16 %v273
  %v322 = vunpack.c.l.b16 %v274
  %v323 = vunpack.c.l.b16 %v275
  %v324 = vunpack.c.l.b16 %v276
  %v325 = vunpack.c.l.b16 %v277
  %v326 = vunpack.c.l.b16 %v278
  %v327 = vunpack.c.l.b16 %v279
  %v328 = vunpack.c.l.b16 %v280
  %v329 = vunpack.c.l.b16 %v281
  %v330 = vunpack.c.l.b16 %v282
  %v331 = vunpack.c.l.b16 %v283
  %v332 = vunpack.c.l.b16 %v284
  %v333 = vunpack.c.l.b16 %v285
  %v334 = vunpack.c.l.b16 %v286
  %v335 = vunpack.c.l.b16 %v287
  %v336 = vunpack.c.l.b16 %v288
  %v337 = vpack.c.b16 %v322, %v321
  %v338 = vpack.c.b16 %v324, %v323
  %v339 = vpack.c.b16 %v326, %v325
  %v340 = vpack.c.b16 %v328, %v327
  %v341 = vpack.c.b16 %v330, %v329
  %v342 = vpack.c.b16 %v332, %v331
  %v343 = vpack.c.b16 %v334, %v333
  %v344 = vpack.c.b16 %v336, %v335
  %v369 = vunpack.c.l.b16 %v289
  %v370 = vunpack.c.l.b16 %v290
  %v371 = vunpack.c.l.b16 %v291
  %v372 = vunpack.c.l.b16 %v292
  %v373 = vunpack.c.l.b16 %v293
  %v374 = vunpack.c.l.b16 %v294
  %v375 = vunpack.c.l.b16 %v295
  %v376 = vunpack.c.l.b16 %v296
  %v377 = vunpack.c.l.b16 %v297
  %v378 = vunpack.c.l.b16 %v298
  %v379 = vunpack.c.l.b16 %v299
  %v380 = vunpack.c.l.b16 %v300
  %v381 = vunpack.c.l.b16 %v301
  %v382 = vunpack.c.l.b16 %v302
  %v383 = vunpack.c.l.b16 %v303
  %v384 = vunpack.c.l.b16 %v304
  %v385 = vpack.c.b16 %v370, %v369
  %v386 = vpack.c.b16 %v372, %v371
  %v387 = vpack.c.b16 %v374, %v373
  %v388 = vpack.c.b16 %v376, %v375
  %v389 = vpack.c.b16 %v378, %v377
  %v390 = vpack.c.b16 %v380, %v379
  %v391 = vpack.c.b16 %v382, %v381
  %v392 = vpack.c.b16 %v384, %v383
  %401 = vmatprep.subr.bf16.mxu0 0
  %402 = vmatpush1.bf16.msra.mxu0 %v385
  %403 = vmatprep.subr.bf16.mxu0 0
  %404 = vmatpush1.bf16.msra.mxu0 %v386
  %405 = vmatprep.subr.bf16.mxu0 0
  %406 = vmatpush1.bf16.msra.mxu0 %v387
  %407 = vmatprep.subr.bf16.mxu0 0
  %408 = vmatpush1.bf16.msra.mxu0 %v388
  %409 = vmatprep.subr.bf16.mxu0 0
  %410 = vmatpush1.bf16.msra.mxu0 %v389
  %411 = vmatprep.subr.bf16.mxu0 0
  %412 = vmatpush1.bf16.msra.mxu0 %v390
  %413 = vmatprep.subr.bf16.mxu0 0
  %414 = vmatpush1.bf16.msra.mxu0 %v391
  %415 = vmatprep.subr.bf16.mxu0 0
  %416 = vmatpush1.bf16.msra.mxu0 %v392
  %417 = vmatprep.subr.bf16.mxu0 0
  %418 = vmatpush1.bf16.msra.mxu0 0
  %419 = vmatprep.subr.bf16.mxu0 0
  %420 = vmatpush1.bf16.msra.mxu0 0
  %421 = vmatprep.subr.bf16.mxu0 0
  %422 = vmatpush1.bf16.msra.mxu0 0
  %423 = vmatprep.subr.bf16.mxu0 0
  %424 = vmatpush1.bf16.msra.mxu0 0
  %425 = vmatprep.subr.bf16.mxu0 0
  %426 = vmatpush1.bf16.msra.mxu0 0
  %427 = vmatprep.subr.bf16.mxu0 0
  %428 = vmatpush1.bf16.msra.mxu0 0
  %429 = vmatprep.subr.bf16.mxu0 0
  %430 = vmatpush1.bf16.msra.mxu0 0
  %431 = vmatprep.subr.bf16.mxu0 0
  %432 = vmatpush1.bf16.msra.mxu0 0
  %433 = vmatprep.mubr.bf16.mxu0 0
  %434 = vmatmul.mubr.bf16.gmra.mrb[0].mxu0 %v337
  %v435 = vpop.f32.mrb[0].mxu0
  %v436 = vadd.f32 0.0, %v435
  %v437 = vpop.f32.mrb[0].mxu0
  %v438 = vpop.f32.mrb[0].mxu0
  %v439 = vadd.f32 0.0, %v438
  %v440 = vpop.f32.mrb[0].mxu0
  %441 = vmatprep.mubr.bf16.mxu0 0
  %442 = vmatmul.mubr.bf16.gmra.mrb[0].mxu0 %v338
  %v443 = vpop.f32.mrb[0].mxu0
  %v444 = vadd.f32 0.0, %v443
  %v445 = vpop.f32.mrb[0].mxu0
  %v446 = vpop.f32.mrb[0].mxu0
  %v447 = vadd.f32 0.0, %v446
  %v448 = vpop.f32.mrb[0].mxu0
  %449 = vmatprep.mubr.bf16.mxu0 0
  %450 = vmatmul.mubr.bf16.gmra.mrb[0].mxu0 %v339
  %v451 = vpop.f32.mrb[0].mxu0
  %v452 = vadd.f32 0.0, %v451
  %v453 = vpop.f32.mrb[0].mxu0
  %v454 = vpop.f32.mrb[0].mxu0
  %v455 = vadd.f32 0.0, %v454
  %v456 = vpop.f32.mrb[0].mxu0
  %457 = vmatprep.mubr.bf16.mxu0 0
  %458 = vmatmul.mubr.bf16.gmra.mrb[0].mxu0 %v340
  %v459 = vpop.f32.mrb[0].mxu0
  %v460 = vadd.f32 0.0, %v459
  %v461 = vpop.f32.mrb[0].mxu0
  %v462 = vpop.f32.mrb[0].mxu0
  %v463 = vadd.f32 0.0, %v462
  %v464 = vpop.f32.mrb[0].mxu0
  %465 = vmatprep.mubr.bf16.mxu0 0
  %466 = vmatmul.mubr.bf16.gmra.mrb[0].mxu0 %v341
  %v467 = vpop.f32.mrb[0].mxu0
  %v468 = vadd.f32 0.0, %v467
  %v469 = vpop.f32.mrb[0].mxu0
  %v470 = vpop.f32.mrb[0].mxu0
  %v471 = vadd.f32 0.0, %v470
  %v472 = vpop.f32.mrb[0].mxu0
  %473 = vmatprep.mubr.bf16.mxu0 0
  %474 = vmatmul.mubr.bf16.gmra.mrb[0].mxu0 %v342
  %v475 = vpop.f32.mrb[0].mxu0
  %v476 = vadd.f32 0.0, %v475
  %v477 = vpop.f32.mrb[0].mxu0
  %v478 = vpop.f32.mrb[0].mxu0
  %v479 = vadd.f32 0.0, %v478
  %v480 = vpop.f32.mrb[0].mxu0
  %481 = vmatprep.mubr.bf16.mxu0 0
  %482 = vmatmul.mubr.bf16.gmra.mrb[0].mxu0 %v343
  %v483 = vpop.f32.mrb[0].mxu0
  %v484 = vadd.f32 0.0, %v483
  %v485 = vpop.f32.mrb[0].mxu0
  %v486 = vpop.f32.mrb[0].mxu0
  %v487 = vadd.f32 0.0, %v486
  %v488 = vpop.f32.mrb[0].mxu0
  %489 = vmatprep.mubr.bf16.mxu0 0
  %490 = vmatmul.mubr.bf16.gmra.mrb[0].mxu0 %v344
  %v491 = vpop.f32.mrb[0].mxu0
  %v492 = vadd.f32 0.0, %v491
  %v493 = vpop.f32.mrb[0].mxu0
  %v494 = vpop.f32.mrb[0].mxu0
  %v495 = vadd.f32 0.0, %v494
  %v496 = vpop.f32.mrb[0].mxu0
  %497 = vdwg.mxu0
  %v514 = vunpack.c.l.b16 %v257
  %v515 = vunpack.c.l.b16 %v258
  %v516 = vunpack.c.l.b16 %v259
  %v517 = vunpack.c.l.b16 %v260
  %v518 = vunpack.c.l.b16 %v261
  %v519 = vunpack.c.l.b16 %v262
  %v520 = vunpack.c.l.b16 %v263
  %v521 = vunpack.c.l.b16 %v264
  %v522 = vunpack.c.l.b16 %v265
  %v523 = vunpack.c.l.b16 %v266
  %v524 = vunpack.c.l.b16 %v267
  %v525 = vunpack.c.l.b16 %v268
  %v526 = vunpack.c.l.b16 %v269
  %v527 = vunpack.c.l.b16 %v270
  %v528 = vunpack.c.l.b16 %v271
  %v529 = vunpack.c.l.b16 %v272
  %v530 = vpack.c.b16 %v515, %v514
  %v531 = vpack.c.b16 %v517, %v516
  %v532 = vpack.c.b16 %v519, %v518
  %v533 = vpack.c.b16 %v521, %v520
  %v534 = vpack.c.b16 %v523, %v522
  %v535 = vpack.c.b16 %v525, %v524
  %v536 = vpack.c.b16 %v527, %v526
  %v537 = vpack.c.b16 %v529, %v528
  %546 = vmatprep.subr.bf16.mxu0 0
  %547 = vmatpush1.bf16.msra.mxu0 %v530
  %548 = vmatprep.subr.bf16.mxu0 0
  %549 = vmatpush1.bf16.msra.mxu0 %v531
  %550 = vmatprep.subr.bf16.mxu0 0
  %551 = vmatpush1.bf16.msra.mxu0 %v532
  %552 = vmatprep.subr.bf16.mxu0 0
  %553 = vmatpush1.bf16.msra.mxu0 %v533
  %554 = vmatprep.subr.bf16.mxu0 0
  %555 = vmatpush1.bf16.msra.mxu0 %v534
  %556 = vmatprep.subr.bf16.mxu0 0
  %557 = vmatpush1.bf16.msra.mxu0 %v535
  %558 = vmatprep.subr.bf16.mxu0 0
  %559 = vmatpush1.bf16.msra.mxu0 %v536
  %560 = vmatprep.subr.bf16.mxu0 0
  %561 = vmatpush1.bf16.msra.mxu0 %v537
  %562 = vmatprep.subr.bf16.mxu0 0
  %563 = vmatpush1.bf16.msra.mxu0 0
  %564 = vmatprep.subr.bf16.mxu0 0
  %565 = vmatpush1.bf16.msra.mxu0 0
  %566 = vmatprep.subr.bf16.mxu0 0
  %567 = vmatpush1.bf16.msra.mxu0 0
  %568 = vmatprep.subr.bf16.mxu0 0
  %569 = vmatpush1.bf16.msra.mxu0 0
  %570 = vmatprep.subr.bf16.mxu0 0
  %571 = vmatpush1.bf16.msra.mxu0 0
  %572 = vmatprep.subr.bf16.mxu0 0
  %573 = vmatpush1.bf16.msra.mxu0 0
  %574 = vmatprep.subr.bf16.mxu0 0
  %575 = vmatpush1.bf16.msra.mxu0 0
  %576 = vmatprep.subr.bf16.mxu0 0
  %577 = vmatpush1.bf16.msra.mxu0 0
  %578 = vmatprep.mubr.bf16.mxu0 0
  %579 = vmatmul.mubr.bf16.gmra.mrb[0].mxu0 %v249
  %v580 = vpop.f32.mrb[0].mxu0
  %v581 = vadd.f32 %v436, %v580
  %v582 = vpop.f32.mrb[0].mxu0
  %v583 = vpop.f32.mrb[0].mxu0
  %v584 = vadd.f32 %v439, %v583
  %v585 = vpop.f32.mrb[0].mxu0
  %586 = vmatprep.mubr.bf16.mxu0 0
  %587 = vmatmul.mubr.bf16.gmra.mrb[0].mxu0 %v250
  %v588 = vpop.f32.mrb[0].mxu0
  %v589 = vadd.f32 %v444, %v588
  %v590 = vpop.f32.mrb[0].mxu0
  %v591 = vpop.f32.mrb[0].mxu0
  %v592 = vadd.f32 %v447, %v591
  %v593 = vpop.f32.mrb[0].mxu0
  %594 = vmatprep.mubr.bf16.mxu0 0
  %595 = vmatmul.mubr.bf16.gmra.mrb[0].mxu0 %v251
  %v596 = vpop.f32.mrb[0].mxu0
  %v597 = vadd.f32 %v452, %v596
  %v598 = vpop.f32.mrb[0].mxu0
  %v599 = vpop.f32.mrb[0].mxu0
  %v600 = vadd.f32 %v455, %v599
  %v601 = vpop.f32.mrb[0].mxu0
  %602 = vmatprep.mubr.bf16.mxu0 0
  %603 = vmatmul.mubr.bf16.gmra.mrb[0].mxu0 %v252
  %v604 = vpop.f32.mrb[0].mxu0
  %v605 = vadd.f32 %v460, %v604
  %v606 = vpop.f32.mrb[0].mxu0
  %v607 = vpop.f32.mrb[0].mxu0
  %v608 = vadd.f32 %v463, %v607
  %v609 = vpop.f32.mrb[0].mxu0
  %610 = vmatprep.mubr.bf16.mxu0 0
  %611 = vmatmul.mubr.bf16.gmra.mrb[0].mxu0 %v253
  %v612 = vpop.f32.mrb[0].mxu0
  %v613 = vadd.f32 %v468, %v612
  %v614 = vpop.f32.mrb[0].mxu0
  %v615 = vpop.f32.mrb[0].mxu0
  %v616 = vadd.f32 %v471, %v615
  %v617 = vpop.f32.mrb[0].mxu0
  %618 = vmatprep.mubr.bf16.mxu0 0
  %619 = vmatmul.mubr.bf16.gmra.mrb[0].mxu0 %v254
  %v620 = vpop.f32.mrb[0].mxu0
  %v621 = vadd.f32 %v476, %v620
  %v622 = vpop.f32.mrb[0].mxu0
  %v623 = vpop.f32.mrb[0].mxu0
  %v624 = vadd.f32 %v479, %v623
  %v625 = vpop.f32.mrb[0].mxu0
  %626 = vmatprep.mubr.bf16.mxu0 0
  %627 = vmatmul.mubr.bf16.gmra.mrb[0].mxu0 %v255
  %v628 = vpop.f32.mrb[0].mxu0
  %v629 = vadd.f32 %v484, %v628
  %v630 = vpop.f32.mrb[0].mxu0
  %v631 = vpop.f32.mrb[0].mxu0
  %v632 = vadd.f32 %v487, %v631
  %v633 = vpop.f32.mrb[0].mxu0
  %634 = vmatprep.mubr.bf16.mxu0 0
  %635 = vmatmul.mubr.bf16.gmra.mrb[0].mxu0 %v256
  %v636 = vpop.f32.mrb[0].mxu0
  %v637 = vadd.f32 %v492, %v636
  %v638 = vpop.f32.mrb[0].mxu0
  %v639 = vpop.f32.mrb[0].mxu0
  %v640 = vadd.f32 %v495, %v639
  %v641 = vpop.f32.mrb[0].mxu0
  %642 = vdwg.mxu0
  %v643 = vld [vmem:[%s5] sm:$0x1]
  %v645 = vlaneseq
  %v646 = vshrl.u32 %v645, 7
  %v647 = vsub.s32 0, %v646
  %v648 = vrot.slane %v643, %v647
  %v650 = vadd.f32 %v581, %v648
  %v651 = vadd.f32 %v584, %v648
  %v652 = vadd.f32 %v589, %v648
  %v653 = vadd.f32 %v592, %v648
  %v654 = vadd.f32 %v597, %v648
  %v655 = vadd.f32 %v600, %v648
  %v656 = vadd.f32 %v605, %v648
  %v657 = vadd.f32 %v608, %v648
  %v658 = vadd.f32 %v613, %v648
  %v659 = vadd.f32 %v616, %v648
  %v660 = vadd.f32 %v621, %v648
  %v661 = vadd.f32 %v624, %v648
  %v662 = vadd.f32 %v629, %v648
  %v663 = vadd.f32 %v632, %v648
  %v664 = vadd.f32 %v637, %v648
  %v665 = vadd.f32 %v640, %v648
  %vm666 = vcmp.ge.f32.partialorder %v650, 0.0
  %vm667 = vcmp.ge.f32.partialorder %v651, 0.0
  %vm668 = vcmp.ge.f32.partialorder %v652, 0.0
  %vm669 = vcmp.ge.f32.partialorder %v653, 0.0
  %vm670 = vcmp.ge.f32.partialorder %v654, 0.0
  %vm671 = vcmp.ge.f32.partialorder %v655, 0.0
  %vm672 = vcmp.ge.f32.partialorder %v656, 0.0
  %vm673 = vcmp.ge.f32.partialorder %v657, 0.0
  %vm674 = vcmp.ge.f32.partialorder %v658, 0.0
  %vm675 = vcmp.ge.f32.partialorder %v659, 0.0
  %vm676 = vcmp.ge.f32.partialorder %v660, 0.0
  %vm677 = vcmp.ge.f32.partialorder %v661, 0.0
  %vm678 = vcmp.ge.f32.partialorder %v662, 0.0
  %vm679 = vcmp.ge.f32.partialorder %v663, 0.0
  %vm680 = vcmp.ge.f32.partialorder %v664, 0.0
  %vm681 = vcmp.ge.f32.partialorder %v665, 0.0
  %v682 = vmul.f32 %v650, 0.01
  %v683 = vmul.f32 %v651, 0.01
  %v684 = vmul.f32 %v652, 0.01
  %v685 = vmul.f32 %v653, 0.01
  %v686 = vmul.f32 %v654, 0.01
  %v687 = vmul.f32 %v655, 0.01
  %v688 = vmul.f32 %v656, 0.01
  %v689 = vmul.f32 %v657, 0.01
  %v690 = vmul.f32 %v658, 0.01
  %v691 = vmul.f32 %v659, 0.01
  %v692 = vmul.f32 %v660, 0.01
  %v693 = vmul.f32 %v661, 0.01
  %v694 = vmul.f32 %v662, 0.01
  %v695 = vmul.f32 %v663, 0.01
  %v696 = vmul.f32 %v664, 0.01
  %v697 = vmul.f32 %v665, 0.01
  %v698 = vsel %vm666, %v650, %v682
  %v699 = vsel %vm667, %v651, %v683
  %v700 = vsel %vm668, %v652, %v684
  %v701 = vsel %vm669, %v653, %v685
  %v702 = vsel %vm670, %v654, %v686
  %v703 = vsel %vm671, %v655, %v687
  %v704 = vsel %vm672, %v656, %v688
  %v705 = vsel %vm673, %v657, %v689
  %v706 = vsel %vm674, %v658, %v690
  %v707 = vsel %vm675, %v659, %v691
  %v708 = vsel %vm676, %v660, %v692
  %v709 = vsel %vm677, %v661, %v693
  %v710 = vsel %vm678, %v662, %v694
  %v711 = vsel %vm679, %v663, %v695
  %v712 = vsel %vm680, %v664, %v696
  %v713 = vsel %vm681, %v665, %v697
  %v714 = vpack.c.bf16 %v699, %v698
  %v715 = vpack.c.bf16 %v701, %v700
  %v716 = vpack.c.bf16 %v703, %v702
  %v717 = vpack.c.bf16 %v705, %v704
  %v718 = vpack.c.bf16 %v707, %v706
  %v719 = vpack.c.bf16 %v709, %v708
  %v720 = vpack.c.bf16 %v711, %v710
  %v721 = vpack.c.bf16 %v713, %v712
  %v730 = vunpack.c.l.b16 %v714
  %v731 = vunpack.c.h.b16 %v714
  %v732 = vunpack.c.l.b16 %v715
  %v733 = vunpack.c.h.b16 %v715
  %v734 = vunpack.c.l.b16 %v716
  %v735 = vunpack.c.h.b16 %v716
  %v736 = vunpack.c.l.b16 %v717
  %v737 = vunpack.c.h.b16 %v717
  %v738 = vunpack.c.l.b16 %v718
  %v739 = vunpack.c.h.b16 %v718
  %v740 = vunpack.c.l.b16 %v719
  %v741 = vunpack.c.h.b16 %v719
  %v742 = vunpack.c.l.b16 %v720
  %v743 = vunpack.c.h.b16 %v720
  %v744 = vunpack.c.l.b16 %v721
  %v745 = vunpack.c.h.b16 %v721
  %v746 = vpack.c.b16 %v730, %v730
  %v747 = vpack.c.b16 %v731, %v731
  %v748 = vpack.c.b16 %v732, %v732
  %v749 = vpack.c.b16 %v733, %v733
  %v750 = vpack.c.b16 %v734, %v734
  %v751 = vpack.c.b16 %v735, %v735
  %v752 = vpack.c.b16 %v736, %v736
  %v753 = vpack.c.b16 %v737, %v737
  %v754 = vpack.c.b16 %v738, %v738
  %v755 = vpack.c.b16 %v739, %v739
  %v756 = vpack.c.b16 %v740, %v740
  %v757 = vpack.c.b16 %v741, %v741
  %v758 = vpack.c.b16 %v742, %v742
  %v759 = vpack.c.b16 %v743, %v743
  %v760 = vpack.c.b16 %v744, %v744
  %v761 = vpack.c.b16 %v745, %v745
  %778 = vst [vmem:[%s6] sm:$0xf] %v746
  %779 = vst [vmem:[%s6 + $0x4] sm:$0xf] %v747
  %780 = vst [vmem:[%s6 + $0x8] sm:$0xf] %v748
  %781 = vst [vmem:[%s6 + $0xc] sm:$0xf] %v749
  %782 = vst [vmem:[%s6 + $0x10] sm:$0xf] %v750
  %783 = vst [vmem:[%s6 + $0x14] sm:$0xf] %v751
  %784 = vst [vmem:[%s6 + $0x18] sm:$0xf] %v752
  %785 = vst [vmem:[%s6 + $0x1c] sm:$0xf] %v753
  %786 = vst [vmem:[%s6 + $0x20] sm:$0xf] %v754
  %787 = vst [vmem:[%s6 + $0x24] sm:$0xf] %v755
  %788 = vst [vmem:[%s6 + $0x28] sm:$0xf] %v756
  %789 = vst [vmem:[%s6 + $0x2c] sm:$0xf] %v757
  %790 = vst [vmem:[%s6 + $0x30] sm:$0xf] %v758
  %791 = vst [vmem:[%s6 + $0x34] sm:$0xf] %v759
  %792 = vst [vmem:[%s6 + $0x38] sm:$0xf] %v760
  %793 = vst [vmem:[%s6 + $0x3c] sm:$0xf] %v761
  // Predicated region
  $region26: #{hetero_gnn_forward.4} parent=0 // pred_check
    _
  $region27: #{hetero_gnn_forward.4} parent=0 // pred_check_branch
    %795 = sbr.rel (0) target = $region29
  $region28: #{hetero_gnn_forward.4} parent=0 // pred_region
    _
  $region29: #{hetero_gnn_forward.4} parent=0 // pred_fallthru
    _
  // Predicated region
  $region30: #{hetero_gnn_forward.4} parent=0 // pred_check
    _
  $region31: #{hetero_gnn_forward.4} parent=0 // pred_check_branch
    %797 = sbr.rel (0) target = $region33
  $region32: #{hetero_gnn_forward.4} parent=0 // pred_region
    _
  $region33: #{hetero_gnn_forward.4} parent=0 // pred_fallthru
    _

// kernel: hetero_gnn_forward.3
$region0: #{hetero_gnn_forward.3}
  #allocation0 [shape = 'u32[]', space=smem, size = 0x4, offset = 0x4, fixed_abs, tag = 'smem constant byte address 0x4 - core index']
  #allocation1 [shape = 'u32[144,128]{1,0:T(1,128)}', space=vmem, size = 0x12000, scoped, tag = 'internal scratch']
  %s0 = inlined_call_operand.vmem [shape: bf16[128,128], index: 0, kind: input, shape index: {}]
  %s1 = inlined_call_operand.vmem [shape: bf16[128,128], index: 1, kind: input, shape index: {}]
  %s2 = inlined_call_operand.vmem [shape: bf16[128,128], index: 2, kind: input, shape index: {}]
  %s3 = inlined_call_operand.vmem [shape: bf16[128,128], index: 3, kind: input, shape index: {}]
  %s4 = inlined_call_operand.vmem [shape: bf16[128,128], index: 4, kind: input, shape index: {}, may-alias: {4,6}]
  %s5 = inlined_call_operand.vmem [shape: bf16[128,128], index: 5, kind: input, shape index: {}]
  %s6 = inlined_call_operand.vmem [shape: bf16[128,128], index: 6, kind: input, shape index: {}, may-alias: {4,6}]
  %s7 = inlined_call_operand.vmem [shape: bf16[128,128], index: 7, kind: input, shape index: {}]
  %s8 = inlined_call_operand.vmem [shape: f32[1,128], index: 8, kind: input, shape index: {}]
  %s9 = inlined_call_operand.vmem [shape: bf16[128,128], index: 9, kind: output, shape index: {}]
  %s10 = sld [smem:[#allocation0]]
  $region46: #{hetero_gnn_forward.3} parent=0
    _
  %s12 = ssub.s32 1, %s10
  %s13 = scalar_select 0, %s12, %s10
  // Predicated region
  $region2: #{hetero_gnn_forward.3} parent=0 // pred_check
    _
  $region3: #{hetero_gnn_forward.3} parent=0 // pred_check_branch
    %15 = sbr.rel (0) target = $region5
  $region4: #{hetero_gnn_forward.3} parent=0 // pred_region
    _
  $region5: #{hetero_gnn_forward.3} parent=0 // pred_fallthru
    _
  // Predicated region
  $region6: #{hetero_gnn_forward.3} parent=0 // pred_check
    _
  $region7: #{hetero_gnn_forward.3} parent=0 // pred_check_branch
    %17 = sbr.rel (0) target = $region9
  $region8: #{hetero_gnn_forward.3} parent=0 // pred_region
    _
  $region9: #{hetero_gnn_forward.3} parent=0 // pred_fallthru
    _
  // Predicated region
  $region10: #{hetero_gnn_forward.3} parent=0 // pred_check
    _
  $region11: #{hetero_gnn_forward.3} parent=0 // pred_check_branch
    %19 = sbr.rel (0) target = $region13
  $region12: #{hetero_gnn_forward.3} parent=0 // pred_region
    _
  $region13: #{hetero_gnn_forward.3} parent=0 // pred_fallthru
    _
  // Predicated region
  $region14: #{hetero_gnn_forward.3} parent=0 // pred_check
    _
  $region15: #{hetero_gnn_forward.3} parent=0 // pred_check_branch
    %21 = sbr.rel (0) target = $region17
  $region16: #{hetero_gnn_forward.3} parent=0 // pred_region
    _
  $region17: #{hetero_gnn_forward.3} parent=0 // pred_fallthru
    _
  // Predicated region
  $region18: #{hetero_gnn_forward.3} parent=0 // pred_check
    _
  $region19: #{hetero_gnn_forward.3} parent=0 // pred_check_branch
    %23 = sbr.rel (0) target = $region21
  $region20: #{hetero_gnn_forward.3} parent=0 // pred_region
    _
  $region21: #{hetero_gnn_forward.3} parent=0 // pred_fallthru
    _
  // Predicated region
  $region22: #{hetero_gnn_forward.3} parent=0 // pred_check
    _
  $region23: #{hetero_gnn_forward.3} parent=0 // pred_check_branch
    %25 = sbr.rel (0) target = $region25
  $region24: #{hetero_gnn_forward.3} parent=0 // pred_region
    _
  $region25: #{hetero_gnn_forward.3} parent=0 // pred_fallthru
    _
  // Predicated region
  $region26: #{hetero_gnn_forward.3} parent=0 // pred_check
    _
  $region27: #{hetero_gnn_forward.3} parent=0 // pred_check_branch
    %27 = sbr.rel (0) target = $region29
  $region28: #{hetero_gnn_forward.3} parent=0 // pred_region
    _
  $region29: #{hetero_gnn_forward.3} parent=0 // pred_fallthru
    _
  // Predicated region
  $region30: #{hetero_gnn_forward.3} parent=0 // pred_check
    _
  $region31: #{hetero_gnn_forward.3} parent=0 // pred_check_branch
    %29 = sbr.rel (0) target = $region33
  $region32: #{hetero_gnn_forward.3} parent=0 // pred_region
    _
  $region33: #{hetero_gnn_forward.3} parent=0 // pred_fallthru
    _
  // Predicated region
  $region34: #{hetero_gnn_forward.3} parent=0 // pred_check
    _
  $region35: #{hetero_gnn_forward.3} parent=0 // pred_check_branch
    %31 = sbr.rel (0) target = $region37
  $region36: #{hetero_gnn_forward.3} parent=0 // pred_region
    _
  $region37: #{hetero_gnn_forward.3} parent=0 // pred_fallthru
    _
  %v33 = vld [vmem:[%s0] sm:$0xf]
  %v34 = vld [vmem:[%s0 + $0x4] sm:$0xf]
  %v35 = vld [vmem:[%s0 + $0x8] sm:$0xf]
  %v36 = vld [vmem:[%s0 + $0xc] sm:$0xf]
  %v37 = vld [vmem:[%s0 + $0x10] sm:$0xf]
  %v38 = vld [vmem:[%s0 + $0x14] sm:$0xf]
  %v39 = vld [vmem:[%s0 + $0x18] sm:$0xf]
  %v40 = vld [vmem:[%s0 + $0x1c] sm:$0xf]
  %v41 = vld [vmem:[%s0 + $0x20] sm:$0xf]
  %v42 = vld [vmem:[%s0 + $0x24] sm:$0xf]
  %v43 = vld [vmem:[%s0 + $0x28] sm:$0xf]
  %v44 = vld [vmem:[%s0 + $0x2c] sm:$0xf]
  %v45 = vld [vmem:[%s0 + $0x30] sm:$0xf]
  %v46 = vld [vmem:[%s0 + $0x34] sm:$0xf]
  %v47 = vld [vmem:[%s0 + $0x38] sm:$0xf]
  %v48 = vld [vmem:[%s0 + $0x3c] sm:$0xf]
  %v49 = vld [vmem:[%s1] sm:$0xf]
  %v50 = vld [vmem:[%s1 + $0x4] sm:$0xf]
  %v51 = vld [vmem:[%s1 + $0x8] sm:$0xf]
  %v52 = vld [vmem:[%s1 + $0xc] sm:$0xf]
  %v53 = vld [vmem:[%s1 + $0x10] sm:$0xf]
  %v54 = vld [vmem:[%s1 + $0x14] sm:$0xf]
  %v55 = vld [vmem:[%s1 + $0x18] sm:$0xf]
  %v56 = vld [vmem:[%s1 + $0x1c] sm:$0xf]
  %v57 = vld [vmem:[%s1 + $0x20] sm:$0xf]
  %v58 = vld [vmem:[%s1 + $0x24] sm:$0xf]
  %v59 = vld [vmem:[%s1 + $0x28] sm:$0xf]
  %v60 = vld [vmem:[%s1 + $0x2c] sm:$0xf]
  %v61 = vld [vmem:[%s1 + $0x30] sm:$0xf]
  %v62 = vld [vmem:[%s1 + $0x34] sm:$0xf]
  %v63 = vld [vmem:[%s1 + $0x38] sm:$0xf]
  %v64 = vld [vmem:[%s1 + $0x3c] sm:$0xf]
  %v81 = vunpack.c.l.b16 %v33
  %v82 = vunpack.c.l.b16 %v34
  %v83 = vunpack.c.l.b16 %v35
  %v84 = vunpack.c.l.b16 %v36
  %v85 = vunpack.c.l.b16 %v37
  %v86 = vunpack.c.l.b16 %v38
  %v87 = vunpack.c.l.b16 %v39
  %v88 = vunpack.c.l.b16 %v40
  %v89 = vunpack.c.l.b16 %v41
  %v90 = vunpack.c.l.b16 %v42
  %v91 = vunpack.c.l.b16 %v43
  %v92 = vunpack.c.l.b16 %v44
  %v93 = vunpack.c.l.b16 %v45
  %v94 = vunpack.c.l.b16 %v46
  %v95 = vunpack.c.l.b16 %v47
  %v96 = vunpack.c.l.b16 %v48
  %v97 = vpack.c.b16 %v82, %v81
  %v98 = vpack.c.b16 %v84, %v83
  %v99 = vpack.c.b16 %v86, %v85
  %v100 = vpack.c.b16 %v88, %v87
  %v101 = vpack.c.b16 %v90, %v89
  %v102 = vpack.c.b16 %v92, %v91
  %v103 = vpack.c.b16 %v94, %v93
  %v104 = vpack.c.b16 %v96, %v95
  %v129 = vunpack.c.l.b16 %v49
  %v130 = vunpack.c.l.b16 %v50
  %v131 = vunpack.c.l.b16 %v51
  %v132 = vunpack.c.l.b16 %v52
  %v133 = vunpack.c.l.b16 %v53
  %v134 = vunpack.c.l.b16 %v54
  %v135 = vunpack.c.l.b16 %v55
  %v136 = vunpack.c.l.b16 %v56
  %v137 = vunpack.c.l.b16 %v57
  %v138 = vunpack.c.l.b16 %v58
  %v139 = vunpack.c.l.b16 %v59
  %v140 = vunpack.c.l.b16 %v60
  %v141 = vunpack.c.l.b16 %v61
  %v142 = vunpack.c.l.b16 %v62
  %v143 = vunpack.c.l.b16 %v63
  %v144 = vunpack.c.l.b16 %v64
  %v145 = vpack.c.b16 %v130, %v129
  %v146 = vpack.c.b16 %v132, %v131
  %v147 = vpack.c.b16 %v134, %v133
  %v148 = vpack.c.b16 %v136, %v135
  %v149 = vpack.c.b16 %v138, %v137
  %v150 = vpack.c.b16 %v140, %v139
  %v151 = vpack.c.b16 %v142, %v141
  %v152 = vpack.c.b16 %v144, %v143
  %161 = vmatprep.subr.bf16.mxu0 0
  %162 = vmatpush1.bf16.msra.mxu0 %v145
  %163 = vmatprep.subr.bf16.mxu0 0
  %164 = vmatpush1.bf16.msra.mxu0 %v146
  %165 = vmatprep.subr.bf16.mxu0 0
  %166 = vmatpush1.bf16.msra.mxu0 %v147
  %167 = vmatprep.subr.bf16.mxu0 0
  %168 = vmatpush1.bf16.msra.mxu0 %v148
  %169 = vmatprep.subr.bf16.mxu0 0
  %170 = vmatpush1.bf16.msra.mxu0 %v149
  %171 = vmatprep.subr.bf16.mxu0 0
  %172 = vmatpush1.bf16.msra.mxu0 %v150
  %173 = vmatprep.subr.bf16.mxu0 0
  %174 = vmatpush1.bf16.msra.mxu0 %v151
  %175 = vmatprep.subr.bf16.mxu0 0
  %176 = vmatpush1.bf16.msra.mxu0 %v152
  %177 = vmatprep.subr.bf16.mxu0 0
  %178 = vmatpush1.bf16.msra.mxu0 0
  %179 = vmatprep.subr.bf16.mxu0 0
  %180 = vmatpush1.bf16.msra.mxu0 0
  %181 = vmatprep.subr.bf16.mxu0 0
  %182 = vmatpush1.bf16.msra.mxu0 0
  %183 = vmatprep.subr.bf16.mxu0 0
  %184 = vmatpush1.bf16.msra.mxu0 0
  %185 = vmatprep.subr.bf16.mxu0 0
  %186 = vmatpush1.bf16.msra.mxu0 0
  %187 = vmatprep.subr.bf16.mxu0 0
  %188 = vmatpush1.bf16.msra.mxu0 0
  %189 = vmatprep.subr.bf16.mxu0 0
  %190 = vmatpush1.bf16.msra.mxu0 0
  %191 = vmatprep.subr.bf16.mxu0 0
  %192 = vmatpush1.bf16.msra.mxu0 0
  %193 = vmatprep.mubr.bf16.mxu0 0
  %194 = vmatmul.mubr.bf16.gmra.mrb[0].mxu0 %v97
  %v195 = vpop.f32.mrb[0].mxu0
  %v196 = vadd.f32 0.0, %v195
  %v197 = vpop.f32.mrb[0].mxu0
  %v198 = vpop.f32.mrb[0].mxu0
  %v199 = vadd.f32 0.0, %v198
  %v200 = vpop.f32.mrb[0].mxu0
  %201 = vmatprep.mubr.bf16.mxu0 0
  %202 = vmatmul.mubr.bf16.gmra.mrb[0].mxu0 %v98
  %v203 = vpop.f32.mrb[0].mxu0
  %v204 = vadd.f32 0.0, %v203
  %v205 = vpop.f32.mrb[0].mxu0
  %v206 = vpop.f32.mrb[0].mxu0
  %v207 = vadd.f32 0.0, %v206
  %v208 = vpop.f32.mrb[0].mxu0
  %209 = vmatprep.mubr.bf16.mxu0 0
  %210 = vmatmul.mubr.bf16.gmra.mrb[0].mxu0 %v99
  %v211 = vpop.f32.mrb[0].mxu0
  %v212 = vadd.f32 0.0, %v211
  %v213 = vpop.f32.mrb[0].mxu0
  %v214 = vpop.f32.mrb[0].mxu0
  %v215 = vadd.f32 0.0, %v214
  %v216 = vpop.f32.mrb[0].mxu0
  %217 = vmatprep.mubr.bf16.mxu0 0
  %218 = vmatmul.mubr.bf16.gmra.mrb[0].mxu0 %v100
  %v219 = vpop.f32.mrb[0].mxu0
  %v220 = vadd.f32 0.0, %v219
  %v221 = vpop.f32.mrb[0].mxu0
  %v222 = vpop.f32.mrb[0].mxu0
  %v223 = vadd.f32 0.0, %v222
  %v224 = vpop.f32.mrb[0].mxu0
  %225 = vmatprep.mubr.bf16.mxu0 0
  %226 = vmatmul.mubr.bf16.gmra.mrb[0].mxu0 %v101
  %v227 = vpop.f32.mrb[0].mxu0
  %v228 = vadd.f32 0.0, %v227
  %v229 = vpop.f32.mrb[0].mxu0
  %v230 = vpop.f32.mrb[0].mxu0
  %v231 = vadd.f32 0.0, %v230
  %v232 = vpop.f32.mrb[0].mxu0
  %233 = vmatprep.mubr.bf16.mxu0 0
  %234 = vmatmul.mubr.bf16.gmra.mrb[0].mxu0 %v102
  %v235 = vpop.f32.mrb[0].mxu0
  %v236 = vadd.f32 0.0, %v235
  %v237 = vpop.f32.mrb[0].mxu0
  %v238 = vpop.f32.mrb[0].mxu0
  %v239 = vadd.f32 0.0, %v238
  %v240 = vpop.f32.mrb[0].mxu0
  %241 = vmatprep.mubr.bf16.mxu0 0
  %242 = vmatmul.mubr.bf16.gmra.mrb[0].mxu0 %v103
  %v243 = vpop.f32.mrb[0].mxu0
  %v244 = vadd.f32 0.0, %v243
  %v245 = vpop.f32.mrb[0].mxu0
  %v246 = vpop.f32.mrb[0].mxu0
  %v247 = vadd.f32 0.0, %v246
  %v248 = vpop.f32.mrb[0].mxu0
  %249 = vmatprep.mubr.bf16.mxu0 0
  %250 = vmatmul.mubr.bf16.gmra.mrb[0].mxu0 %v104
  %v251 = vpop.f32.mrb[0].mxu0
  %v252 = vadd.f32 0.0, %v251
  %v253 = vpop.f32.mrb[0].mxu0
  %v254 = vpop.f32.mrb[0].mxu0
  %v255 = vadd.f32 0.0, %v254
  %v256 = vpop.f32.mrb[0].mxu0
  %257 = vdwg.mxu0
  %v258 = vpack.c.bf16 %v199, %v196
  %v259 = vpack.c.bf16 %v207, %v204
  %v260 = vpack.c.bf16 %v215, %v212
  %v261 = vpack.c.bf16 %v223, %v220
  %v262 = vpack.c.bf16 %v231, %v228
  %v263 = vpack.c.bf16 %v239, %v236
  %v264 = vpack.c.bf16 %v247, %v244
  %v265 = vpack.c.bf16 %v255, %v252
  %v266 = vld [vmem:[%s2] sm:$0xf]
  %v267 = vld [vmem:[%s2 + $0x4] sm:$0xf]
  %v268 = vld [vmem:[%s2 + $0x8] sm:$0xf]
  %v269 = vld [vmem:[%s2 + $0xc] sm:$0xf]
  %v270 = vld [vmem:[%s2 + $0x10] sm:$0xf]
  %v271 = vld [vmem:[%s2 + $0x14] sm:$0xf]
  %v272 = vld [vmem:[%s2 + $0x18] sm:$0xf]
  %v273 = vld [vmem:[%s2 + $0x1c] sm:$0xf]
  %v274 = vld [vmem:[%s2 + $0x20] sm:$0xf]
  %v275 = vld [vmem:[%s2 + $0x24] sm:$0xf]
  %v276 = vld [vmem:[%s2 + $0x28] sm:$0xf]
  %v277 = vld [vmem:[%s2 + $0x2c] sm:$0xf]
  %v278 = vld [vmem:[%s2 + $0x30] sm:$0xf]
  %v279 = vld [vmem:[%s2 + $0x34] sm:$0xf]
  %v280 = vld [vmem:[%s2 + $0x38] sm:$0xf]
  %v281 = vld [vmem:[%s2 + $0x3c] sm:$0xf]
  %v282 = vld [vmem:[%s3] sm:$0xf]
  %v283 = vld [vmem:[%s3 + $0x4] sm:$0xf]
  %v284 = vld [vmem:[%s3 + $0x8] sm:$0xf]
  %v285 = vld [vmem:[%s3 + $0xc] sm:$0xf]
  %v286 = vld [vmem:[%s3 + $0x10] sm:$0xf]
  %v287 = vld [vmem:[%s3 + $0x14] sm:$0xf]
  %v288 = vld [vmem:[%s3 + $0x18] sm:$0xf]
  %v289 = vld [vmem:[%s3 + $0x1c] sm:$0xf]
  %v290 = vld [vmem:[%s3 + $0x20] sm:$0xf]
  %v291 = vld [vmem:[%s3 + $0x24] sm:$0xf]
  %v292 = vld [vmem:[%s3 + $0x28] sm:$0xf]
  %v293 = vld [vmem:[%s3 + $0x2c] sm:$0xf]
  %v294 = vld [vmem:[%s3 + $0x30] sm:$0xf]
  %v295 = vld [vmem:[%s3 + $0x34] sm:$0xf]
  %v296 = vld [vmem:[%s3 + $0x38] sm:$0xf]
  %v297 = vld [vmem:[%s3 + $0x3c] sm:$0xf]
  %v298 = vld [vmem:[%s4] sm:$0xf]
  %v299 = vld [vmem:[%s4 + $0x4] sm:$0xf]
  %v300 = vld [vmem:[%s4 + $0x8] sm:$0xf]
  %v301 = vld [vmem:[%s4 + $0xc] sm:$0xf]
  %v302 = vld [vmem:[%s4 + $0x10] sm:$0xf]
  %v303 = vld [vmem:[%s4 + $0x14] sm:$0xf]
  %v304 = vld [vmem:[%s4 + $0x18] sm:$0xf]
  %v305 = vld [vmem:[%s4 + $0x1c] sm:$0xf]
  %v306 = vld [vmem:[%s4 + $0x20] sm:$0xf]
  %v307 = vld [vmem:[%s4 + $0x24] sm:$0xf]
  %v308 = vld [vmem:[%s4 + $0x28] sm:$0xf]
  %v309 = vld [vmem:[%s4 + $0x2c] sm:$0xf]
  %v310 = vld [vmem:[%s4 + $0x30] sm:$0xf]
  %v311 = vld [vmem:[%s4 + $0x34] sm:$0xf]
  %v312 = vld [vmem:[%s4 + $0x38] sm:$0xf]
  %v313 = vld [vmem:[%s4 + $0x3c] sm:$0xf]
  %v330 = vunpack.c.l.b16 %v282
  %v331 = vunpack.c.l.b16 %v283
  %v332 = vunpack.c.l.b16 %v284
  %v333 = vunpack.c.l.b16 %v285
  %v334 = vunpack.c.l.b16 %v286
  %v335 = vunpack.c.l.b16 %v287
  %v336 = vunpack.c.l.b16 %v288
  %v337 = vunpack.c.l.b16 %v289
  %v338 = vunpack.c.l.b16 %v290
  %v339 = vunpack.c.l.b16 %v291
  %v340 = vunpack.c.l.b16 %v292
  %v341 = vunpack.c.l.b16 %v293
  %v342 = vunpack.c.l.b16 %v294
  %v343 = vunpack.c.l.b16 %v295
  %v344 = vunpack.c.l.b16 %v296
  %v345 = vunpack.c.l.b16 %v297
  %v346 = vpack.c.b16 %v331, %v330
  %v347 = vpack.c.b16 %v333, %v332
  %v348 = vpack.c.b16 %v335, %v334
  %v349 = vpack.c.b16 %v337, %v336
  %v350 = vpack.c.b16 %v339, %v338
  %v351 = vpack.c.b16 %v341, %v340
  %v352 = vpack.c.b16 %v343, %v342
  %v353 = vpack.c.b16 %v345, %v344
  %v378 = vunpack.c.l.b16 %v298
  %v379 = vunpack.c.l.b16 %v299
  %v380 = vunpack.c.l.b16 %v300
  %v381 = vunpack.c.l.b16 %v301
  %v382 = vunpack.c.l.b16 %v302
  %v383 = vunpack.c.l.b16 %v303
  %v384 = vunpack.c.l.b16 %v304
  %v385 = vunpack.c.l.b16 %v305
  %v386 = vunpack.c.l.b16 %v306
  %v387 = vunpack.c.l.b16 %v307
  %v388 = vunpack.c.l.b16 %v308
  %v389 = vunpack.c.l.b16 %v309
  %v390 = vunpack.c.l.b16 %v310
  %v391 = vunpack.c.l.b16 %v311
  %v392 = vunpack.c.l.b16 %v312
  %v393 = vunpack.c.l.b16 %v313
  %v394 = vpack.c.b16 %v379, %v378
  %v395 = vpack.c.b16 %v381, %v380
  %v396 = vpack.c.b16 %v383, %v382
  %v397 = vpack.c.b16 %v385, %v384
  %v398 = vpack.c.b16 %v387, %v386
  %v399 = vpack.c.b16 %v389, %v388
  %v400 = vpack.c.b16 %v391, %v390
  %v401 = vpack.c.b16 %v393, %v392
  %410 = vmatprep.subr.bf16.mxu0 0
  %411 = vmatpush1.bf16.msra.mxu0 %v394
  %412 = vmatprep.subr.bf16.mxu0 0
  %413 = vmatpush1.bf16.msra.mxu0 %v395
  %414 = vmatprep.subr.bf16.mxu0 0
  %415 = vmatpush1.bf16.msra.mxu0 %v396
  %416 = vmatprep.subr.bf16.mxu0 0
  %417 = vmatpush1.bf16.msra.mxu0 %v397
  %418 = vmatprep.subr.bf16.mxu0 0
  %419 = vmatpush1.bf16.msra.mxu0 %v398
  %420 = vmatprep.subr.bf16.mxu0 0
  %421 = vmatpush1.bf16.msra.mxu0 %v399
  %422 = vmatprep.subr.bf16.mxu0 0
  %423 = vmatpush1.bf16.msra.mxu0 %v400
  %424 = vmatprep.subr.bf16.mxu0 0
  %425 = vmatpush1.bf16.msra.mxu0 %v401
  %426 = vmatprep.subr.bf16.mxu0 0
  %427 = vmatpush1.bf16.msra.mxu0 0
  %428 = vmatprep.subr.bf16.mxu0 0
  %429 = vmatpush1.bf16.msra.mxu0 0
  %430 = vmatprep.subr.bf16.mxu0 0
  %431 = vmatpush1.bf16.msra.mxu0 0
  %432 = vmatprep.subr.bf16.mxu0 0
  %433 = vmatpush1.bf16.msra.mxu0 0
  %434 = vmatprep.subr.bf16.mxu0 0
  %435 = vmatpush1.bf16.msra.mxu0 0
  %436 = vmatprep.subr.bf16.mxu0 0
  %437 = vmatpush1.bf16.msra.mxu0 0
  %438 = vmatprep.subr.bf16.mxu0 0
  %439 = vmatpush1.bf16.msra.mxu0 0
  %440 = vmatprep.subr.bf16.mxu0 0
  %441 = vmatpush1.bf16.msra.mxu0 0
  %442 = vmatprep.mubr.bf16.mxu0 0
  %443 = vmatmul.mubr.bf16.gmra.mrb[0].mxu0 %v346
  %v444 = vpop.f32.mrb[0].mxu0
  %v445 = vadd.f32 0.0, %v444
  %v446 = vpop.f32.mrb[0].mxu0
  %v447 = vpop.f32.mrb[0].mxu0
  %v448 = vadd.f32 0.0, %v447
  %v449 = vpop.f32.mrb[0].mxu0
  %450 = vmatprep.mubr.bf16.mxu0 0
  %451 = vmatmul.mubr.bf16.gmra.mrb[0].mxu0 %v347
  %v452 = vpop.f32.mrb[0].mxu0
  %v453 = vadd.f32 0.0, %v452
  %v454 = vpop.f32.mrb[0].mxu0
  %v455 = vpop.f32.mrb[0].mxu0
  %v456 = vadd.f32 0.0, %v455
  %v457 = vpop.f32.mrb[0].mxu0
  %458 = vmatprep.mubr.bf16.mxu0 0
  %459 = vmatmul.mubr.bf16.gmra.mrb[0].mxu0 %v348
  %v460 = vpop.f32.mrb[0].mxu0
  %v461 = vadd.f32 0.0, %v460
  %v462 = vpop.f32.mrb[0].mxu0
  %v463 = vpop.f32.mrb[0].mxu0
  %v464 = vadd.f32 0.0, %v463
  %v465 = vpop.f32.mrb[0].mxu0
  %466 = vmatprep.mubr.bf16.mxu0 0
  %467 = vmatmul.mubr.bf16.gmra.mrb[0].mxu0 %v349
  %v468 = vpop.f32.mrb[0].mxu0
  %v469 = vadd.f32 0.0, %v468
  %v470 = vpop.f32.mrb[0].mxu0
  %v471 = vpop.f32.mrb[0].mxu0
  %v472 = vadd.f32 0.0, %v471
  %v473 = vpop.f32.mrb[0].mxu0
  %474 = vmatprep.mubr.bf16.mxu0 0
  %475 = vmatmul.mubr.bf16.gmra.mrb[0].mxu0 %v350
  %v476 = vpop.f32.mrb[0].mxu0
  %v477 = vadd.f32 0.0, %v476
  %v478 = vpop.f32.mrb[0].mxu0
  %v479 = vpop.f32.mrb[0].mxu0
  %v480 = vadd.f32 0.0, %v479
  %v481 = vpop.f32.mrb[0].mxu0
  %482 = vmatprep.mubr.bf16.mxu0 0
  %483 = vmatmul.mubr.bf16.gmra.mrb[0].mxu0 %v351
  %v484 = vpop.f32.mrb[0].mxu0
  %v485 = vadd.f32 0.0, %v484
  %v486 = vpop.f32.mrb[0].mxu0
  %v487 = vpop.f32.mrb[0].mxu0
  %v488 = vadd.f32 0.0, %v487
  %v489 = vpop.f32.mrb[0].mxu0
  %490 = vmatprep.mubr.bf16.mxu0 0
  %491 = vmatmul.mubr.bf16.gmra.mrb[0].mxu0 %v352
  %v492 = vpop.f32.mrb[0].mxu0
  %v493 = vadd.f32 0.0, %v492
  %v494 = vpop.f32.mrb[0].mxu0
  %v495 = vpop.f32.mrb[0].mxu0
  %v496 = vadd.f32 0.0, %v495
  %v497 = vpop.f32.mrb[0].mxu0
  %498 = vmatprep.mubr.bf16.mxu0 0
  %499 = vmatmul.mubr.bf16.gmra.mrb[0].mxu0 %v353
  %v500 = vpop.f32.mrb[0].mxu0
  %v501 = vadd.f32 0.0, %v500
  %v502 = vpop.f32.mrb[0].mxu0
  %v503 = vpop.f32.mrb[0].mxu0
  %v504 = vadd.f32 0.0, %v503
  %v505 = vpop.f32.mrb[0].mxu0
  %506 = vdwg.mxu0
  %v507 = vpack.c.bf16 %v448, %v445
  %v508 = vpack.c.bf16 %v456, %v453
  %v509 = vpack.c.bf16 %v464, %v461
  %v510 = vpack.c.bf16 %v472, %v469
  %v511 = vpack.c.bf16 %v480, %v477
  %v512 = vpack.c.bf16 %v488, %v485
  %v513 = vpack.c.bf16 %v496, %v493
  %v514 = vpack.c.bf16 %v504, %v501
  %v515 = vld [vmem:[%s5] sm:$0xf]
  %v516 = vld [vmem:[%s5 + $0x4] sm:$0xf]
  %v517 = vld [vmem:[%s5 + $0x8] sm:$0xf]
  %v518 = vld [vmem:[%s5 + $0xc] sm:$0xf]
  %v519 = vld [vmem:[%s5 + $0x10] sm:$0xf]
  %v520 = vld [vmem:[%s5 + $0x14] sm:$0xf]
  %v521 = vld [vmem:[%s5 + $0x18] sm:$0xf]
  %v522 = vld [vmem:[%s5 + $0x1c] sm:$0xf]
  %v523 = vld [vmem:[%s5 + $0x20] sm:$0xf]
  %v524 = vld [vmem:[%s5 + $0x24] sm:$0xf]
  %v525 = vld [vmem:[%s5 + $0x28] sm:$0xf]
  %v526 = vld [vmem:[%s5 + $0x2c] sm:$0xf]
  %v527 = vld [vmem:[%s5 + $0x30] sm:$0xf]
  %v528 = vld [vmem:[%s5 + $0x34] sm:$0xf]
  %v529 = vld [vmem:[%s5 + $0x38] sm:$0xf]
  %v530 = vld [vmem:[%s5 + $0x3c] sm:$0xf]
  %v547 = vunpack.c.l.b16 %v515
  %v548 = vunpack.c.l.b16 %v516
  %v549 = vunpack.c.l.b16 %v517
  %v550 = vunpack.c.l.b16 %v518
  %v551 = vunpack.c.l.b16 %v519
  %v552 = vunpack.c.l.b16 %v520
  %v553 = vunpack.c.l.b16 %v521
  %v554 = vunpack.c.l.b16 %v522
  %v555 = vunpack.c.l.b16 %v523
  %v556 = vunpack.c.l.b16 %v524
  %v557 = vunpack.c.l.b16 %v525
  %v558 = vunpack.c.l.b16 %v526
  %v559 = vunpack.c.l.b16 %v527
  %v560 = vunpack.c.l.b16 %v528
  %v561 = vunpack.c.l.b16 %v529
  %v562 = vunpack.c.l.b16 %v530
  %v563 = vpack.c.b16 %v548, %v547
  %v564 = vpack.c.b16 %v550, %v549
  %v565 = vpack.c.b16 %v552, %v551
  %v566 = vpack.c.b16 %v554, %v553
  %v567 = vpack.c.b16 %v556, %v555
  %v568 = vpack.c.b16 %v558, %v557
  %v569 = vpack.c.b16 %v560, %v559
  %v570 = vpack.c.b16 %v562, %v561
  %579 = vmatprep.subr.bf16.mxu0 0
  %580 = vmatpush1.bf16.msra.mxu0 %v563
  %581 = vmatprep.subr.bf16.mxu0 0
  %582 = vmatpush1.bf16.msra.mxu0 %v564
  %583 = vmatprep.subr.bf16.mxu0 0
  %584 = vmatpush1.bf16.msra.mxu0 %v565
  %585 = vmatprep.subr.bf16.mxu0 0
  %586 = vmatpush1.bf16.msra.mxu0 %v566
  %587 = vmatprep.subr.bf16.mxu0 0
  %588 = vmatpush1.bf16.msra.mxu0 %v567
  %589 = vmatprep.subr.bf16.mxu0 0
  %590 = vmatpush1.bf16.msra.mxu0 %v568
  %591 = vmatprep.subr.bf16.mxu0 0
  %592 = vmatpush1.bf16.msra.mxu0 %v569
  %593 = vmatprep.subr.bf16.mxu0 0
  %594 = vmatpush1.bf16.msra.mxu0 %v570
  %595 = vmatprep.subr.bf16.mxu0 0
  %596 = vmatpush1.bf16.msra.mxu0 0
  %597 = vmatprep.subr.bf16.mxu0 0
  %598 = vmatpush1.bf16.msra.mxu0 0
  %599 = vmatprep.subr.bf16.mxu0 0
  %600 = vmatpush1.bf16.msra.mxu0 0
  %601 = vmatprep.subr.bf16.mxu0 0
  %602 = vmatpush1.bf16.msra.mxu0 0
  %603 = vmatprep.subr.bf16.mxu0 0
  %604 = vmatpush1.bf16.msra.mxu0 0
  %605 = vmatprep.subr.bf16.mxu0 0
  %606 = vmatpush1.bf16.msra.mxu0 0
  %607 = vmatprep.subr.bf16.mxu0 0
  %608 = vmatpush1.bf16.msra.mxu0 0
  %609 = vmatprep.subr.bf16.mxu0 0
  %610 = vmatpush1.bf16.msra.mxu0 0
  %611 = vmatprep.mubr.bf16.mxu0 0
  %612 = vmatmul.mubr.bf16.gmra.mrb[0].mxu0 %v507
  %v613 = vpop.f32.mrb[0].mxu0
  %v614 = vadd.f32 0.0, %v613
  %v615 = vpop.f32.mrb[0].mxu0
  %v616 = vpop.f32.mrb[0].mxu0
  %v617 = vadd.f32 0.0, %v616
  %v618 = vpop.f32.mrb[0].mxu0
  %619 = vmatprep.mubr.bf16.mxu0 0
  %620 = vmatmul.mubr.bf16.gmra.mrb[0].mxu0 %v508
  %v621 = vpop.f32.mrb[0].mxu0
  %v622 = vadd.f32 0.0, %v621
  %v623 = vpop.f32.mrb[0].mxu0
  %v624 = vpop.f32.mrb[0].mxu0
  %v625 = vadd.f32 0.0, %v624
  %v626 = vpop.f32.mrb[0].mxu0
  %627 = vmatprep.mubr.bf16.mxu0 0
  %628 = vmatmul.mubr.bf16.gmra.mrb[0].mxu0 %v509
  %v629 = vpop.f32.mrb[0].mxu0
  %v630 = vadd.f32 0.0, %v629
  %v631 = vpop.f32.mrb[0].mxu0
  %v632 = vpop.f32.mrb[0].mxu0
  %v633 = vadd.f32 0.0, %v632
  %v634 = vpop.f32.mrb[0].mxu0
  %635 = vmatprep.mubr.bf16.mxu0 0
  %636 = vmatmul.mubr.bf16.gmra.mrb[0].mxu0 %v510
  %v637 = vpop.f32.mrb[0].mxu0
  %v638 = vadd.f32 0.0, %v637
  %v639 = vpop.f32.mrb[0].mxu0
  %v640 = vpop.f32.mrb[0].mxu0
  %v641 = vadd.f32 0.0, %v640
  %v642 = vpop.f32.mrb[0].mxu0
  %643 = vmatprep.mubr.bf16.mxu0 0
  %644 = vmatmul.mubr.bf16.gmra.mrb[0].mxu0 %v511
  %v645 = vpop.f32.mrb[0].mxu0
  %v646 = vadd.f32 0.0, %v645
  %v647 = vpop.f32.mrb[0].mxu0
  %v648 = vpop.f32.mrb[0].mxu0
  %v649 = vadd.f32 0.0, %v648
  %v650 = vpop.f32.mrb[0].mxu0
  %651 = vmatprep.mubr.bf16.mxu0 0
  %652 = vmatmul.mubr.bf16.gmra.mrb[0].mxu0 %v512
  %v653 = vpop.f32.mrb[0].mxu0
  %v654 = vadd.f32 0.0, %v653
  %v655 = vpop.f32.mrb[0].mxu0
  %v656 = vpop.f32.mrb[0].mxu0
  %v657 = vadd.f32 0.0, %v656
  %v658 = vpop.f32.mrb[0].mxu0
  %659 = vmatprep.mubr.bf16.mxu0 0
  %660 = vmatmul.mubr.bf16.gmra.mrb[0].mxu0 %v513
  %v661 = vpop.f32.mrb[0].mxu0
  %v662 = vadd.f32 0.0, %v661
  %v663 = vpop.f32.mrb[0].mxu0
  %v664 = vpop.f32.mrb[0].mxu0
  %v665 = vadd.f32 0.0, %v664
  %v666 = vpop.f32.mrb[0].mxu0
  %667 = vmatprep.mubr.bf16.mxu0 0
  %668 = vmatmul.mubr.bf16.gmra.mrb[0].mxu0 %v514
  %v669 = vpop.f32.mrb[0].mxu0
  %v670 = vadd.f32 0.0, %v669
  %v671 = vpop.f32.mrb[0].mxu0
  %v672 = vpop.f32.mrb[0].mxu0
  %v673 = vadd.f32 0.0, %v672
  %v674 = vpop.f32.mrb[0].mxu0
  %675 = vdwg.mxu0
  %v692 = vunpack.c.l.b16 %v266
  %v693 = vunpack.c.l.b16 %v267
  %v694 = vunpack.c.l.b16 %v268
  %v695 = vunpack.c.l.b16 %v269
  %v696 = vunpack.c.l.b16 %v270
  %v697 = vunpack.c.l.b16 %v271
  %v698 = vunpack.c.l.b16 %v272
  %v699 = vunpack.c.l.b16 %v273
  %v700 = vunpack.c.l.b16 %v274
  %v701 = vunpack.c.l.b16 %v275
  %v702 = vunpack.c.l.b16 %v276
  %v703 = vunpack.c.l.b16 %v277
  %v704 = vunpack.c.l.b16 %v278
  %v705 = vunpack.c.l.b16 %v279
  %v706 = vunpack.c.l.b16 %v280
  %v707 = vunpack.c.l.b16 %v281
  %v708 = vpack.c.b16 %v693, %v692
  %v709 = vpack.c.b16 %v695, %v694
  %v710 = vpack.c.b16 %v697, %v696
  %v711 = vpack.c.b16 %v699, %v698
  %v712 = vpack.c.b16 %v701, %v700
  %v713 = vpack.c.b16 %v703, %v702
  %v714 = vpack.c.b16 %v705, %v704
  %v715 = vpack.c.b16 %v707, %v706
  %724 = vmatprep.subr.bf16.mxu0 0
  %725 = vmatpush1.bf16.msra.mxu0 %v708
  %726 = vmatprep.subr.bf16.mxu0 0
  %727 = vmatpush1.bf16.msra.mxu0 %v709
  %728 = vmatprep.subr.bf16.mxu0 0
  %729 = vmatpush1.bf16.msra.mxu0 %v710
  %730 = vmatprep.subr.bf16.mxu0 0
  %731 = vmatpush1.bf16.msra.mxu0 %v711
  %732 = vmatprep.subr.bf16.mxu0 0
  %733 = vmatpush1.bf16.msra.mxu0 %v712
  %734 = vmatprep.subr.bf16.mxu0 0
  %735 = vmatpush1.bf16.msra.mxu0 %v713
  %736 = vmatprep.subr.bf16.mxu0 0
  %737 = vmatpush1.bf16.msra.mxu0 %v714
  %738 = vmatprep.subr.bf16.mxu0 0
  %739 = vmatpush1.bf16.msra.mxu0 %v715
  %740 = vmatprep.subr.bf16.mxu0 0
  %741 = vmatpush1.bf16.msra.mxu0 0
  %742 = vmatprep.subr.bf16.mxu0 0
  %743 = vmatpush1.bf16.msra.mxu0 0
  %744 = vmatprep.subr.bf16.mxu0 0
  %745 = vmatpush1.bf16.msra.mxu0 0
  %746 = vmatprep.subr.bf16.mxu0 0
  %747 = vmatpush1.bf16.msra.mxu0 0
  %748 = vmatprep.subr.bf16.mxu0 0
  %749 = vmatpush1.bf16.msra.mxu0 0
  %750 = vmatprep.subr.bf16.mxu0 0
  %751 = vmatpush1.bf16.msra.mxu0 0
  %752 = vmatprep.subr.bf16.mxu0 0
  %753 = vmatpush1.bf16.msra.mxu0 0
  %754 = vmatprep.subr.bf16.mxu0 0
  %755 = vmatpush1.bf16.msra.mxu0 0
  %756 = vmatprep.mubr.bf16.mxu0 0
  %757 = vmatmul.mubr.bf16.gmra.mrb[0].mxu0 %v258
  %v758 = vpop.f32.mrb[0].mxu0
  %v759 = vadd.f32 %v614, %v758
  %v760 = vpop.f32.mrb[0].mxu0
  %v761 = vpop.f32.mrb[0].mxu0
  %v762 = vadd.f32 %v617, %v761
  %v763 = vpop.f32.mrb[0].mxu0
  %764 = vmatprep.mubr.bf16.mxu0 0
  %765 = vmatmul.mubr.bf16.gmra.mrb[0].mxu0 %v259
  %v766 = vpop.f32.mrb[0].mxu0
  %v767 = vadd.f32 %v622, %v766
  %v768 = vpop.f32.mrb[0].mxu0
  %v769 = vpop.f32.mrb[0].mxu0
  %v770 = vadd.f32 %v625, %v769
  %v771 = vpop.f32.mrb[0].mxu0
  %772 = vmatprep.mubr.bf16.mxu0 0
  %773 = vmatmul.mubr.bf16.gmra.mrb[0].mxu0 %v260
  %v774 = vpop.f32.mrb[0].mxu0
  %v775 = vadd.f32 %v630, %v774
  %v776 = vpop.f32.mrb[0].mxu0
  %v777 = vpop.f32.mrb[0].mxu0
  %v778 = vadd.f32 %v633, %v777
  %v779 = vpop.f32.mrb[0].mxu0
  %780 = vmatprep.mubr.bf16.mxu0 0
  %781 = vmatmul.mubr.bf16.gmra.mrb[0].mxu0 %v261
  %v782 = vpop.f32.mrb[0].mxu0
  %v783 = vadd.f32 %v638, %v782
  %v784 = vpop.f32.mrb[0].mxu0
  %v785 = vpop.f32.mrb[0].mxu0
  %v786 = vadd.f32 %v641, %v785
  %v787 = vpop.f32.mrb[0].mxu0
  %788 = vmatprep.mubr.bf16.mxu0 0
  %789 = vmatmul.mubr.bf16.gmra.mrb[0].mxu0 %v262
  %v790 = vpop.f32.mrb[0].mxu0
  %v791 = vadd.f32 %v646, %v790
  %v792 = vpop.f32.mrb[0].mxu0
  %v793 = vpop.f32.mrb[0].mxu0
  %v794 = vadd.f32 %v649, %v793
  %v795 = vpop.f32.mrb[0].mxu0
  %796 = vmatprep.mubr.bf16.mxu0 0
  %797 = vmatmul.mubr.bf16.gmra.mrb[0].mxu0 %v263
  %v798 = vpop.f32.mrb[0].mxu0
  %v799 = vadd.f32 %v654, %v798
  %v800 = vpop.f32.mrb[0].mxu0
  %v801 = vpop.f32.mrb[0].mxu0
  %v802 = vadd.f32 %v657, %v801
  %v803 = vpop.f32.mrb[0].mxu0
  %804 = vmatprep.mubr.bf16.mxu0 0
  %805 = vmatmul.mubr.bf16.gmra.mrb[0].mxu0 %v264
  %v806 = vpop.f32.mrb[0].mxu0
  %v807 = vadd.f32 %v662, %v806
  %v808 = vpop.f32.mrb[0].mxu0
  %v809 = vpop.f32.mrb[0].mxu0
  %v810 = vadd.f32 %v665, %v809
  %v811 = vpop.f32.mrb[0].mxu0
  %812 = vmatprep.mubr.bf16.mxu0 0
  %813 = vmatmul.mubr.bf16.gmra.mrb[0].mxu0 %v265
  %v814 = vpop.f32.mrb[0].mxu0
  %v815 = vadd.f32 %v670, %v814
  %v816 = vpop.f32.mrb[0].mxu0
  %v817 = vpop.f32.mrb[0].mxu0
  %v818 = vadd.f32 %v673, %v817
  %v819 = vpop.f32.mrb[0].mxu0
  %820 = vdwg.mxu0
  %v821 = vld [vmem:[%s6] sm:$0xf]
  %v822 = vld [vmem:[%s6 + $0x4] sm:$0xf]
  %v823 = vld [vmem:[%s6 + $0x8] sm:$0xf]
  %v824 = vld [vmem:[%s6 + $0xc] sm:$0xf]
  %v825 = vld [vmem:[%s6 + $0x10] sm:$0xf]
  %v826 = vld [vmem:[%s6 + $0x14] sm:$0xf]
  %v827 = vld [vmem:[%s6 + $0x18] sm:$0xf]
  %v828 = vld [vmem:[%s6 + $0x1c] sm:$0xf]
  %v829 = vld [vmem:[%s6 + $0x20] sm:$0xf]
  %v830 = vld [vmem:[%s6 + $0x24] sm:$0xf]
  %v831 = vld [vmem:[%s6 + $0x28] sm:$0xf]
  %v832 = vld [vmem:[%s6 + $0x2c] sm:$0xf]
  %v833 = vld [vmem:[%s6 + $0x30] sm:$0xf]
  %v834 = vld [vmem:[%s6 + $0x34] sm:$0xf]
  %v835 = vld [vmem:[%s6 + $0x38] sm:$0xf]
  %v836 = vld [vmem:[%s6 + $0x3c] sm:$0xf]
  %v837 = vld [vmem:[%s7] sm:$0xf]
  %v838 = vld [vmem:[%s7 + $0x4] sm:$0xf]
  %v839 = vld [vmem:[%s7 + $0x8] sm:$0xf]
  %v840 = vld [vmem:[%s7 + $0xc] sm:$0xf]
  %v841 = vld [vmem:[%s7 + $0x10] sm:$0xf]
  %v842 = vld [vmem:[%s7 + $0x14] sm:$0xf]
  %v843 = vld [vmem:[%s7 + $0x18] sm:$0xf]
  %v844 = vld [vmem:[%s7 + $0x1c] sm:$0xf]
  %v845 = vld [vmem:[%s7 + $0x20] sm:$0xf]
  %v846 = vld [vmem:[%s7 + $0x24] sm:$0xf]
  %v847 = vld [vmem:[%s7 + $0x28] sm:$0xf]
  %v848 = vld [vmem:[%s7 + $0x2c] sm:$0xf]
  %v849 = vld [vmem:[%s7 + $0x30] sm:$0xf]
  %v850 = vld [vmem:[%s7 + $0x34] sm:$0xf]
  %v851 = vld [vmem:[%s7 + $0x38] sm:$0xf]
  %v852 = vld [vmem:[%s7 + $0x3c] sm:$0xf]
  %v869 = vunpack.c.l.b16 %v821
  %v870 = vunpack.c.l.b16 %v822
  %v871 = vunpack.c.l.b16 %v823
  %v872 = vunpack.c.l.b16 %v824
  %v873 = vunpack.c.l.b16 %v825
  %v874 = vunpack.c.l.b16 %v826
  %v875 = vunpack.c.l.b16 %v827
  %v876 = vunpack.c.l.b16 %v828
  %v877 = vunpack.c.l.b16 %v829
  %v878 = vunpack.c.l.b16 %v830
  %v879 = vunpack.c.l.b16 %v831
  %v880 = vunpack.c.l.b16 %v832
  %v881 = vunpack.c.l.b16 %v833
  %v882 = vunpack.c.l.b16 %v834
  %v883 = vunpack.c.l.b16 %v835
  %v884 = vunpack.c.l.b16 %v836
  %v885 = vpack.c.b16 %v870, %v869
  %v886 = vpack.c.b16 %v872, %v871
  %v887 = vpack.c.b16 %v874, %v873
  %v888 = vpack.c.b16 %v876, %v875
  %v889 = vpack.c.b16 %v878, %v877
  %v890 = vpack.c.b16 %v880, %v879
  %v891 = vpack.c.b16 %v882, %v881
  %v892 = vpack.c.b16 %v884, %v883
  %v917 = vunpack.c.l.b16 %v837
  %v918 = vunpack.c.l.b16 %v838
  %v919 = vunpack.c.l.b16 %v839
  %v920 = vunpack.c.l.b16 %v840
  %v921 = vunpack.c.l.b16 %v841
  %v922 = vunpack.c.l.b16 %v842
  %v923 = vunpack.c.l.b16 %v843
  %v924 = vunpack.c.l.b16 %v844
  %v925 = vunpack.c.l.b16 %v845
  %v926 = vunpack.c.l.b16 %v846
  %v927 = vunpack.c.l.b16 %v847
  %v928 = vunpack.c.l.b16 %v848
  %v929 = vunpack.c.l.b16 %v849
  %v930 = vunpack.c.l.b16 %v850
  %v931 = vunpack.c.l.b16 %v851
  %v932 = vunpack.c.l.b16 %v852
  %v933 = vpack.c.b16 %v918, %v917
  %v934 = vpack.c.b16 %v920, %v919
  %v935 = vpack.c.b16 %v922, %v921
  %v936 = vpack.c.b16 %v924, %v923
  %v937 = vpack.c.b16 %v926, %v925
  %v938 = vpack.c.b16 %v928, %v927
  %v939 = vpack.c.b16 %v930, %v929
  %v940 = vpack.c.b16 %v932, %v931
  %949 = vmatprep.subr.bf16.mxu0 0
  %950 = vmatpush1.bf16.msra.mxu0 %v933
  %951 = vmatprep.subr.bf16.mxu0 0
  %952 = vmatpush1.bf16.msra.mxu0 %v934
  %953 = vmatprep.subr.bf16.mxu0 0
  %954 = vmatpush1.bf16.msra.mxu0 %v935
  %955 = vmatprep.subr.bf16.mxu0 0
  %956 = vmatpush1.bf16.msra.mxu0 %v936
  %957 = vmatprep.subr.bf16.mxu0 0
  %958 = vmatpush1.bf16.msra.mxu0 %v937
  %959 = vmatprep.subr.bf16.mxu0 0
  %960 = vmatpush1.bf16.msra.mxu0 %v938
  %961 = vmatprep.subr.bf16.mxu0 0
  %962 = vmatpush1.bf16.msra.mxu0 %v939
  %963 = vmatprep.subr.bf16.mxu0 0
  %964 = vmatpush1.bf16.msra.mxu0 %v940
  %965 = vmatprep.subr.bf16.mxu0 0
  %966 = vmatpush1.bf16.msra.mxu0 0
  %967 = vmatprep.subr.bf16.mxu0 0
  %968 = vmatpush1.bf16.msra.mxu0 0
  %969 = vmatprep.subr.bf16.mxu0 0
  %970 = vmatpush1.bf16.msra.mxu0 0
  %971 = vmatprep.subr.bf16.mxu0 0
  %972 = vmatpush1.bf16.msra.mxu0 0
  %973 = vmatprep.subr.bf16.mxu0 0
  %974 = vmatpush1.bf16.msra.mxu0 0
  %975 = vmatprep.subr.bf16.mxu0 0
  %976 = vmatpush1.bf16.msra.mxu0 0
  %977 = vmatprep.subr.bf16.mxu0 0
  %978 = vmatpush1.bf16.msra.mxu0 0
  %979 = vmatprep.subr.bf16.mxu0 0
  %980 = vmatpush1.bf16.msra.mxu0 0
  %981 = vmatprep.mubr.bf16.mxu0 0
  %982 = vmatmul.mubr.bf16.gmra.mrb[0].mxu0 %v885
  %v983 = vpop.f32.mrb[0].mxu0
  %v984 = vadd.f32 0.0, %v983
  %v985 = vpop.f32.mrb[0].mxu0
  %v986 = vpop.f32.mrb[0].mxu0
  %v987 = vadd.f32 0.0, %v986
  %v988 = vpop.f32.mrb[0].mxu0
  %989 = vmatprep.mubr.bf16.mxu0 0
  %990 = vmatmul.mubr.bf16.gmra.mrb[0].mxu0 %v886
  %v991 = vpop.f32.mrb[0].mxu0
  %v992 = vadd.f32 0.0, %v991
  %v993 = vpop.f32.mrb[0].mxu0
  %v994 = vpop.f32.mrb[0].mxu0
  %v995 = vadd.f32 0.0, %v994
  %v996 = vpop.f32.mrb[0].mxu0
  %997 = vmatprep.mubr.bf16.mxu0 0
  %998 = vmatmul.mubr.bf16.gmra.mrb[0].mxu0 %v887
  %v999 = vpop.f32.mrb[0].mxu0
  %v1000 = vadd.f32 0.0, %v999
  %v1001 = vpop.f32.mrb[0].mxu0
  %v1002 = vpop.f32.mrb[0].mxu0
  %v1003 = vadd.f32 0.0, %v1002
  %v1004 = vpop.f32.mrb[0].mxu0
  %1005 = vmatprep.mubr.bf16.mxu0 0
  %1006 = vmatmul.mubr.bf16.gmra.mrb[0].mxu0 %v888
  %v1007 = vpop.f32.mrb[0].mxu0
  %v1008 = vadd.f32 0.0, %v1007
  %v1009 = vpop.f32.mrb[0].mxu0
  %v1010 = vpop.f32.mrb[0].mxu0
  %v1011 = vadd.f32 0.0, %v1010
  %v1012 = vpop.f32.mrb[0].mxu0
  %1013 = vmatprep.mubr.bf16.mxu0 0
  %1014 = vmatmul.mubr.bf16.gmra.mrb[0].mxu0 %v889
  %v1015 = vpop.f32.mrb[0].mxu0
  %v1016 = vadd.f32 0.0, %v1015
  %v1017 = vpop.f32.mrb[0].mxu0
  %v1018 = vpop.f32.mrb[0].mxu0
  %v1019 = vadd.f32 0.0, %v1018
  %v1020 = vpop.f32.mrb[0].mxu0
  %1021 = vmatprep.mubr.bf16.mxu0 0
  %1022 = vmatmul.mubr.bf16.gmra.mrb[0].mxu0 %v890
  %v1023 = vpop.f32.mrb[0].mxu0
  %v1024 = vadd.f32 0.0, %v1023
  %v1025 = vpop.f32.mrb[0].mxu0
  %v1026 = vpop.f32.mrb[0].mxu0
  %v1027 = vadd.f32 0.0, %v1026
  %v1028 = vpop.f32.mrb[0].mxu0
  %1029 = vmatprep.mubr.bf16.mxu0 0
  %1030 = vmatmul.mubr.bf16.gmra.mrb[0].mxu0 %v891
  %v1031 = vpop.f32.mrb[0].mxu0
  %v1032 = vadd.f32 0.0, %v1031
  %v1033 = vpop.f32.mrb[0].mxu0
  %v1034 = vpop.f32.mrb[0].mxu0
  %v1035 = vadd.f32 0.0, %v1034
  %v1036 = vpop.f32.mrb[0].mxu0
  %1037 = vmatprep.mubr.bf16.mxu0 0
  %1038 = vmatmul.mubr.bf16.gmra.mrb[0].mxu0 %v892
  %v1039 = vpop.f32.mrb[0].mxu0
  %v1040 = vadd.f32 0.0, %v1039
  %v1041 = vpop.f32.mrb[0].mxu0
  %v1042 = vpop.f32.mrb[0].mxu0
  %v1043 = vadd.f32 0.0, %v1042
  %v1044 = vpop.f32.mrb[0].mxu0
  %1045 = vdwg.mxu0
  %v1046 = vadd.f32 %v759, %v984
  %v1047 = vadd.f32 %v762, %v987
  %v1048 = vadd.f32 %v767, %v992
  %v1049 = vadd.f32 %v770, %v995
  %v1050 = vadd.f32 %v775, %v1000
  %v1051 = vadd.f32 %v778, %v1003
  %v1052 = vadd.f32 %v783, %v1008
  %v1053 = vadd.f32 %v786, %v1011
  %v1054 = vadd.f32 %v791, %v1016
  %v1055 = vadd.f32 %v794, %v1019
  %v1056 = vadd.f32 %v799, %v1024
  %v1057 = vadd.f32 %v802, %v1027
  %v1058 = vadd.f32 %v807, %v1032
  %v1059 = vadd.f32 %v810, %v1035
  %v1060 = vadd.f32 %v815, %v1040
  %v1061 = vadd.f32 %v818, %v1043
  %v1062 = vld [vmem:[%s8] sm:$0x1]
  %v1064 = vlaneseq
  %v1065 = vshrl.u32 %v1064, 7
  %v1066 = vsub.s32 0, %v1065
  %v1067 = vrot.slane %v1062, %v1066
  %v1069 = vadd.f32 %v1046, %v1067
  %v1070 = vadd.f32 %v1047, %v1067
  %v1071 = vadd.f32 %v1048, %v1067
  %v1072 = vadd.f32 %v1049, %v1067
  %v1073 = vadd.f32 %v1050, %v1067
  %v1074 = vadd.f32 %v1051, %v1067
  %v1075 = vadd.f32 %v1052, %v1067
  %v1076 = vadd.f32 %v1053, %v1067
  %v1077 = vadd.f32 %v1054, %v1067
  %v1078 = vadd.f32 %v1055, %v1067
  %v1079 = vadd.f32 %v1056, %v1067
  %v1080 = vadd.f32 %v1057, %v1067
  %v1081 = vadd.f32 %v1058, %v1067
  %v1082 = vadd.f32 %v1059, %v1067
  %v1083 = vadd.f32 %v1060, %v1067
  %v1084 = vadd.f32 %v1061, %v1067
  %vm1085 = vcmp.ge.f32.partialorder %v1069, 0.0
  %vm1086 = vcmp.ge.f32.partialorder %v1070, 0.0
  %vm1087 = vcmp.ge.f32.partialorder %v1071, 0.0
  %vm1088 = vcmp.ge.f32.partialorder %v1072, 0.0
  %vm1089 = vcmp.ge.f32.partialorder %v1073, 0.0
  %vm1090 = vcmp.ge.f32.partialorder %v1074, 0.0
  %vm1091 = vcmp.ge.f32.partialorder %v1075, 0.0
  %vm1092 = vcmp.ge.f32.partialorder %v1076, 0.0
  %vm1093 = vcmp.ge.f32.partialorder %v1077, 0.0
  %vm1094 = vcmp.ge.f32.partialorder %v1078, 0.0
  %vm1095 = vcmp.ge.f32.partialorder %v1079, 0.0
  %vm1096 = vcmp.ge.f32.partialorder %v1080, 0.0
  %vm1097 = vcmp.ge.f32.partialorder %v1081, 0.0
  %vm1098 = vcmp.ge.f32.partialorder %v1082, 0.0
  %vm1099 = vcmp.ge.f32.partialorder %v1083, 0.0
  %vm1100 = vcmp.ge.f32.partialorder %v1084, 0.0
  %v1101 = vmul.f32 %v1069, 0.01
  %v1102 = vmul.f32 %v1070, 0.01
  %v1103 = vmul.f32 %v1071, 0.01
  %v1104 = vmul.f32 %v1072, 0.01
  %v1105 = vmul.f32 %v1073, 0.01
  %v1106 = vmul.f32 %v1074, 0.01
  %v1107 = vmul.f32 %v1075, 0.01
  %v1108 = vmul.f32 %v1076, 0.01
  %v1109 = vmul.f32 %v1077, 0.01
  %v1110 = vmul.f32 %v1078, 0.01
  %v1111 = vmul.f32 %v1079, 0.01
  %v1112 = vmul.f32 %v1080, 0.01
  %v1113 = vmul.f32 %v1081, 0.01
  %v1114 = vmul.f32 %v1082, 0.01
  %v1115 = vmul.f32 %v1083, 0.01
  %v1116 = vmul.f32 %v1084, 0.01
  %v1117 = vsel %vm1085, %v1069, %v1101
  %v1118 = vsel %vm1086, %v1070, %v1102
  %v1119 = vsel %vm1087, %v1071, %v1103
  %v1120 = vsel %vm1088, %v1072, %v1104
  %v1121 = vsel %vm1089, %v1073, %v1105
  %v1122 = vsel %vm1090, %v1074, %v1106
  %v1123 = vsel %vm1091, %v1075, %v1107
  %v1124 = vsel %vm1092, %v1076, %v1108
  %v1125 = vsel %vm1093, %v1077, %v1109
  %v1126 = vsel %vm1094, %v1078, %v1110
  %v1127 = vsel %vm1095, %v1079, %v1111
  %v1128 = vsel %vm1096, %v1080, %v1112
  %v1129 = vsel %vm1097, %v1081, %v1113
  %v1130 = vsel %vm1098, %v1082, %v1114
  %v1131 = vsel %vm1099, %v1083, %v1115
  %v1132 = vsel %vm1100, %v1084, %v1116
  %v1133 = vpack.c.bf16 %v1118, %v1117
  %v1134 = vpack.c.bf16 %v1120, %v1119
  %v1135 = vpack.c.bf16 %v1122, %v1121
  %v1136 = vpack.c.bf16 %v1124, %v1123
  %v1137 = vpack.c.bf16 %v1126, %v1125
  %v1138 = vpack.c.bf16 %v1128, %v1127
  %v1139 = vpack.c.bf16 %v1130, %v1129
  %v1140 = vpack.c.bf16 %v1132, %v1131
  %v1149 = vunpack.c.l.b16 %v1133
  %v1150 = vunpack.c.h.b16 %v1133
  %v1151 = vunpack.c.l.b16 %v1134
  %v1152 = vunpack.c.h.b16 %v1134
  %v1153 = vunpack.c.l.b16 %v1135
  %v1154 = vunpack.c.h.b16 %v1135
  %v1155 = vunpack.c.l.b16 %v1136
  %v1156 = vunpack.c.h.b16 %v1136
  %v1157 = vunpack.c.l.b16 %v1137
  %v1158 = vunpack.c.h.b16 %v1137
  %v1159 = vunpack.c.l.b16 %v1138
  %v1160 = vunpack.c.h.b16 %v1138
  %v1161 = vunpack.c.l.b16 %v1139
  %v1162 = vunpack.c.h.b16 %v1139
  %v1163 = vunpack.c.l.b16 %v1140
  %v1164 = vunpack.c.h.b16 %v1140
  %v1165 = vpack.c.b16 %v1149, %v1149
  %v1166 = vpack.c.b16 %v1150, %v1150
  %v1167 = vpack.c.b16 %v1151, %v1151
  %v1168 = vpack.c.b16 %v1152, %v1152
  %v1169 = vpack.c.b16 %v1153, %v1153
  %v1170 = vpack.c.b16 %v1154, %v1154
  %v1171 = vpack.c.b16 %v1155, %v1155
  %v1172 = vpack.c.b16 %v1156, %v1156
  %v1173 = vpack.c.b16 %v1157, %v1157
  %v1174 = vpack.c.b16 %v1158, %v1158
  %v1175 = vpack.c.b16 %v1159, %v1159
  %v1176 = vpack.c.b16 %v1160, %v1160
  %v1177 = vpack.c.b16 %v1161, %v1161
  %v1178 = vpack.c.b16 %v1162, %v1162
  %v1179 = vpack.c.b16 %v1163, %v1163
  %v1180 = vpack.c.b16 %v1164, %v1164
  %1197 = vst [vmem:[%s9] sm:$0xf] %v1165
  %1198 = vst [vmem:[%s9 + $0x4] sm:$0xf] %v1166
  %1199 = vst [vmem:[%s9 + $0x8] sm:$0xf] %v1167
  %1200 = vst [vmem:[%s9 + $0xc] sm:$0xf] %v1168
  %1201 = vst [vmem:[%s9 + $0x10] sm:$0xf] %v1169
  %1202 = vst [vmem:[%s9 + $0x14] sm:$0xf] %v1170
  %1203 = vst [vmem:[%s9 + $0x18] sm:$0xf] %v1171
  %1204 = vst [vmem:[%s9 + $0x1c] sm:$0xf] %v1172
  %1205 = vst [vmem:[%s9 + $0x20] sm:$0xf] %v1173
  %1206 = vst [vmem:[%s9 + $0x24] sm:$0xf] %v1174
  %1207 = vst [vmem:[%s9 + $0x28] sm:$0xf] %v1175
  %1208 = vst [vmem:[%s9 + $0x2c] sm:$0xf] %v1176
  %1209 = vst [vmem:[%s9 + $0x30] sm:$0xf] %v1177
  %1210 = vst [vmem:[%s9 + $0x34] sm:$0xf] %v1178
  %1211 = vst [vmem:[%s9 + $0x38] sm:$0xf] %v1179
  %1212 = vst [vmem:[%s9 + $0x3c] sm:$0xf] %v1180
  // Predicated region
  $region38: #{hetero_gnn_forward.3} parent=0 // pred_check
    _
  $region39: #{hetero_gnn_forward.3} parent=0 // pred_check_branch
    %1214 = sbr.rel (0) target = $region41
  $region40: #{hetero_gnn_forward.3} parent=0 // pred_region
    _
  $region41: #{hetero_gnn_forward.3} parent=0 // pred_fallthru
    _
  // Predicated region
  $region42: #{hetero_gnn_forward.3} parent=0 // pred_check
    _
  $region43: #{hetero_gnn_forward.3} parent=0 // pred_check_branch
    %1216 = sbr.rel (0) target = $region45
  $region44: #{hetero_gnn_forward.3} parent=0 // pred_region
    _
  $region45: #{hetero_gnn_forward.3} parent=0 // pred_fallthru
    _

// kernel: hetero_gnn_forward.5
$region0: #{hetero_gnn_forward.5}
  #allocation0 [shape = 'u32[]', space=smem, size = 0x4, offset = 0x4, fixed_abs, tag = 'smem constant byte address 0x4 - core index']
  #allocation1 [shape = 'u32[144,128]{1,0:T(1,128)}', space=vmem, size = 0x12000, scoped, tag = 'internal scratch']
  %s0 = inlined_call_operand.vmem [shape: bf16[128,128], index: 0, kind: input, shape index: {}]
  %s1 = inlined_call_operand.vmem [shape: bf16[128,128], index: 1, kind: input, shape index: {}]
  %s2 = inlined_call_operand.vmem [shape: bf16[128,128], index: 2, kind: input, shape index: {}]
  %s3 = inlined_call_operand.vmem [shape: bf16[128,128], index: 3, kind: input, shape index: {}]
  %s4 = inlined_call_operand.vmem [shape: bf16[128,128], index: 4, kind: input, shape index: {}, may-alias: {4,6}]
  %s5 = inlined_call_operand.vmem [shape: bf16[128,128], index: 5, kind: input, shape index: {}]
  %s6 = inlined_call_operand.vmem [shape: bf16[128,128], index: 6, kind: input, shape index: {}, may-alias: {4,6}]
  %s7 = inlined_call_operand.vmem [shape: bf16[128,128], index: 7, kind: input, shape index: {}]
  %s8 = inlined_call_operand.vmem [shape: f32[1,128], index: 8, kind: input, shape index: {}]
  %s9 = inlined_call_operand.vmem [shape: bf16[128,128], index: 9, kind: input, shape index: {}]
  %s10 = inlined_call_operand.vmem [shape: f32[1,128], index: 10, kind: input, shape index: {}]
  %s11 = inlined_call_operand.vmem [shape: f32[128,128], index: 11, kind: output, shape index: {}]
  %s12 = sld [smem:[#allocation0]]
  $region54: #{hetero_gnn_forward.5} parent=0
    _
  %s14 = ssub.s32 1, %s12
  %s15 = scalar_select 0, %s14, %s12
  // Predicated region
  $region2: #{hetero_gnn_forward.5} parent=0 // pred_check
    _
  $region3: #{hetero_gnn_forward.5} parent=0 // pred_check_branch
    %17 = sbr.rel (0) target = $region5
  $region4: #{hetero_gnn_forward.5} parent=0 // pred_region
    _
  $region5: #{hetero_gnn_forward.5} parent=0 // pred_fallthru
    _
  // Predicated region
  $region6: #{hetero_gnn_forward.5} parent=0 // pred_check
    _
  $region7: #{hetero_gnn_forward.5} parent=0 // pred_check_branch
    %19 = sbr.rel (0) target = $region9
  $region8: #{hetero_gnn_forward.5} parent=0 // pred_region
    _
  $region9: #{hetero_gnn_forward.5} parent=0 // pred_fallthru
    _
  // Predicated region
  $region10: #{hetero_gnn_forward.5} parent=0 // pred_check
    _
  $region11: #{hetero_gnn_forward.5} parent=0 // pred_check_branch
    %21 = sbr.rel (0) target = $region13
  $region12: #{hetero_gnn_forward.5} parent=0 // pred_region
    _
  $region13: #{hetero_gnn_forward.5} parent=0 // pred_fallthru
    _
  // Predicated region
  $region14: #{hetero_gnn_forward.5} parent=0 // pred_check
    _
  $region15: #{hetero_gnn_forward.5} parent=0 // pred_check_branch
    %23 = sbr.rel (0) target = $region17
  $region16: #{hetero_gnn_forward.5} parent=0 // pred_region
    _
  $region17: #{hetero_gnn_forward.5} parent=0 // pred_fallthru
    _
  // Predicated region
  $region18: #{hetero_gnn_forward.5} parent=0 // pred_check
    _
  $region19: #{hetero_gnn_forward.5} parent=0 // pred_check_branch
    %25 = sbr.rel (0) target = $region21
  $region20: #{hetero_gnn_forward.5} parent=0 // pred_region
    _
  $region21: #{hetero_gnn_forward.5} parent=0 // pred_fallthru
    _
  // Predicated region
  $region22: #{hetero_gnn_forward.5} parent=0 // pred_check
    _
  $region23: #{hetero_gnn_forward.5} parent=0 // pred_check_branch
    %27 = sbr.rel (0) target = $region25
  $region24: #{hetero_gnn_forward.5} parent=0 // pred_region
    _
  $region25: #{hetero_gnn_forward.5} parent=0 // pred_fallthru
    _
  // Predicated region
  $region26: #{hetero_gnn_forward.5} parent=0 // pred_check
    _
  $region27: #{hetero_gnn_forward.5} parent=0 // pred_check_branch
    %29 = sbr.rel (0) target = $region29
  $region28: #{hetero_gnn_forward.5} parent=0 // pred_region
    _
  $region29: #{hetero_gnn_forward.5} parent=0 // pred_fallthru
    _
  // Predicated region
  $region30: #{hetero_gnn_forward.5} parent=0 // pred_check
    _
  $region31: #{hetero_gnn_forward.5} parent=0 // pred_check_branch
    %31 = sbr.rel (0) target = $region33
  $region32: #{hetero_gnn_forward.5} parent=0 // pred_region
    _
  $region33: #{hetero_gnn_forward.5} parent=0 // pred_fallthru
    _
  // Predicated region
  $region34: #{hetero_gnn_forward.5} parent=0 // pred_check
    _
  $region35: #{hetero_gnn_forward.5} parent=0 // pred_check_branch
    %33 = sbr.rel (0) target = $region37
  $region36: #{hetero_gnn_forward.5} parent=0 // pred_region
    _
  $region37: #{hetero_gnn_forward.5} parent=0 // pred_fallthru
    _
  // Predicated region
  $region38: #{hetero_gnn_forward.5} parent=0 // pred_check
    _
  $region39: #{hetero_gnn_forward.5} parent=0 // pred_check_branch
    %35 = sbr.rel (0) target = $region41
  $region40: #{hetero_gnn_forward.5} parent=0 // pred_region
    _
  $region41: #{hetero_gnn_forward.5} parent=0 // pred_fallthru
    _
  // Predicated region
  $region42: #{hetero_gnn_forward.5} parent=0 // pred_check
    _
  $region43: #{hetero_gnn_forward.5} parent=0 // pred_check_branch
    %37 = sbr.rel (0) target = $region45
  $region44: #{hetero_gnn_forward.5} parent=0 // pred_region
    _
  $region45: #{hetero_gnn_forward.5} parent=0 // pred_fallthru
    _
  %v39 = vld [vmem:[%s0] sm:$0xf]
  %v40 = vld [vmem:[%s0 + $0x4] sm:$0xf]
  %v41 = vld [vmem:[%s0 + $0x8] sm:$0xf]
  %v42 = vld [vmem:[%s0 + $0xc] sm:$0xf]
  %v43 = vld [vmem:[%s0 + $0x10] sm:$0xf]
  %v44 = vld [vmem:[%s0 + $0x14] sm:$0xf]
  %v45 = vld [vmem:[%s0 + $0x18] sm:$0xf]
  %v46 = vld [vmem:[%s0 + $0x1c] sm:$0xf]
  %v47 = vld [vmem:[%s0 + $0x20] sm:$0xf]
  %v48 = vld [vmem:[%s0 + $0x24] sm:$0xf]
  %v49 = vld [vmem:[%s0 + $0x28] sm:$0xf]
  %v50 = vld [vmem:[%s0 + $0x2c] sm:$0xf]
  %v51 = vld [vmem:[%s0 + $0x30] sm:$0xf]
  %v52 = vld [vmem:[%s0 + $0x34] sm:$0xf]
  %v53 = vld [vmem:[%s0 + $0x38] sm:$0xf]
  %v54 = vld [vmem:[%s0 + $0x3c] sm:$0xf]
  %v55 = vld [vmem:[%s1] sm:$0xf]
  %v56 = vld [vmem:[%s1 + $0x4] sm:$0xf]
  %v57 = vld [vmem:[%s1 + $0x8] sm:$0xf]
  %v58 = vld [vmem:[%s1 + $0xc] sm:$0xf]
  %v59 = vld [vmem:[%s1 + $0x10] sm:$0xf]
  %v60 = vld [vmem:[%s1 + $0x14] sm:$0xf]
  %v61 = vld [vmem:[%s1 + $0x18] sm:$0xf]
  %v62 = vld [vmem:[%s1 + $0x1c] sm:$0xf]
  %v63 = vld [vmem:[%s1 + $0x20] sm:$0xf]
  %v64 = vld [vmem:[%s1 + $0x24] sm:$0xf]
  %v65 = vld [vmem:[%s1 + $0x28] sm:$0xf]
  %v66 = vld [vmem:[%s1 + $0x2c] sm:$0xf]
  %v67 = vld [vmem:[%s1 + $0x30] sm:$0xf]
  %v68 = vld [vmem:[%s1 + $0x34] sm:$0xf]
  %v69 = vld [vmem:[%s1 + $0x38] sm:$0xf]
  %v70 = vld [vmem:[%s1 + $0x3c] sm:$0xf]
  %v87 = vunpack.c.l.b16 %v39
  %v88 = vunpack.c.l.b16 %v40
  %v89 = vunpack.c.l.b16 %v41
  %v90 = vunpack.c.l.b16 %v42
  %v91 = vunpack.c.l.b16 %v43
  %v92 = vunpack.c.l.b16 %v44
  %v93 = vunpack.c.l.b16 %v45
  %v94 = vunpack.c.l.b16 %v46
  %v95 = vunpack.c.l.b16 %v47
  %v96 = vunpack.c.l.b16 %v48
  %v97 = vunpack.c.l.b16 %v49
  %v98 = vunpack.c.l.b16 %v50
  %v99 = vunpack.c.l.b16 %v51
  %v100 = vunpack.c.l.b16 %v52
  %v101 = vunpack.c.l.b16 %v53
  %v102 = vunpack.c.l.b16 %v54
  %v103 = vpack.c.b16 %v88, %v87
  %v104 = vpack.c.b16 %v90, %v89
  %v105 = vpack.c.b16 %v92, %v91
  %v106 = vpack.c.b16 %v94, %v93
  %v107 = vpack.c.b16 %v96, %v95
  %v108 = vpack.c.b16 %v98, %v97
  %v109 = vpack.c.b16 %v100, %v99
  %v110 = vpack.c.b16 %v102, %v101
  %v135 = vunpack.c.l.b16 %v55
  %v136 = vunpack.c.l.b16 %v56
  %v137 = vunpack.c.l.b16 %v57
  %v138 = vunpack.c.l.b16 %v58
  %v139 = vunpack.c.l.b16 %v59
  %v140 = vunpack.c.l.b16 %v60
  %v141 = vunpack.c.l.b16 %v61
  %v142 = vunpack.c.l.b16 %v62
  %v143 = vunpack.c.l.b16 %v63
  %v144 = vunpack.c.l.b16 %v64
  %v145 = vunpack.c.l.b16 %v65
  %v146 = vunpack.c.l.b16 %v66
  %v147 = vunpack.c.l.b16 %v67
  %v148 = vunpack.c.l.b16 %v68
  %v149 = vunpack.c.l.b16 %v69
  %v150 = vunpack.c.l.b16 %v70
  %v151 = vpack.c.b16 %v136, %v135
  %v152 = vpack.c.b16 %v138, %v137
  %v153 = vpack.c.b16 %v140, %v139
  %v154 = vpack.c.b16 %v142, %v141
  %v155 = vpack.c.b16 %v144, %v143
  %v156 = vpack.c.b16 %v146, %v145
  %v157 = vpack.c.b16 %v148, %v147
  %v158 = vpack.c.b16 %v150, %v149
  %167 = vmatprep.subr.bf16.mxu0 0
  %168 = vmatpush1.bf16.msra.mxu0 %v151
  %169 = vmatprep.subr.bf16.mxu0 0
  %170 = vmatpush1.bf16.msra.mxu0 %v152
  %171 = vmatprep.subr.bf16.mxu0 0
  %172 = vmatpush1.bf16.msra.mxu0 %v153
  %173 = vmatprep.subr.bf16.mxu0 0
  %174 = vmatpush1.bf16.msra.mxu0 %v154
  %175 = vmatprep.subr.bf16.mxu0 0
  %176 = vmatpush1.bf16.msra.mxu0 %v155
  %177 = vmatprep.subr.bf16.mxu0 0
  %178 = vmatpush1.bf16.msra.mxu0 %v156
  %179 = vmatprep.subr.bf16.mxu0 0
  %180 = vmatpush1.bf16.msra.mxu0 %v157
  %181 = vmatprep.subr.bf16.mxu0 0
  %182 = vmatpush1.bf16.msra.mxu0 %v158
  %183 = vmatprep.subr.bf16.mxu0 0
  %184 = vmatpush1.bf16.msra.mxu0 0
  %185 = vmatprep.subr.bf16.mxu0 0
  %186 = vmatpush1.bf16.msra.mxu0 0
  %187 = vmatprep.subr.bf16.mxu0 0
  %188 = vmatpush1.bf16.msra.mxu0 0
  %189 = vmatprep.subr.bf16.mxu0 0
  %190 = vmatpush1.bf16.msra.mxu0 0
  %191 = vmatprep.subr.bf16.mxu0 0
  %192 = vmatpush1.bf16.msra.mxu0 0
  %193 = vmatprep.subr.bf16.mxu0 0
  %194 = vmatpush1.bf16.msra.mxu0 0
  %195 = vmatprep.subr.bf16.mxu0 0
  %196 = vmatpush1.bf16.msra.mxu0 0
  %197 = vmatprep.subr.bf16.mxu0 0
  %198 = vmatpush1.bf16.msra.mxu0 0
  %199 = vmatprep.mubr.bf16.mxu0 0
  %200 = vmatmul.mubr.bf16.gmra.mrb[0].mxu0 %v103
  %v201 = vpop.f32.mrb[0].mxu0
  %v202 = vadd.f32 0.0, %v201
  %v203 = vpop.f32.mrb[0].mxu0
  %v204 = vpop.f32.mrb[0].mxu0
  %v205 = vadd.f32 0.0, %v204
  %v206 = vpop.f32.mrb[0].mxu0
  %207 = vmatprep.mubr.bf16.mxu0 0
  %208 = vmatmul.mubr.bf16.gmra.mrb[0].mxu0 %v104
  %v209 = vpop.f32.mrb[0].mxu0
  %v210 = vadd.f32 0.0, %v209
  %v211 = vpop.f32.mrb[0].mxu0
  %v212 = vpop.f32.mrb[0].mxu0
  %v213 = vadd.f32 0.0, %v212
  %v214 = vpop.f32.mrb[0].mxu0
  %215 = vmatprep.mubr.bf16.mxu0 0
  %216 = vmatmul.mubr.bf16.gmra.mrb[0].mxu0 %v105
  %v217 = vpop.f32.mrb[0].mxu0
  %v218 = vadd.f32 0.0, %v217
  %v219 = vpop.f32.mrb[0].mxu0
  %v220 = vpop.f32.mrb[0].mxu0
  %v221 = vadd.f32 0.0, %v220
  %v222 = vpop.f32.mrb[0].mxu0
  %223 = vmatprep.mubr.bf16.mxu0 0
  %224 = vmatmul.mubr.bf16.gmra.mrb[0].mxu0 %v106
  %v225 = vpop.f32.mrb[0].mxu0
  %v226 = vadd.f32 0.0, %v225
  %v227 = vpop.f32.mrb[0].mxu0
  %v228 = vpop.f32.mrb[0].mxu0
  %v229 = vadd.f32 0.0, %v228
  %v230 = vpop.f32.mrb[0].mxu0
  %231 = vmatprep.mubr.bf16.mxu0 0
  %232 = vmatmul.mubr.bf16.gmra.mrb[0].mxu0 %v107
  %v233 = vpop.f32.mrb[0].mxu0
  %v234 = vadd.f32 0.0, %v233
  %v235 = vpop.f32.mrb[0].mxu0
  %v236 = vpop.f32.mrb[0].mxu0
  %v237 = vadd.f32 0.0, %v236
  %v238 = vpop.f32.mrb[0].mxu0
  %239 = vmatprep.mubr.bf16.mxu0 0
  %240 = vmatmul.mubr.bf16.gmra.mrb[0].mxu0 %v108
  %v241 = vpop.f32.mrb[0].mxu0
  %v242 = vadd.f32 0.0, %v241
  %v243 = vpop.f32.mrb[0].mxu0
  %v244 = vpop.f32.mrb[0].mxu0
  %v245 = vadd.f32 0.0, %v244
  %v246 = vpop.f32.mrb[0].mxu0
  %247 = vmatprep.mubr.bf16.mxu0 0
  %248 = vmatmul.mubr.bf16.gmra.mrb[0].mxu0 %v109
  %v249 = vpop.f32.mrb[0].mxu0
  %v250 = vadd.f32 0.0, %v249
  %v251 = vpop.f32.mrb[0].mxu0
  %v252 = vpop.f32.mrb[0].mxu0
  %v253 = vadd.f32 0.0, %v252
  %v254 = vpop.f32.mrb[0].mxu0
  %255 = vmatprep.mubr.bf16.mxu0 0
  %256 = vmatmul.mubr.bf16.gmra.mrb[0].mxu0 %v110
  %v257 = vpop.f32.mrb[0].mxu0
  %v258 = vadd.f32 0.0, %v257
  %v259 = vpop.f32.mrb[0].mxu0
  %v260 = vpop.f32.mrb[0].mxu0
  %v261 = vadd.f32 0.0, %v260
  %v262 = vpop.f32.mrb[0].mxu0
  %263 = vdwg.mxu0
  %v264 = vpack.c.bf16 %v205, %v202
  %v265 = vpack.c.bf16 %v213, %v210
  %v266 = vpack.c.bf16 %v221, %v218
  %v267 = vpack.c.bf16 %v229, %v226
  %v268 = vpack.c.bf16 %v237, %v234
  %v269 = vpack.c.bf16 %v245, %v242
  %v270 = vpack.c.bf16 %v253, %v250
  %v271 = vpack.c.bf16 %v261, %v258
  %v272 = vld [vmem:[%s2] sm:$0xf]
  %v273 = vld [vmem:[%s2 + $0x4] sm:$0xf]
  %v274 = vld [vmem:[%s2 + $0x8] sm:$0xf]
  %v275 = vld [vmem:[%s2 + $0xc] sm:$0xf]
  %v276 = vld [vmem:[%s2 + $0x10] sm:$0xf]
  %v277 = vld [vmem:[%s2 + $0x14] sm:$0xf]
  %v278 = vld [vmem:[%s2 + $0x18] sm:$0xf]
  %v279 = vld [vmem:[%s2 + $0x1c] sm:$0xf]
  %v280 = vld [vmem:[%s2 + $0x20] sm:$0xf]
  %v281 = vld [vmem:[%s2 + $0x24] sm:$0xf]
  %v282 = vld [vmem:[%s2 + $0x28] sm:$0xf]
  %v283 = vld [vmem:[%s2 + $0x2c] sm:$0xf]
  %v284 = vld [vmem:[%s2 + $0x30] sm:$0xf]
  %v285 = vld [vmem:[%s2 + $0x34] sm:$0xf]
  %v286 = vld [vmem:[%s2 + $0x38] sm:$0xf]
  %v287 = vld [vmem:[%s2 + $0x3c] sm:$0xf]
  %v288 = vld [vmem:[%s3] sm:$0xf]
  %v289 = vld [vmem:[%s3 + $0x4] sm:$0xf]
  %v290 = vld [vmem:[%s3 + $0x8] sm:$0xf]
  %v291 = vld [vmem:[%s3 + $0xc] sm:$0xf]
  %v292 = vld [vmem:[%s3 + $0x10] sm:$0xf]
  %v293 = vld [vmem:[%s3 + $0x14] sm:$0xf]
  %v294 = vld [vmem:[%s3 + $0x18] sm:$0xf]
  %v295 = vld [vmem:[%s3 + $0x1c] sm:$0xf]
  %v296 = vld [vmem:[%s3 + $0x20] sm:$0xf]
  %v297 = vld [vmem:[%s3 + $0x24] sm:$0xf]
  %v298 = vld [vmem:[%s3 + $0x28] sm:$0xf]
  %v299 = vld [vmem:[%s3 + $0x2c] sm:$0xf]
  %v300 = vld [vmem:[%s3 + $0x30] sm:$0xf]
  %v301 = vld [vmem:[%s3 + $0x34] sm:$0xf]
  %v302 = vld [vmem:[%s3 + $0x38] sm:$0xf]
  %v303 = vld [vmem:[%s3 + $0x3c] sm:$0xf]
  %v304 = vld [vmem:[%s4] sm:$0xf]
  %v305 = vld [vmem:[%s4 + $0x4] sm:$0xf]
  %v306 = vld [vmem:[%s4 + $0x8] sm:$0xf]
  %v307 = vld [vmem:[%s4 + $0xc] sm:$0xf]
  %v308 = vld [vmem:[%s4 + $0x10] sm:$0xf]
  %v309 = vld [vmem:[%s4 + $0x14] sm:$0xf]
  %v310 = vld [vmem:[%s4 + $0x18] sm:$0xf]
  %v311 = vld [vmem:[%s4 + $0x1c] sm:$0xf]
  %v312 = vld [vmem:[%s4 + $0x20] sm:$0xf]
  %v313 = vld [vmem:[%s4 + $0x24] sm:$0xf]
  %v314 = vld [vmem:[%s4 + $0x28] sm:$0xf]
  %v315 = vld [vmem:[%s4 + $0x2c] sm:$0xf]
  %v316 = vld [vmem:[%s4 + $0x30] sm:$0xf]
  %v317 = vld [vmem:[%s4 + $0x34] sm:$0xf]
  %v318 = vld [vmem:[%s4 + $0x38] sm:$0xf]
  %v319 = vld [vmem:[%s4 + $0x3c] sm:$0xf]
  %v336 = vunpack.c.l.b16 %v288
  %v337 = vunpack.c.l.b16 %v289
  %v338 = vunpack.c.l.b16 %v290
  %v339 = vunpack.c.l.b16 %v291
  %v340 = vunpack.c.l.b16 %v292
  %v341 = vunpack.c.l.b16 %v293
  %v342 = vunpack.c.l.b16 %v294
  %v343 = vunpack.c.l.b16 %v295
  %v344 = vunpack.c.l.b16 %v296
  %v345 = vunpack.c.l.b16 %v297
  %v346 = vunpack.c.l.b16 %v298
  %v347 = vunpack.c.l.b16 %v299
  %v348 = vunpack.c.l.b16 %v300
  %v349 = vunpack.c.l.b16 %v301
  %v350 = vunpack.c.l.b16 %v302
  %v351 = vunpack.c.l.b16 %v303
  %v352 = vpack.c.b16 %v337, %v336
  %v353 = vpack.c.b16 %v339, %v338
  %v354 = vpack.c.b16 %v341, %v340
  %v355 = vpack.c.b16 %v343, %v342
  %v356 = vpack.c.b16 %v345, %v344
  %v357 = vpack.c.b16 %v347, %v346
  %v358 = vpack.c.b16 %v349, %v348
  %v359 = vpack.c.b16 %v351, %v350
  %v384 = vunpack.c.l.b16 %v304
  %v385 = vunpack.c.l.b16 %v305
  %v386 = vunpack.c.l.b16 %v306
  %v387 = vunpack.c.l.b16 %v307
  %v388 = vunpack.c.l.b16 %v308
  %v389 = vunpack.c.l.b16 %v309
  %v390 = vunpack.c.l.b16 %v310
  %v391 = vunpack.c.l.b16 %v311
  %v392 = vunpack.c.l.b16 %v312
  %v393 = vunpack.c.l.b16 %v313
  %v394 = vunpack.c.l.b16 %v314
  %v395 = vunpack.c.l.b16 %v315
  %v396 = vunpack.c.l.b16 %v316
  %v397 = vunpack.c.l.b16 %v317
  %v398 = vunpack.c.l.b16 %v318
  %v399 = vunpack.c.l.b16 %v319
  %v400 = vpack.c.b16 %v385, %v384
  %v401 = vpack.c.b16 %v387, %v386
  %v402 = vpack.c.b16 %v389, %v388
  %v403 = vpack.c.b16 %v391, %v390
  %v404 = vpack.c.b16 %v393, %v392
  %v405 = vpack.c.b16 %v395, %v394
  %v406 = vpack.c.b16 %v397, %v396
  %v407 = vpack.c.b16 %v399, %v398
  %416 = vmatprep.subr.bf16.mxu0 0
  %417 = vmatpush1.bf16.msra.mxu0 %v400
  %418 = vmatprep.subr.bf16.mxu0 0
  %419 = vmatpush1.bf16.msra.mxu0 %v401
  %420 = vmatprep.subr.bf16.mxu0 0
  %421 = vmatpush1.bf16.msra.mxu0 %v402
  %422 = vmatprep.subr.bf16.mxu0 0
  %423 = vmatpush1.bf16.msra.mxu0 %v403
  %424 = vmatprep.subr.bf16.mxu0 0
  %425 = vmatpush1.bf16.msra.mxu0 %v404
  %426 = vmatprep.subr.bf16.mxu0 0
  %427 = vmatpush1.bf16.msra.mxu0 %v405
  %428 = vmatprep.subr.bf16.mxu0 0
  %429 = vmatpush1.bf16.msra.mxu0 %v406
  %430 = vmatprep.subr.bf16.mxu0 0
  %431 = vmatpush1.bf16.msra.mxu0 %v407
  %432 = vmatprep.subr.bf16.mxu0 0
  %433 = vmatpush1.bf16.msra.mxu0 0
  %434 = vmatprep.subr.bf16.mxu0 0
  %435 = vmatpush1.bf16.msra.mxu0 0
  %436 = vmatprep.subr.bf16.mxu0 0
  %437 = vmatpush1.bf16.msra.mxu0 0
  %438 = vmatprep.subr.bf16.mxu0 0
  %439 = vmatpush1.bf16.msra.mxu0 0
  %440 = vmatprep.subr.bf16.mxu0 0
  %441 = vmatpush1.bf16.msra.mxu0 0
  %442 = vmatprep.subr.bf16.mxu0 0
  %443 = vmatpush1.bf16.msra.mxu0 0
  %444 = vmatprep.subr.bf16.mxu0 0
  %445 = vmatpush1.bf16.msra.mxu0 0
  %446 = vmatprep.subr.bf16.mxu0 0
  %447 = vmatpush1.bf16.msra.mxu0 0
  %448 = vmatprep.mubr.bf16.mxu0 0
  %449 = vmatmul.mubr.bf16.gmra.mrb[0].mxu0 %v352
  %v450 = vpop.f32.mrb[0].mxu0
  %v451 = vadd.f32 0.0, %v450
  %v452 = vpop.f32.mrb[0].mxu0
  %v453 = vpop.f32.mrb[0].mxu0
  %v454 = vadd.f32 0.0, %v453
  %v455 = vpop.f32.mrb[0].mxu0
  %456 = vmatprep.mubr.bf16.mxu0 0
  %457 = vmatmul.mubr.bf16.gmra.mrb[0].mxu0 %v353
  %v458 = vpop.f32.mrb[0].mxu0
  %v459 = vadd.f32 0.0, %v458
  %v460 = vpop.f32.mrb[0].mxu0
  %v461 = vpop.f32.mrb[0].mxu0
  %v462 = vadd.f32 0.0, %v461
  %v463 = vpop.f32.mrb[0].mxu0
  %464 = vmatprep.mubr.bf16.mxu0 0
  %465 = vmatmul.mubr.bf16.gmra.mrb[0].mxu0 %v354
  %v466 = vpop.f32.mrb[0].mxu0
  %v467 = vadd.f32 0.0, %v466
  %v468 = vpop.f32.mrb[0].mxu0
  %v469 = vpop.f32.mrb[0].mxu0
  %v470 = vadd.f32 0.0, %v469
  %v471 = vpop.f32.mrb[0].mxu0
  %472 = vmatprep.mubr.bf16.mxu0 0
  %473 = vmatmul.mubr.bf16.gmra.mrb[0].mxu0 %v355
  %v474 = vpop.f32.mrb[0].mxu0
  %v475 = vadd.f32 0.0, %v474
  %v476 = vpop.f32.mrb[0].mxu0
  %v477 = vpop.f32.mrb[0].mxu0
  %v478 = vadd.f32 0.0, %v477
  %v479 = vpop.f32.mrb[0].mxu0
  %480 = vmatprep.mubr.bf16.mxu0 0
  %481 = vmatmul.mubr.bf16.gmra.mrb[0].mxu0 %v356
  %v482 = vpop.f32.mrb[0].mxu0
  %v483 = vadd.f32 0.0, %v482
  %v484 = vpop.f32.mrb[0].mxu0
  %v485 = vpop.f32.mrb[0].mxu0
  %v486 = vadd.f32 0.0, %v485
  %v487 = vpop.f32.mrb[0].mxu0
  %488 = vmatprep.mubr.bf16.mxu0 0
  %489 = vmatmul.mubr.bf16.gmra.mrb[0].mxu0 %v357
  %v490 = vpop.f32.mrb[0].mxu0
  %v491 = vadd.f32 0.0, %v490
  %v492 = vpop.f32.mrb[0].mxu0
  %v493 = vpop.f32.mrb[0].mxu0
  %v494 = vadd.f32 0.0, %v493
  %v495 = vpop.f32.mrb[0].mxu0
  %496 = vmatprep.mubr.bf16.mxu0 0
  %497 = vmatmul.mubr.bf16.gmra.mrb[0].mxu0 %v358
  %v498 = vpop.f32.mrb[0].mxu0
  %v499 = vadd.f32 0.0, %v498
  %v500 = vpop.f32.mrb[0].mxu0
  %v501 = vpop.f32.mrb[0].mxu0
  %v502 = vadd.f32 0.0, %v501
  %v503 = vpop.f32.mrb[0].mxu0
  %504 = vmatprep.mubr.bf16.mxu0 0
  %505 = vmatmul.mubr.bf16.gmra.mrb[0].mxu0 %v359
  %v506 = vpop.f32.mrb[0].mxu0
  %v507 = vadd.f32 0.0, %v506
  %v508 = vpop.f32.mrb[0].mxu0
  %v509 = vpop.f32.mrb[0].mxu0
  %v510 = vadd.f32 0.0, %v509
  %v511 = vpop.f32.mrb[0].mxu0
  %512 = vdwg.mxu0
  %v513 = vpack.c.bf16 %v454, %v451
  %v514 = vpack.c.bf16 %v462, %v459
  %v515 = vpack.c.bf16 %v470, %v467
  %v516 = vpack.c.bf16 %v478, %v475
  %v517 = vpack.c.bf16 %v486, %v483
  %v518 = vpack.c.bf16 %v494, %v491
  %v519 = vpack.c.bf16 %v502, %v499
  %v520 = vpack.c.bf16 %v510, %v507
  %v521 = vld [vmem:[%s5] sm:$0xf]
  %v522 = vld [vmem:[%s5 + $0x4] sm:$0xf]
  %v523 = vld [vmem:[%s5 + $0x8] sm:$0xf]
  %v524 = vld [vmem:[%s5 + $0xc] sm:$0xf]
  %v525 = vld [vmem:[%s5 + $0x10] sm:$0xf]
  %v526 = vld [vmem:[%s5 + $0x14] sm:$0xf]
  %v527 = vld [vmem:[%s5 + $0x18] sm:$0xf]
  %v528 = vld [vmem:[%s5 + $0x1c] sm:$0xf]
  %v529 = vld [vmem:[%s5 + $0x20] sm:$0xf]
  %v530 = vld [vmem:[%s5 + $0x24] sm:$0xf]
  %v531 = vld [vmem:[%s5 + $0x28] sm:$0xf]
  %v532 = vld [vmem:[%s5 + $0x2c] sm:$0xf]
  %v533 = vld [vmem:[%s5 + $0x30] sm:$0xf]
  %v534 = vld [vmem:[%s5 + $0x34] sm:$0xf]
  %v535 = vld [vmem:[%s5 + $0x38] sm:$0xf]
  %v536 = vld [vmem:[%s5 + $0x3c] sm:$0xf]
  %v553 = vunpack.c.l.b16 %v521
  %v554 = vunpack.c.l.b16 %v522
  %v555 = vunpack.c.l.b16 %v523
  %v556 = vunpack.c.l.b16 %v524
  %v557 = vunpack.c.l.b16 %v525
  %v558 = vunpack.c.l.b16 %v526
  %v559 = vunpack.c.l.b16 %v527
  %v560 = vunpack.c.l.b16 %v528
  %v561 = vunpack.c.l.b16 %v529
  %v562 = vunpack.c.l.b16 %v530
  %v563 = vunpack.c.l.b16 %v531
  %v564 = vunpack.c.l.b16 %v532
  %v565 = vunpack.c.l.b16 %v533
  %v566 = vunpack.c.l.b16 %v534
  %v567 = vunpack.c.l.b16 %v535
  %v568 = vunpack.c.l.b16 %v536
  %v569 = vpack.c.b16 %v554, %v553
  %v570 = vpack.c.b16 %v556, %v555
  %v571 = vpack.c.b16 %v558, %v557
  %v572 = vpack.c.b16 %v560, %v559
  %v573 = vpack.c.b16 %v562, %v561
  %v574 = vpack.c.b16 %v564, %v563
  %v575 = vpack.c.b16 %v566, %v565
  %v576 = vpack.c.b16 %v568, %v567
  %585 = vmatprep.subr.bf16.mxu0 0
  %586 = vmatpush1.bf16.msra.mxu0 %v569
  %587 = vmatprep.subr.bf16.mxu0 0
  %588 = vmatpush1.bf16.msra.mxu0 %v570
  %589 = vmatprep.subr.bf16.mxu0 0
  %590 = vmatpush1.bf16.msra.mxu0 %v571
  %591 = vmatprep.subr.bf16.mxu0 0
  %592 = vmatpush1.bf16.msra.mxu0 %v572
  %593 = vmatprep.subr.bf16.mxu0 0
  %594 = vmatpush1.bf16.msra.mxu0 %v573
  %595 = vmatprep.subr.bf16.mxu0 0
  %596 = vmatpush1.bf16.msra.mxu0 %v574
  %597 = vmatprep.subr.bf16.mxu0 0
  %598 = vmatpush1.bf16.msra.mxu0 %v575
  %599 = vmatprep.subr.bf16.mxu0 0
  %600 = vmatpush1.bf16.msra.mxu0 %v576
  %601 = vmatprep.subr.bf16.mxu0 0
  %602 = vmatpush1.bf16.msra.mxu0 0
  %603 = vmatprep.subr.bf16.mxu0 0
  %604 = vmatpush1.bf16.msra.mxu0 0
  %605 = vmatprep.subr.bf16.mxu0 0
  %606 = vmatpush1.bf16.msra.mxu0 0
  %607 = vmatprep.subr.bf16.mxu0 0
  %608 = vmatpush1.bf16.msra.mxu0 0
  %609 = vmatprep.subr.bf16.mxu0 0
  %610 = vmatpush1.bf16.msra.mxu0 0
  %611 = vmatprep.subr.bf16.mxu0 0
  %612 = vmatpush1.bf16.msra.mxu0 0
  %613 = vmatprep.subr.bf16.mxu0 0
  %614 = vmatpush1.bf16.msra.mxu0 0
  %615 = vmatprep.subr.bf16.mxu0 0
  %616 = vmatpush1.bf16.msra.mxu0 0
  %617 = vmatprep.mubr.bf16.mxu0 0
  %618 = vmatmul.mubr.bf16.gmra.mrb[0].mxu0 %v513
  %v619 = vpop.f32.mrb[0].mxu0
  %v620 = vadd.f32 0.0, %v619
  %v621 = vpop.f32.mrb[0].mxu0
  %v622 = vpop.f32.mrb[0].mxu0
  %v623 = vadd.f32 0.0, %v622
  %v624 = vpop.f32.mrb[0].mxu0
  %625 = vmatprep.mubr.bf16.mxu0 0
  %626 = vmatmul.mubr.bf16.gmra.mrb[0].mxu0 %v514
  %v627 = vpop.f32.mrb[0].mxu0
  %v628 = vadd.f32 0.0, %v627
  %v629 = vpop.f32.mrb[0].mxu0
  %v630 = vpop.f32.mrb[0].mxu0
  %v631 = vadd.f32 0.0, %v630
  %v632 = vpop.f32.mrb[0].mxu0
  %633 = vmatprep.mubr.bf16.mxu0 0
  %634 = vmatmul.mubr.bf16.gmra.mrb[0].mxu0 %v515
  %v635 = vpop.f32.mrb[0].mxu0
  %v636 = vadd.f32 0.0, %v635
  %v637 = vpop.f32.mrb[0].mxu0
  %v638 = vpop.f32.mrb[0].mxu0
  %v639 = vadd.f32 0.0, %v638
  %v640 = vpop.f32.mrb[0].mxu0
  %641 = vmatprep.mubr.bf16.mxu0 0
  %642 = vmatmul.mubr.bf16.gmra.mrb[0].mxu0 %v516
  %v643 = vpop.f32.mrb[0].mxu0
  %v644 = vadd.f32 0.0, %v643
  %v645 = vpop.f32.mrb[0].mxu0
  %v646 = vpop.f32.mrb[0].mxu0
  %v647 = vadd.f32 0.0, %v646
  %v648 = vpop.f32.mrb[0].mxu0
  %649 = vmatprep.mubr.bf16.mxu0 0
  %650 = vmatmul.mubr.bf16.gmra.mrb[0].mxu0 %v517
  %v651 = vpop.f32.mrb[0].mxu0
  %v652 = vadd.f32 0.0, %v651
  %v653 = vpop.f32.mrb[0].mxu0
  %v654 = vpop.f32.mrb[0].mxu0
  %v655 = vadd.f32 0.0, %v654
  %v656 = vpop.f32.mrb[0].mxu0
  %657 = vmatprep.mubr.bf16.mxu0 0
  %658 = vmatmul.mubr.bf16.gmra.mrb[0].mxu0 %v518
  %v659 = vpop.f32.mrb[0].mxu0
  %v660 = vadd.f32 0.0, %v659
  %v661 = vpop.f32.mrb[0].mxu0
  %v662 = vpop.f32.mrb[0].mxu0
  %v663 = vadd.f32 0.0, %v662
  %v664 = vpop.f32.mrb[0].mxu0
  %665 = vmatprep.mubr.bf16.mxu0 0
  %666 = vmatmul.mubr.bf16.gmra.mrb[0].mxu0 %v519
  %v667 = vpop.f32.mrb[0].mxu0
  %v668 = vadd.f32 0.0, %v667
  %v669 = vpop.f32.mrb[0].mxu0
  %v670 = vpop.f32.mrb[0].mxu0
  %v671 = vadd.f32 0.0, %v670
  %v672 = vpop.f32.mrb[0].mxu0
  %673 = vmatprep.mubr.bf16.mxu0 0
  %674 = vmatmul.mubr.bf16.gmra.mrb[0].mxu0 %v520
  %v675 = vpop.f32.mrb[0].mxu0
  %v676 = vadd.f32 0.0, %v675
  %v677 = vpop.f32.mrb[0].mxu0
  %v678 = vpop.f32.mrb[0].mxu0
  %v679 = vadd.f32 0.0, %v678
  %v680 = vpop.f32.mrb[0].mxu0
  %681 = vdwg.mxu0
  %v698 = vunpack.c.l.b16 %v272
  %v699 = vunpack.c.l.b16 %v273
  %v700 = vunpack.c.l.b16 %v274
  %v701 = vunpack.c.l.b16 %v275
  %v702 = vunpack.c.l.b16 %v276
  %v703 = vunpack.c.l.b16 %v277
  %v704 = vunpack.c.l.b16 %v278
  %v705 = vunpack.c.l.b16 %v279
  %v706 = vunpack.c.l.b16 %v280
  %v707 = vunpack.c.l.b16 %v281
  %v708 = vunpack.c.l.b16 %v282
  %v709 = vunpack.c.l.b16 %v283
  %v710 = vunpack.c.l.b16 %v284
  %v711 = vunpack.c.l.b16 %v285
  %v712 = vunpack.c.l.b16 %v286
  %v713 = vunpack.c.l.b16 %v287
  %v714 = vpack.c.b16 %v699, %v698
  %v715 = vpack.c.b16 %v701, %v700
  %v716 = vpack.c.b16 %v703, %v702
  %v717 = vpack.c.b16 %v705, %v704
  %v718 = vpack.c.b16 %v707, %v706
  %v719 = vpack.c.b16 %v709, %v708
  %v720 = vpack.c.b16 %v711, %v710
  %v721 = vpack.c.b16 %v713, %v712
  %730 = vmatprep.subr.bf16.mxu0 0
  %731 = vmatpush1.bf16.msra.mxu0 %v714
  %732 = vmatprep.subr.bf16.mxu0 0
  %733 = vmatpush1.bf16.msra.mxu0 %v715
  %734 = vmatprep.subr.bf16.mxu0 0
  %735 = vmatpush1.bf16.msra.mxu0 %v716
  %736 = vmatprep.subr.bf16.mxu0 0
  %737 = vmatpush1.bf16.msra.mxu0 %v717
  %738 = vmatprep.subr.bf16.mxu0 0
  %739 = vmatpush1.bf16.msra.mxu0 %v718
  %740 = vmatprep.subr.bf16.mxu0 0
  %741 = vmatpush1.bf16.msra.mxu0 %v719
  %742 = vmatprep.subr.bf16.mxu0 0
  %743 = vmatpush1.bf16.msra.mxu0 %v720
  %744 = vmatprep.subr.bf16.mxu0 0
  %745 = vmatpush1.bf16.msra.mxu0 %v721
  %746 = vmatprep.subr.bf16.mxu0 0
  %747 = vmatpush1.bf16.msra.mxu0 0
  %748 = vmatprep.subr.bf16.mxu0 0
  %749 = vmatpush1.bf16.msra.mxu0 0
  %750 = vmatprep.subr.bf16.mxu0 0
  %751 = vmatpush1.bf16.msra.mxu0 0
  %752 = vmatprep.subr.bf16.mxu0 0
  %753 = vmatpush1.bf16.msra.mxu0 0
  %754 = vmatprep.subr.bf16.mxu0 0
  %755 = vmatpush1.bf16.msra.mxu0 0
  %756 = vmatprep.subr.bf16.mxu0 0
  %757 = vmatpush1.bf16.msra.mxu0 0
  %758 = vmatprep.subr.bf16.mxu0 0
  %759 = vmatpush1.bf16.msra.mxu0 0
  %760 = vmatprep.subr.bf16.mxu0 0
  %761 = vmatpush1.bf16.msra.mxu0 0
  %762 = vmatprep.mubr.bf16.mxu0 0
  %763 = vmatmul.mubr.bf16.gmra.mrb[0].mxu0 %v264
  %v764 = vpop.f32.mrb[0].mxu0
  %v765 = vadd.f32 %v620, %v764
  %v766 = vpop.f32.mrb[0].mxu0
  %v767 = vpop.f32.mrb[0].mxu0
  %v768 = vadd.f32 %v623, %v767
  %v769 = vpop.f32.mrb[0].mxu0
  %770 = vmatprep.mubr.bf16.mxu0 0
  %771 = vmatmul.mubr.bf16.gmra.mrb[0].mxu0 %v265
  %v772 = vpop.f32.mrb[0].mxu0
  %v773 = vadd.f32 %v628, %v772
  %v774 = vpop.f32.mrb[0].mxu0
  %v775 = vpop.f32.mrb[0].mxu0
  %v776 = vadd.f32 %v631, %v775
  %v777 = vpop.f32.mrb[0].mxu0
  %778 = vmatprep.mubr.bf16.mxu0 0
  %779 = vmatmul.mubr.bf16.gmra.mrb[0].mxu0 %v266
  %v780 = vpop.f32.mrb[0].mxu0
  %v781 = vadd.f32 %v636, %v780
  %v782 = vpop.f32.mrb[0].mxu0
  %v783 = vpop.f32.mrb[0].mxu0
  %v784 = vadd.f32 %v639, %v783
  %v785 = vpop.f32.mrb[0].mxu0
  %786 = vmatprep.mubr.bf16.mxu0 0
  %787 = vmatmul.mubr.bf16.gmra.mrb[0].mxu0 %v267
  %v788 = vpop.f32.mrb[0].mxu0
  %v789 = vadd.f32 %v644, %v788
  %v790 = vpop.f32.mrb[0].mxu0
  %v791 = vpop.f32.mrb[0].mxu0
  %v792 = vadd.f32 %v647, %v791
  %v793 = vpop.f32.mrb[0].mxu0
  %794 = vmatprep.mubr.bf16.mxu0 0
  %795 = vmatmul.mubr.bf16.gmra.mrb[0].mxu0 %v268
  %v796 = vpop.f32.mrb[0].mxu0
  %v797 = vadd.f32 %v652, %v796
  %v798 = vpop.f32.mrb[0].mxu0
  %v799 = vpop.f32.mrb[0].mxu0
  %v800 = vadd.f32 %v655, %v799
  %v801 = vpop.f32.mrb[0].mxu0
  %802 = vmatprep.mubr.bf16.mxu0 0
  %803 = vmatmul.mubr.bf16.gmra.mrb[0].mxu0 %v269
  %v804 = vpop.f32.mrb[0].mxu0
  %v805 = vadd.f32 %v660, %v804
  %v806 = vpop.f32.mrb[0].mxu0
  %v807 = vpop.f32.mrb[0].mxu0
  %v808 = vadd.f32 %v663, %v807
  %v809 = vpop.f32.mrb[0].mxu0
  %810 = vmatprep.mubr.bf16.mxu0 0
  %811 = vmatmul.mubr.bf16.gmra.mrb[0].mxu0 %v270
  %v812 = vpop.f32.mrb[0].mxu0
  %v813 = vadd.f32 %v668, %v812
  %v814 = vpop.f32.mrb[0].mxu0
  %v815 = vpop.f32.mrb[0].mxu0
  %v816 = vadd.f32 %v671, %v815
  %v817 = vpop.f32.mrb[0].mxu0
  %818 = vmatprep.mubr.bf16.mxu0 0
  %819 = vmatmul.mubr.bf16.gmra.mrb[0].mxu0 %v271
  %v820 = vpop.f32.mrb[0].mxu0
  %v821 = vadd.f32 %v676, %v820
  %v822 = vpop.f32.mrb[0].mxu0
  %v823 = vpop.f32.mrb[0].mxu0
  %v824 = vadd.f32 %v679, %v823
  %v825 = vpop.f32.mrb[0].mxu0
  %826 = vdwg.mxu0
  %v827 = vld [vmem:[%s6] sm:$0xf]
  %v828 = vld [vmem:[%s6 + $0x4] sm:$0xf]
  %v829 = vld [vmem:[%s6 + $0x8] sm:$0xf]
  %v830 = vld [vmem:[%s6 + $0xc] sm:$0xf]
  %v831 = vld [vmem:[%s6 + $0x10] sm:$0xf]
  %v832 = vld [vmem:[%s6 + $0x14] sm:$0xf]
  %v833 = vld [vmem:[%s6 + $0x18] sm:$0xf]
  %v834 = vld [vmem:[%s6 + $0x1c] sm:$0xf]
  %v835 = vld [vmem:[%s6 + $0x20] sm:$0xf]
  %v836 = vld [vmem:[%s6 + $0x24] sm:$0xf]
  %v837 = vld [vmem:[%s6 + $0x28] sm:$0xf]
  %v838 = vld [vmem:[%s6 + $0x2c] sm:$0xf]
  %v839 = vld [vmem:[%s6 + $0x30] sm:$0xf]
  %v840 = vld [vmem:[%s6 + $0x34] sm:$0xf]
  %v841 = vld [vmem:[%s6 + $0x38] sm:$0xf]
  %v842 = vld [vmem:[%s6 + $0x3c] sm:$0xf]
  %v843 = vld [vmem:[%s7] sm:$0xf]
  %v844 = vld [vmem:[%s7 + $0x4] sm:$0xf]
  %v845 = vld [vmem:[%s7 + $0x8] sm:$0xf]
  %v846 = vld [vmem:[%s7 + $0xc] sm:$0xf]
  %v847 = vld [vmem:[%s7 + $0x10] sm:$0xf]
  %v848 = vld [vmem:[%s7 + $0x14] sm:$0xf]
  %v849 = vld [vmem:[%s7 + $0x18] sm:$0xf]
  %v850 = vld [vmem:[%s7 + $0x1c] sm:$0xf]
  %v851 = vld [vmem:[%s7 + $0x20] sm:$0xf]
  %v852 = vld [vmem:[%s7 + $0x24] sm:$0xf]
  %v853 = vld [vmem:[%s7 + $0x28] sm:$0xf]
  %v854 = vld [vmem:[%s7 + $0x2c] sm:$0xf]
  %v855 = vld [vmem:[%s7 + $0x30] sm:$0xf]
  %v856 = vld [vmem:[%s7 + $0x34] sm:$0xf]
  %v857 = vld [vmem:[%s7 + $0x38] sm:$0xf]
  %v858 = vld [vmem:[%s7 + $0x3c] sm:$0xf]
  %v875 = vunpack.c.l.b16 %v827
  %v876 = vunpack.c.l.b16 %v828
  %v877 = vunpack.c.l.b16 %v829
  %v878 = vunpack.c.l.b16 %v830
  %v879 = vunpack.c.l.b16 %v831
  %v880 = vunpack.c.l.b16 %v832
  %v881 = vunpack.c.l.b16 %v833
  %v882 = vunpack.c.l.b16 %v834
  %v883 = vunpack.c.l.b16 %v835
  %v884 = vunpack.c.l.b16 %v836
  %v885 = vunpack.c.l.b16 %v837
  %v886 = vunpack.c.l.b16 %v838
  %v887 = vunpack.c.l.b16 %v839
  %v888 = vunpack.c.l.b16 %v840
  %v889 = vunpack.c.l.b16 %v841
  %v890 = vunpack.c.l.b16 %v842
  %v891 = vpack.c.b16 %v876, %v875
  %v892 = vpack.c.b16 %v878, %v877
  %v893 = vpack.c.b16 %v880, %v879
  %v894 = vpack.c.b16 %v882, %v881
  %v895 = vpack.c.b16 %v884, %v883
  %v896 = vpack.c.b16 %v886, %v885
  %v897 = vpack.c.b16 %v888, %v887
  %v898 = vpack.c.b16 %v890, %v889
  %v923 = vunpack.c.l.b16 %v843
  %v924 = vunpack.c.l.b16 %v844
  %v925 = vunpack.c.l.b16 %v845
  %v926 = vunpack.c.l.b16 %v846
  %v927 = vunpack.c.l.b16 %v847
  %v928 = vunpack.c.l.b16 %v848
  %v929 = vunpack.c.l.b16 %v849
  %v930 = vunpack.c.l.b16 %v850
  %v931 = vunpack.c.l.b16 %v851
  %v932 = vunpack.c.l.b16 %v852
  %v933 = vunpack.c.l.b16 %v853
  %v934 = vunpack.c.l.b16 %v854
  %v935 = vunpack.c.l.b16 %v855
  %v936 = vunpack.c.l.b16 %v856
  %v937 = vunpack.c.l.b16 %v857
  %v938 = vunpack.c.l.b16 %v858
  %v939 = vpack.c.b16 %v924, %v923
  %v940 = vpack.c.b16 %v926, %v925
  %v941 = vpack.c.b16 %v928, %v927
  %v942 = vpack.c.b16 %v930, %v929
  %v943 = vpack.c.b16 %v932, %v931
  %v944 = vpack.c.b16 %v934, %v933
  %v945 = vpack.c.b16 %v936, %v935
  %v946 = vpack.c.b16 %v938, %v937
  %955 = vmatprep.subr.bf16.mxu0 0
  %956 = vmatpush1.bf16.msra.mxu0 %v939
  %957 = vmatprep.subr.bf16.mxu0 0
  %958 = vmatpush1.bf16.msra.mxu0 %v940
  %959 = vmatprep.subr.bf16.mxu0 0
  %960 = vmatpush1.bf16.msra.mxu0 %v941
  %961 = vmatprep.subr.bf16.mxu0 0
  %962 = vmatpush1.bf16.msra.mxu0 %v942
  %963 = vmatprep.subr.bf16.mxu0 0
  %964 = vmatpush1.bf16.msra.mxu0 %v943
  %965 = vmatprep.subr.bf16.mxu0 0
  %966 = vmatpush1.bf16.msra.mxu0 %v944
  %967 = vmatprep.subr.bf16.mxu0 0
  %968 = vmatpush1.bf16.msra.mxu0 %v945
  %969 = vmatprep.subr.bf16.mxu0 0
  %970 = vmatpush1.bf16.msra.mxu0 %v946
  %971 = vmatprep.subr.bf16.mxu0 0
  %972 = vmatpush1.bf16.msra.mxu0 0
  %973 = vmatprep.subr.bf16.mxu0 0
  %974 = vmatpush1.bf16.msra.mxu0 0
  %975 = vmatprep.subr.bf16.mxu0 0
  %976 = vmatpush1.bf16.msra.mxu0 0
  %977 = vmatprep.subr.bf16.mxu0 0
  %978 = vmatpush1.bf16.msra.mxu0 0
  %979 = vmatprep.subr.bf16.mxu0 0
  %980 = vmatpush1.bf16.msra.mxu0 0
  %981 = vmatprep.subr.bf16.mxu0 0
  %982 = vmatpush1.bf16.msra.mxu0 0
  %983 = vmatprep.subr.bf16.mxu0 0
  %984 = vmatpush1.bf16.msra.mxu0 0
  %985 = vmatprep.subr.bf16.mxu0 0
  %986 = vmatpush1.bf16.msra.mxu0 0
  %987 = vmatprep.mubr.bf16.mxu0 0
  %988 = vmatmul.mubr.bf16.gmra.mrb[0].mxu0 %v891
  %v989 = vpop.f32.mrb[0].mxu0
  %v990 = vadd.f32 0.0, %v989
  %v991 = vpop.f32.mrb[0].mxu0
  %v992 = vpop.f32.mrb[0].mxu0
  %v993 = vadd.f32 0.0, %v992
  %v994 = vpop.f32.mrb[0].mxu0
  %995 = vmatprep.mubr.bf16.mxu0 0
  %996 = vmatmul.mubr.bf16.gmra.mrb[0].mxu0 %v892
  %v997 = vpop.f32.mrb[0].mxu0
  %v998 = vadd.f32 0.0, %v997
  %v999 = vpop.f32.mrb[0].mxu0
  %v1000 = vpop.f32.mrb[0].mxu0
  %v1001 = vadd.f32 0.0, %v1000
  %v1002 = vpop.f32.mrb[0].mxu0
  %1003 = vmatprep.mubr.bf16.mxu0 0
  %1004 = vmatmul.mubr.bf16.gmra.mrb[0].mxu0 %v893
  %v1005 = vpop.f32.mrb[0].mxu0
  %v1006 = vadd.f32 0.0, %v1005
  %v1007 = vpop.f32.mrb[0].mxu0
  %v1008 = vpop.f32.mrb[0].mxu0
  %v1009 = vadd.f32 0.0, %v1008
  %v1010 = vpop.f32.mrb[0].mxu0
  %1011 = vmatprep.mubr.bf16.mxu0 0
  %1012 = vmatmul.mubr.bf16.gmra.mrb[0].mxu0 %v894
  %v1013 = vpop.f32.mrb[0].mxu0
  %v1014 = vadd.f32 0.0, %v1013
  %v1015 = vpop.f32.mrb[0].mxu0
  %v1016 = vpop.f32.mrb[0].mxu0
  %v1017 = vadd.f32 0.0, %v1016
  %v1018 = vpop.f32.mrb[0].mxu0
  %1019 = vmatprep.mubr.bf16.mxu0 0
  %1020 = vmatmul.mubr.bf16.gmra.mrb[0].mxu0 %v895
  %v1021 = vpop.f32.mrb[0].mxu0
  %v1022 = vadd.f32 0.0, %v1021
  %v1023 = vpop.f32.mrb[0].mxu0
  %v1024 = vpop.f32.mrb[0].mxu0
  %v1025 = vadd.f32 0.0, %v1024
  %v1026 = vpop.f32.mrb[0].mxu0
  %1027 = vmatprep.mubr.bf16.mxu0 0
  %1028 = vmatmul.mubr.bf16.gmra.mrb[0].mxu0 %v896
  %v1029 = vpop.f32.mrb[0].mxu0
  %v1030 = vadd.f32 0.0, %v1029
  %v1031 = vpop.f32.mrb[0].mxu0
  %v1032 = vpop.f32.mrb[0].mxu0
  %v1033 = vadd.f32 0.0, %v1032
  %v1034 = vpop.f32.mrb[0].mxu0
  %1035 = vmatprep.mubr.bf16.mxu0 0
  %1036 = vmatmul.mubr.bf16.gmra.mrb[0].mxu0 %v897
  %v1037 = vpop.f32.mrb[0].mxu0
  %v1038 = vadd.f32 0.0, %v1037
  %v1039 = vpop.f32.mrb[0].mxu0
  %v1040 = vpop.f32.mrb[0].mxu0
  %v1041 = vadd.f32 0.0, %v1040
  %v1042 = vpop.f32.mrb[0].mxu0
  %1043 = vmatprep.mubr.bf16.mxu0 0
  %1044 = vmatmul.mubr.bf16.gmra.mrb[0].mxu0 %v898
  %v1045 = vpop.f32.mrb[0].mxu0
  %v1046 = vadd.f32 0.0, %v1045
  %v1047 = vpop.f32.mrb[0].mxu0
  %v1048 = vpop.f32.mrb[0].mxu0
  %v1049 = vadd.f32 0.0, %v1048
  %v1050 = vpop.f32.mrb[0].mxu0
  %1051 = vdwg.mxu0
  %v1052 = vadd.f32 %v765, %v990
  %v1053 = vadd.f32 %v768, %v993
  %v1054 = vadd.f32 %v773, %v998
  %v1055 = vadd.f32 %v776, %v1001
  %v1056 = vadd.f32 %v781, %v1006
  %v1057 = vadd.f32 %v784, %v1009
  %v1058 = vadd.f32 %v789, %v1014
  %v1059 = vadd.f32 %v792, %v1017
  %v1060 = vadd.f32 %v797, %v1022
  %v1061 = vadd.f32 %v800, %v1025
  %v1062 = vadd.f32 %v805, %v1030
  %v1063 = vadd.f32 %v808, %v1033
  %v1064 = vadd.f32 %v813, %v1038
  %v1065 = vadd.f32 %v816, %v1041
  %v1066 = vadd.f32 %v821, %v1046
  %v1067 = vadd.f32 %v824, %v1049
  %v1068 = vld [vmem:[%s8] sm:$0x1]
  %v1070 = vlaneseq
  %v1071 = vshrl.u32 %v1070, 7
  %v1072 = vsub.s32 0, %v1071
  %v1073 = vrot.slane %v1068, %v1072
  %v1075 = vadd.f32 %v1052, %v1073
  %v1076 = vadd.f32 %v1053, %v1073
  %v1077 = vadd.f32 %v1054, %v1073
  %v1078 = vadd.f32 %v1055, %v1073
  %v1079 = vadd.f32 %v1056, %v1073
  %v1080 = vadd.f32 %v1057, %v1073
  %v1081 = vadd.f32 %v1058, %v1073
  %v1082 = vadd.f32 %v1059, %v1073
  %v1083 = vadd.f32 %v1060, %v1073
  %v1084 = vadd.f32 %v1061, %v1073
  %v1085 = vadd.f32 %v1062, %v1073
  %v1086 = vadd.f32 %v1063, %v1073
  %v1087 = vadd.f32 %v1064, %v1073
  %v1088 = vadd.f32 %v1065, %v1073
  %v1089 = vadd.f32 %v1066, %v1073
  %v1090 = vadd.f32 %v1067, %v1073
  %vm1091 = vcmp.ge.f32.partialorder %v1075, 0.0
  %vm1092 = vcmp.ge.f32.partialorder %v1076, 0.0
  %vm1093 = vcmp.ge.f32.partialorder %v1077, 0.0
  %vm1094 = vcmp.ge.f32.partialorder %v1078, 0.0
  %vm1095 = vcmp.ge.f32.partialorder %v1079, 0.0
  %vm1096 = vcmp.ge.f32.partialorder %v1080, 0.0
  %vm1097 = vcmp.ge.f32.partialorder %v1081, 0.0
  %vm1098 = vcmp.ge.f32.partialorder %v1082, 0.0
  %vm1099 = vcmp.ge.f32.partialorder %v1083, 0.0
  %vm1100 = vcmp.ge.f32.partialorder %v1084, 0.0
  %vm1101 = vcmp.ge.f32.partialorder %v1085, 0.0
  %vm1102 = vcmp.ge.f32.partialorder %v1086, 0.0
  %vm1103 = vcmp.ge.f32.partialorder %v1087, 0.0
  %vm1104 = vcmp.ge.f32.partialorder %v1088, 0.0
  %vm1105 = vcmp.ge.f32.partialorder %v1089, 0.0
  %vm1106 = vcmp.ge.f32.partialorder %v1090, 0.0
  %v1107 = vmul.f32 %v1075, 0.01
  %v1108 = vmul.f32 %v1076, 0.01
  %v1109 = vmul.f32 %v1077, 0.01
  %v1110 = vmul.f32 %v1078, 0.01
  %v1111 = vmul.f32 %v1079, 0.01
  %v1112 = vmul.f32 %v1080, 0.01
  %v1113 = vmul.f32 %v1081, 0.01
  %v1114 = vmul.f32 %v1082, 0.01
  %v1115 = vmul.f32 %v1083, 0.01
  %v1116 = vmul.f32 %v1084, 0.01
  %v1117 = vmul.f32 %v1085, 0.01
  %v1118 = vmul.f32 %v1086, 0.01
  %v1119 = vmul.f32 %v1087, 0.01
  %v1120 = vmul.f32 %v1088, 0.01
  %v1121 = vmul.f32 %v1089, 0.01
  %v1122 = vmul.f32 %v1090, 0.01
  %v1123 = vsel %vm1091, %v1075, %v1107
  %v1124 = vsel %vm1092, %v1076, %v1108
  %v1125 = vsel %vm1093, %v1077, %v1109
  %v1126 = vsel %vm1094, %v1078, %v1110
  %v1127 = vsel %vm1095, %v1079, %v1111
  %v1128 = vsel %vm1096, %v1080, %v1112
  %v1129 = vsel %vm1097, %v1081, %v1113
  %v1130 = vsel %vm1098, %v1082, %v1114
  %v1131 = vsel %vm1099, %v1083, %v1115
  %v1132 = vsel %vm1100, %v1084, %v1116
  %v1133 = vsel %vm1101, %v1085, %v1117
  %v1134 = vsel %vm1102, %v1086, %v1118
  %v1135 = vsel %vm1103, %v1087, %v1119
  %v1136 = vsel %vm1104, %v1088, %v1120
  %v1137 = vsel %vm1105, %v1089, %v1121
  %v1138 = vsel %vm1106, %v1090, %v1122
  %v1139 = vpack.c.bf16 %v1124, %v1123
  %v1140 = vpack.c.bf16 %v1126, %v1125
  %v1141 = vpack.c.bf16 %v1128, %v1127
  %v1142 = vpack.c.bf16 %v1130, %v1129
  %v1143 = vpack.c.bf16 %v1132, %v1131
  %v1144 = vpack.c.bf16 %v1134, %v1133
  %v1145 = vpack.c.bf16 %v1136, %v1135
  %v1146 = vpack.c.bf16 %v1138, %v1137
  %v1147 = vld [vmem:[%s9] sm:$0xf]
  %v1148 = vld [vmem:[%s9 + $0x4] sm:$0xf]
  %v1149 = vld [vmem:[%s9 + $0x8] sm:$0xf]
  %v1150 = vld [vmem:[%s9 + $0xc] sm:$0xf]
  %v1151 = vld [vmem:[%s9 + $0x10] sm:$0xf]
  %v1152 = vld [vmem:[%s9 + $0x14] sm:$0xf]
  %v1153 = vld [vmem:[%s9 + $0x18] sm:$0xf]
  %v1154 = vld [vmem:[%s9 + $0x1c] sm:$0xf]
  %v1155 = vld [vmem:[%s9 + $0x20] sm:$0xf]
  %v1156 = vld [vmem:[%s9 + $0x24] sm:$0xf]
  %v1157 = vld [vmem:[%s9 + $0x28] sm:$0xf]
  %v1158 = vld [vmem:[%s9 + $0x2c] sm:$0xf]
  %v1159 = vld [vmem:[%s9 + $0x30] sm:$0xf]
  %v1160 = vld [vmem:[%s9 + $0x34] sm:$0xf]
  %v1161 = vld [vmem:[%s9 + $0x38] sm:$0xf]
  %v1162 = vld [vmem:[%s9 + $0x3c] sm:$0xf]
  %v1163 = vld [vmem:[%s10] sm:$0x1]
  %v1165 = vlaneseq
  %v1166 = vshrl.u32 %v1165, 7
  %v1167 = vsub.s32 0, %v1166
  %v1168 = vrot.slane %v1163, %v1167
  %v1186 = vunpack.c.l.b16 %v1147
  %v1187 = vunpack.c.l.b16 %v1148
  %v1188 = vunpack.c.l.b16 %v1149
  %v1189 = vunpack.c.l.b16 %v1150
  %v1190 = vunpack.c.l.b16 %v1151
  %v1191 = vunpack.c.l.b16 %v1152
  %v1192 = vunpack.c.l.b16 %v1153
  %v1193 = vunpack.c.l.b16 %v1154
  %v1194 = vunpack.c.l.b16 %v1155
  %v1195 = vunpack.c.l.b16 %v1156
  %v1196 = vunpack.c.l.b16 %v1157
  %v1197 = vunpack.c.l.b16 %v1158
  %v1198 = vunpack.c.l.b16 %v1159
  %v1199 = vunpack.c.l.b16 %v1160
  %v1200 = vunpack.c.l.b16 %v1161
  %v1201 = vunpack.c.l.b16 %v1162
  %v1202 = vpack.c.b16 %v1187, %v1186
  %v1203 = vpack.c.b16 %v1189, %v1188
  %v1204 = vpack.c.b16 %v1191, %v1190
  %v1205 = vpack.c.b16 %v1193, %v1192
  %v1206 = vpack.c.b16 %v1195, %v1194
  %v1207 = vpack.c.b16 %v1197, %v1196
  %v1208 = vpack.c.b16 %v1199, %v1198
  %v1209 = vpack.c.b16 %v1201, %v1200
  %1218 = vmatprep.subr.bf16.mxu0 0
  %1219 = vmatpush1.bf16.msra.mxu0 %v1202
  %1220 = vmatprep.subr.bf16.mxu0 0
  %1221 = vmatpush1.bf16.msra.mxu0 %v1203
  %1222 = vmatprep.subr.bf16.mxu0 0
  %1223 = vmatpush1.bf16.msra.mxu0 %v1204
  %1224 = vmatprep.subr.bf16.mxu0 0
  %1225 = vmatpush1.bf16.msra.mxu0 %v1205
  %1226 = vmatprep.subr.bf16.mxu0 0
  %1227 = vmatpush1.bf16.msra.mxu0 %v1206
  %1228 = vmatprep.subr.bf16.mxu0 0
  %1229 = vmatpush1.bf16.msra.mxu0 %v1207
  %1230 = vmatprep.subr.bf16.mxu0 0
  %1231 = vmatpush1.bf16.msra.mxu0 %v1208
  %1232 = vmatprep.subr.bf16.mxu0 0
  %1233 = vmatpush1.bf16.msra.mxu0 %v1209
  %1234 = vmatprep.subr.bf16.mxu0 0
  %1235 = vmatpush1.bf16.msra.mxu0 0
  %1236 = vmatprep.subr.bf16.mxu0 0
  %1237 = vmatpush1.bf16.msra.mxu0 0
  %1238 = vmatprep.subr.bf16.mxu0 0
  %1239 = vmatpush1.bf16.msra.mxu0 0
  %1240 = vmatprep.subr.bf16.mxu0 0
  %1241 = vmatpush1.bf16.msra.mxu0 0
  %1242 = vmatprep.subr.bf16.mxu0 0
  %1243 = vmatpush1.bf16.msra.mxu0 0
  %1244 = vmatprep.subr.bf16.mxu0 0
  %1245 = vmatpush1.bf16.msra.mxu0 0
  %1246 = vmatprep.subr.bf16.mxu0 0
  %1247 = vmatpush1.bf16.msra.mxu0 0
  %1248 = vmatprep.subr.bf16.mxu0 0
  %1249 = vmatpush1.bf16.msra.mxu0 0
  %1250 = vmatprep.mubr.bf16.mxu0 0
  %1251 = vmatmul.mubr.bf16.gmra.mrb[0].mxu0 %v1139
  %v1252 = vpop.f32.mrb[0].mxu0
  %v1253 = vadd.f32 %v1168, %v1252
  %v1254 = vpop.f32.mrb[0].mxu0
  %v1255 = vpop.f32.mrb[0].mxu0
  %v1256 = vadd.f32 %v1168, %v1255
  %v1257 = vpop.f32.mrb[0].mxu0
  %1258 = vmatprep.mubr.bf16.mxu0 0
  %1259 = vmatmul.mubr.bf16.gmra.mrb[0].mxu0 %v1140
  %v1260 = vpop.f32.mrb[0].mxu0
  %v1261 = vadd.f32 %v1168, %v1260
  %v1262 = vpop.f32.mrb[0].mxu0
  %v1263 = vpop.f32.mrb[0].mxu0
  %v1264 = vadd.f32 %v1168, %v1263
  %v1265 = vpop.f32.mrb[0].mxu0
  %1266 = vmatprep.mubr.bf16.mxu0 0
  %1267 = vmatmul.mubr.bf16.gmra.mrb[0].mxu0 %v1141
  %v1268 = vpop.f32.mrb[0].mxu0
  %v1269 = vadd.f32 %v1168, %v1268
  %v1270 = vpop.f32.mrb[0].mxu0
  %v1271 = vpop.f32.mrb[0].mxu0
  %v1272 = vadd.f32 %v1168, %v1271
  %v1273 = vpop.f32.mrb[0].mxu0
  %1274 = vmatprep.mubr.bf16.mxu0 0
  %1275 = vmatmul.mubr.bf16.gmra.mrb[0].mxu0 %v1142
  %v1276 = vpop.f32.mrb[0].mxu0
  %v1277 = vadd.f32 %v1168, %v1276
  %v1278 = vpop.f32.mrb[0].mxu0
  %v1279 = vpop.f32.mrb[0].mxu0
  %v1280 = vadd.f32 %v1168, %v1279
  %v1281 = vpop.f32.mrb[0].mxu0
  %1282 = vmatprep.mubr.bf16.mxu0 0
  %1283 = vmatmul.mubr.bf16.gmra.mrb[0].mxu0 %v1143
  %v1284 = vpop.f32.mrb[0].mxu0
  %v1285 = vadd.f32 %v1168, %v1284
  %v1286 = vpop.f32.mrb[0].mxu0
  %v1287 = vpop.f32.mrb[0].mxu0
  %v1288 = vadd.f32 %v1168, %v1287
  %v1289 = vpop.f32.mrb[0].mxu0
  %1290 = vmatprep.mubr.bf16.mxu0 0
  %1291 = vmatmul.mubr.bf16.gmra.mrb[0].mxu0 %v1144
  %v1292 = vpop.f32.mrb[0].mxu0
  %v1293 = vadd.f32 %v1168, %v1292
  %v1294 = vpop.f32.mrb[0].mxu0
  %v1295 = vpop.f32.mrb[0].mxu0
  %v1296 = vadd.f32 %v1168, %v1295
  %v1297 = vpop.f32.mrb[0].mxu0
  %1298 = vmatprep.mubr.bf16.mxu0 0
  %1299 = vmatmul.mubr.bf16.gmra.mrb[0].mxu0 %v1145
  %v1300 = vpop.f32.mrb[0].mxu0
  %v1301 = vadd.f32 %v1168, %v1300
  %v1302 = vpop.f32.mrb[0].mxu0
  %v1303 = vpop.f32.mrb[0].mxu0
  %v1304 = vadd.f32 %v1168, %v1303
  %v1305 = vpop.f32.mrb[0].mxu0
  %1306 = vmatprep.mubr.bf16.mxu0 0
  %1307 = vmatmul.mubr.bf16.gmra.mrb[0].mxu0 %v1146
  %v1308 = vpop.f32.mrb[0].mxu0
  %v1309 = vadd.f32 %v1168, %v1308
  %v1310 = vpop.f32.mrb[0].mxu0
  %v1311 = vpop.f32.mrb[0].mxu0
  %v1312 = vadd.f32 %v1168, %v1311
  %v1313 = vpop.f32.mrb[0].mxu0
  %1314 = vdwg.mxu0
  %1315 = vst [vmem:[%s11] sm:$0xff] %v1253
  %1316 = vst [vmem:[%s11 + $0x8] sm:$0xff] %v1256
  %1317 = vst [vmem:[%s11 + $0x10] sm:$0xff] %v1261
  %1318 = vst [vmem:[%s11 + $0x18] sm:$0xff] %v1264
  %1319 = vst [vmem:[%s11 + $0x20] sm:$0xff] %v1269
  %1320 = vst [vmem:[%s11 + $0x28] sm:$0xff] %v1272
  %1321 = vst [vmem:[%s11 + $0x30] sm:$0xff] %v1277
  %1322 = vst [vmem:[%s11 + $0x38] sm:$0xff] %v1280
  %1323 = vst [vmem:[%s11 + $0x40] sm:$0xff] %v1285
  %1324 = vst [vmem:[%s11 + $0x48] sm:$0xff] %v1288
  %1325 = vst [vmem:[%s11 + $0x50] sm:$0xff] %v1293
  %1326 = vst [vmem:[%s11 + $0x58] sm:$0xff] %v1296
  %1327 = vst [vmem:[%s11 + $0x60] sm:$0xff] %v1301
  %1328 = vst [vmem:[%s11 + $0x68] sm:$0xff] %v1304
  %1329 = vst [vmem:[%s11 + $0x70] sm:$0xff] %v1309
  %1330 = vst [vmem:[%s11 + $0x78] sm:$0xff] %v1312
  // Predicated region
  $region46: #{hetero_gnn_forward.5} parent=0 // pred_check
    _
  $region47: #{hetero_gnn_forward.5} parent=0 // pred_check_branch
    %1332 = sbr.rel (0) target = $region49
  $region48: #{hetero_gnn_forward.5} parent=0 // pred_region
    _
  $region49: #{hetero_gnn_forward.5} parent=0 // pred_fallthru
    _
  // Predicated region
  $region50: #{hetero_gnn_forward.5} parent=0 // pred_check
    _
  $region51: #{hetero_gnn_forward.5} parent=0 // pred_check_branch
    %1334 = sbr.rel (0) target = $region53
  $region52: #{hetero_gnn_forward.5} parent=0 // pred_region
    _
  $region53: #{hetero_gnn_forward.5} parent=0 // pred_fallthru
    _

</llo_original>
